<compile_context>
chip_gen: v7x
topology: tpu7x:2x2x1
jax: 0.10.0
libtpu: 0.0.40
codegen_flags: <defaults>
</compile_context>

<pallas_src>
import functools
import math

import jax
import jax.numpy as jnp
from jax.experimental import pallas as pl
from jax.experimental.pallas import tpu as pltpu

# ----------------------------- config -----------------------------
VOCAB = 64
MAX_POS = 16
D = 32           # hidden size
H = 4            # attention heads
DH = D // H      # head dim
FFN = 64         # intermediate size
LAYERS = 2
B = 2            # batch
S = 8            # sequence length
NUM_CLASSES = 2
LOGIT_PAD = 128  # lane-dense padded logits width
LN_EPS = 1e-12
NEG_INF = -1e9


# ----------------------------- fused kernel -----------------------------
def _encoder_kernel(ids_ref, mask_ref, word_emb_ref, pos_emb_ref,
                    emb_g_ref, emb_b_ref,
                    qkv_w_ref, qkv_b_ref, o_w_ref, o_b_ref,
                    sa_g_ref, sa_b_ref, f1_w_ref, f1_b_ref,
                    f2_w_ref, f2_b_ref, out_g_ref, out_b_ref,
                    cls_w_ref, cls_b_ref, o_ref, ctx_ref):
    """One sequence per program: embedding + LAYERS transformer blocks + head."""
    dot = functools.partial(jnp.dot, preferred_element_type=jnp.float32)

    def dot_nt(a, b):  # a @ b.T without materializing a transpose
        return jax.lax.dot_general(
            a, b, (((1,), (1,)), ((), ())), preferred_element_type=jnp.float32)

    def layer_norm(x, g, b):
        # Two independent cross-lane reductions (sum, sum of squares) so the
        # XLU units can overlap them; var = E[x^2] - mean^2.
        s1 = jnp.sum(x, axis=-1, keepdims=True)
        s2 = jnp.sum(x * x, axis=-1, keepdims=True)
        mean = s1 * (1.0 / D)
        var = s2 * (1.0 / D) - mean * mean
        return (x - mean) * jax.lax.rsqrt(var + LN_EPS) * g + b

    def gelu(x):
        # TODO(synk): DistilBERT uses exact erf-GELU; tanh approximation kept
        # for guaranteed TPU lowering.
        return 0.5 * x * (1.0 + jnp.tanh(
            0.7978845608028654 * (x + 0.044715 * x * x * x)))

    # ---- token embedding as a one-hot MXU gather + positional add + LN ----
    ids = ids_ref[0]                                              # (S, 1) int32
    onehot = (jax.lax.broadcasted_iota(jnp.int32, (S, VOCAB), 1)
              == ids).astype(jnp.float32)                         # (S, VOCAB)
    x = dot(onehot, word_emb_ref[...]) + pos_emb_ref[0:S, :]      # (S, D)
    h = layer_norm(x, emb_g_ref[...], emb_b_ref[...])

    # ---- additive key-padding mask, built in-kernel ----
    mask_add = jnp.where(mask_ref[0] == 0, NEG_INF, 0.0)          # (1, S)

    scale = 1.0 / math.sqrt(DH)
    # NOTE: static unroll is fine at LAYERS=2; switch to lax.fori_loop with
    # dynamic ref[li] indexing if LAYERS grows (bounds vreg live ranges).
    for li in range(LAYERS):
        # fused QKV projection: one (S, D) x (D, 3D) MXU pass
        qkv = dot(h, qkv_w_ref[li]) + qkv_b_ref[li]               # (S, 3D)
        q = qkv[:, 0:D] * scale
        k = qkv[:, D:2 * D]
        v = qkv[:, 2 * D:3 * D]

        # Multi-head attention: each head's context lands at its lane offset
        # in a VMEM scratch, so the output projection is a single matmul.
        for hh in range(H):                                       # static unroll
            c0, c1 = hh * DH, (hh + 1) * DH
            s = dot_nt(q[:, c0:c1], k[:, c0:c1]) + mask_add       # (S, S)
            s = s - jnp.max(s, axis=-1, keepdims=True)
            p = jnp.exp(s)
            p = p * pl.reciprocal(jnp.sum(p, axis=-1, keepdims=True), approx=True)
            ctx_ref[:, c0:c1] = dot(p, v[:, c0:c1])               # (S, DH)

        attn = dot(ctx_ref[...], o_w_ref[li]) + o_b_ref[li]       # (S, D)
        h = layer_norm(attn + h, sa_g_ref[li], sa_b_ref[li])

        # ---- FFN ----
        ff = gelu(dot(h, f1_w_ref[li]) + f1_b_ref[li])
        ff = dot(ff, f2_w_ref[li]) + f2_b_ref[li]
        h = layer_norm(ff + h, out_g_ref[li], out_b_ref[li])

    # ---- classifier head into a lane-dense (S, 128) slab ----
    # nn.Dropout(p=0.3) on the CLS embedding: identity in eval mode.
    # Only row 0 (the CLS token) is consumed by the wrapper, but S=8 rows is
    # already the minimum sublane-aligned tile, so the full block is projected.
    o_ref[0] = dot(h, cls_w_ref[...]) + cls_b_ref[...]


# ----------------------------- params -----------------------------
def init_params(key):
    def dense(k, fan_in, fan_out):
        w = 0.02 * jax.random.normal(k, (fan_in, fan_out), jnp.float32)
        b = jnp.zeros((fan_out,), jnp.float32)
        return w, b

    keys = jax.random.split(key, 3 + LAYERS)
    params = {
        "word_emb": 0.02 * jax.random.normal(keys[0], (VOCAB, D), jnp.float32),
        "pos_emb": 0.02 * jax.random.normal(keys[1], (MAX_POS, D), jnp.float32),
        "emb_ln_g": jnp.ones((1, D), jnp.float32),
        "emb_ln_b": jnp.zeros((1, D), jnp.float32),
    }

    qkv_w, qkv_b, o_w, o_b = [], [], [], []
    f1_w, f1_b, f2_w, f2_b = [], [], [], []
    for li in range(LAYERS):
        lk = jax.random.split(keys[3 + li], 6)
        qw, qb = dense(lk[0], D, D)
        kw, kb = dense(lk[1], D, D)
        vw, vb = dense(lk[2], D, D)
        # Fused QKV weight (D, 3D); head columns stay contiguous per block.
        qkv_w.append(jnp.concatenate([qw, kw, vw], axis=1))
        qkv_b.append(jnp.concatenate([qb, kb, vb]).reshape(1, 3 * D))
        ow, ob = dense(lk[3], D, D)
        o_w.append(ow)
        o_b.append(ob.reshape(1, D))
        w1, b1 = dense(lk[4], D, FFN)
        f1_w.append(w1)
        f1_b.append(b1.reshape(1, FFN))
        w2, b2 = dense(lk[5], FFN, D)
        f2_w.append(w2)
        f2_b.append(b2.reshape(1, D))

    params.update({
        "qkv_w": jnp.stack(qkv_w), "qkv_b": jnp.stack(qkv_b),
        "o_w": jnp.stack(o_w), "o_b": jnp.stack(o_b),
        "sa_ln_g": jnp.ones((LAYERS, 1, D), jnp.float32),
        "sa_ln_b": jnp.zeros((LAYERS, 1, D), jnp.float32),
        "ffn1_w": jnp.stack(f1_w), "ffn1_b": jnp.stack(f1_b),
        "ffn2_w": jnp.stack(f2_w), "ffn2_b": jnp.stack(f2_b),
        "out_ln_g": jnp.ones((LAYERS, 1, D), jnp.float32),
        "out_ln_b": jnp.zeros((LAYERS, 1, D), jnp.float32),
    })

    cw, cb = dense(keys[2], D, NUM_CLASSES)
    # Pre-pad the classifier to a lane-dense 128-wide slab (zeros beyond col 2).
    params["cls_w"] = jnp.zeros((D, LOGIT_PAD), jnp.float32).at[:, :NUM_CLASSES].set(cw)
    params["cls_b"] = jnp.zeros((1, LOGIT_PAD), jnp.float32).at[:, :NUM_CLASSES].set(cb)
    return params


# ----------------------------- forward -----------------------------
def sentiment_classifier_forward(params, input_ids, attention_mask):
    Bx, Sx = input_ids.shape

    # Per-sequence views; these reshapes are metadata-only.  The embedding
    # gather, positional add, mask construction, encoder and classifier all
    # run inside the single fused Pallas kernel below.
    ids3 = input_ids.astype(jnp.int32).reshape(Bx, Sx, 1)
    mask3 = attention_mask.astype(jnp.int32).reshape(Bx, 1, Sx)

    def full_spec(arr):
        zeros = (0,) * arr.ndim
        return pl.BlockSpec(arr.shape, lambda b, z=zeros: z)

    weights = (params["word_emb"], params["pos_emb"],
               params["emb_ln_g"], params["emb_ln_b"],
               params["qkv_w"], params["qkv_b"],
               params["o_w"], params["o_b"],
               params["sa_ln_g"], params["sa_ln_b"],
               params["ffn1_w"], params["ffn1_b"],
               params["ffn2_w"], params["ffn2_b"],
               params["out_ln_g"], params["out_ln_b"],
               params["cls_w"], params["cls_b"])

    logits_all = pl.pallas_call(
        _encoder_kernel,
        grid=(Bx,),
        out_shape=jax.ShapeDtypeStruct((Bx, Sx, LOGIT_PAD), jnp.float32),
        in_specs=[pl.BlockSpec((1, Sx, 1), lambda b: (b, 0, 0)),      # input_ids
                  pl.BlockSpec((1, 1, Sx), lambda b: (b, 0, 0))]      # attention_mask
                 + [full_spec(w) for w in weights],                   # VMEM-resident weights
        out_specs=pl.BlockSpec((1, Sx, LOGIT_PAD), lambda b: (b, 0, 0)),
        scratch_shapes=[pltpu.VMEM((Sx, D), jnp.float32)],            # per-head ctx slab
        compiler_params=pltpu.CompilerParams(
            dimension_semantics=("parallel",)),                       # v7x: one seq per TC
    )(ids3, mask3, *weights)

    # CLS-token logits: position 0 of each sequence, first NUM_CLASSES lanes.
    return logits_all[:, 0, :NUM_CLASSES]


# ----------------------------- main -----------------------------
if __name__ == "__main__":
    key = jax.random.PRNGKey(0)
    pkey, ikey = jax.random.split(key)
    params = init_params(pkey)

    input_ids = jax.random.randint(ikey, (B, S), 0, VOCAB, dtype=jnp.int32)
    attention_mask = jnp.array(
        [[1, 1, 1, 1, 1, 1, 1, 1],
         [1, 1, 1, 1, 1, 0, 0, 0]], dtype=jnp.int32)

    logits = jax.jit(sentiment_classifier_forward)(params, input_ids, attention_mask)
    logits = jax.block_until_ready(logits)
    assert logits.shape == (B, NUM_CLASSES) and logits.dtype == jnp.float32
    print("KERNEL_OK")
</pallas_src>

<mosaic_0001>
module attributes {stable_mosaic.version = 11 : i64} {
  func.func @_encoder_kernel(%arg0: i32, %arg1: memref<1x8x1xi32, #tpu.memory_space<vmem>>, %arg2: memref<1x1x8xi32, #tpu.memory_space<vmem>>, %arg3: memref<64x32xf32, #tpu.memory_space<vmem>>, %arg4: memref<16x32xf32, #tpu.memory_space<vmem>>, %arg5: memref<1x32xf32, #tpu.memory_space<vmem>>, %arg6: memref<1x32xf32, #tpu.memory_space<vmem>>, %arg7: memref<2x32x96xf32, #tpu.memory_space<vmem>>, %arg8: memref<2x1x96xf32, #tpu.memory_space<vmem>>, %arg9: memref<2x32x32xf32, #tpu.memory_space<vmem>>, %arg10: memref<2x1x32xf32, #tpu.memory_space<vmem>>, %arg11: memref<2x1x32xf32, #tpu.memory_space<vmem>>, %arg12: memref<2x1x32xf32, #tpu.memory_space<vmem>>, %arg13: memref<2x32x64xf32, #tpu.memory_space<vmem>>, %arg14: memref<2x1x64xf32, #tpu.memory_space<vmem>>, %arg15: memref<2x64x32xf32, #tpu.memory_space<vmem>>, %arg16: memref<2x1x32xf32, #tpu.memory_space<vmem>>, %arg17: memref<2x1x32xf32, #tpu.memory_space<vmem>>, %arg18: memref<2x1x32xf32, #tpu.memory_space<vmem>>, %arg19: memref<32x128xf32, #tpu.memory_space<vmem>>, %arg20: memref<1x128xf32, #tpu.memory_space<vmem>>, %arg21: memref<1x8x128xf32, #tpu.memory_space<vmem>>, %arg22: memref<8x32xf32, #tpu.memory_space<vmem>>) attributes {dimension_semantics = [#tpu.dimension_semantics<parallel>], iteration_bounds = array<i64: 2>, scalar_prefetch = 0 : i64, scratch_operands = 1 : i64, tpu.core_type = #tpu.core_type<tc>, window_params = [{transform_indices = @transform_0, window_bounds = array<i64: 1, 8, 1>}, {transform_indices = @transform_1, window_bounds = array<i64: 1, 1, 8>}, {pipeline_mode = #tpu.pipeline_mode<synchronous>, transform_indices = @transform_2, window_bounds = array<i64: 64, 32>}, {pipeline_mode = #tpu.pipeline_mode<synchronous>, transform_indices = @transform_3, window_bounds = array<i64: 16, 32>}, {pipeline_mode = #tpu.pipeline_mode<synchronous>, transform_indices = @transform_4, window_bounds = array<i64: 1, 32>}, {pipeline_mode = #tpu.pipeline_mode<synchronous>, transform_indices = @transform_5, window_bounds = array<i64: 1, 32>}, {pipeline_mode = #tpu.pipeline_mode<synchronous>, transform_indices = @transform_6, window_bounds = array<i64: 2, 32, 96>}, {pipeline_mode = #tpu.pipeline_mode<synchronous>, transform_indices = @transform_7, window_bounds = array<i64: 2, 1, 96>}, {pipeline_mode = #tpu.pipeline_mode<synchronous>, transform_indices = @transform_8, window_bounds = array<i64: 2, 32, 32>}, {pipeline_mode = #tpu.pipeline_mode<synchronous>, transform_indices = @transform_9, window_bounds = array<i64: 2, 1, 32>}, {pipeline_mode = #tpu.pipeline_mode<synchronous>, transform_indices = @transform_10, window_bounds = array<i64: 2, 1, 32>}, {pipeline_mode = #tpu.pipeline_mode<synchronous>, transform_indices = @transform_11, window_bounds = array<i64: 2, 1, 32>}, {pipeline_mode = #tpu.pipeline_mode<synchronous>, transform_indices = @transform_12, window_bounds = array<i64: 2, 32, 64>}, {pipeline_mode = #tpu.pipeline_mode<synchronous>, transform_indices = @transform_13, window_bounds = array<i64: 2, 1, 64>}, {pipeline_mode = #tpu.pipeline_mode<synchronous>, transform_indices = @transform_14, window_bounds = array<i64: 2, 64, 32>}, {pipeline_mode = #tpu.pipeline_mode<synchronous>, transform_indices = @transform_15, window_bounds = array<i64: 2, 1, 32>}, {pipeline_mode = #tpu.pipeline_mode<synchronous>, transform_indices = @transform_16, window_bounds = array<i64: 2, 1, 32>}, {pipeline_mode = #tpu.pipeline_mode<synchronous>, transform_indices = @transform_17, window_bounds = array<i64: 2, 1, 32>}, {pipeline_mode = #tpu.pipeline_mode<synchronous>, transform_indices = @transform_18, window_bounds = array<i64: 32, 128>}, {pipeline_mode = #tpu.pipeline_mode<synchronous>, transform_indices = @transform_19, window_bounds = array<i64: 1, 128>}, {transform_indices = @transform_20, window_bounds = array<i64: 1, 8, 128>}]} {
    %c0 = arith.constant 0 : index
    %c0_0 = arith.constant 0 : index
    %c0_1 = arith.constant 0 : index
    %0 = vector.load %arg1[%c0, %c0_0, %c0_1] : memref<1x8x1xi32, #tpu.memory_space<vmem>>, vector<1x8x1xi32>
    %1 = vector.shape_cast %0 : vector<1x8x1xi32> to vector<8x1xi32>
    %2 = tpu.iota {dimensions = array<i32: 1>} : vector<8x64xi32>
    %3 = vector.broadcast %1 : vector<8x1xi32> to vector<8x64xi32>
    %4 = arith.cmpi eq, %2, %3 : vector<8x64xi32>
    %5 = arith.extui %4 : vector<8x64xi1> to vector<8x64xi32>
    %6 = arith.sitofp %5 : vector<8x64xi32> to vector<8x64xf32>
    %c0_2 = arith.constant 0 : index
    %c0_3 = arith.constant 0 : index
    %7 = vector.load %arg3[%c0_2, %c0_3] : memref<64x32xf32, #tpu.memory_space<vmem>>, vector<64x32xf32>
    %cst = arith.constant dense<0.000000e+00> : vector<8x32xf32>
    %8 = tpu.matmul %6, %7, %cst {dimension_numbers = #tpu.dot_dimension_numbers<[1], [0], [0], [1], [0, 0, 1, 1], [], []>} : vector<8x64xf32>, vector<64x32xf32>, vector<8x32xf32> -> vector<8x32xf32>
    %c0_4 = arith.constant 0 : index
    %c0_5 = arith.constant 0 : index
    %9 = vector.load %arg4[%c0_4, %c0_5] : memref<16x32xf32, #tpu.memory_space<vmem>>, vector<8x32xf32>
    %10 = arith.addf %8, %9 : vector<8x32xf32>
    %c0_6 = arith.constant 0 : index
    %c0_7 = arith.constant 0 : index
    %11 = vector.load %arg5[%c0_6, %c0_7] : memref<1x32xf32, #tpu.memory_space<vmem>>, vector<1x32xf32>
    %c0_8 = arith.constant 0 : index
    %c0_9 = arith.constant 0 : index
    %12 = vector.load %arg6[%c0_8, %c0_9] : memref<1x32xf32, #tpu.memory_space<vmem>>, vector<1x32xf32>
    %cst_10 = arith.constant dense<0.000000e+00> : vector<8xf32>
    %13 = vector.multi_reduction <add>, %10, %cst_10 [1] : vector<8x32xf32> to vector<8xf32>
    %14 = vector.shape_cast %13 : vector<8xf32> to vector<8x1xf32>
    %15 = arith.mulf %10, %10 : vector<8x32xf32>
    %cst_11 = arith.constant dense<0.000000e+00> : vector<8xf32>
    %16 = vector.multi_reduction <add>, %15, %cst_11 [1] : vector<8x32xf32> to vector<8xf32>
    %17 = vector.shape_cast %16 : vector<8xf32> to vector<8x1xf32>
    %cst_12 = arith.constant 3.125000e-02 : f32
    %18 = vector.broadcast %cst_12 : f32 to vector<8x1xf32>
    %19 = arith.mulf %14, %18 : vector<8x1xf32>
    %cst_13 = arith.constant 3.125000e-02 : f32
    %20 = vector.broadcast %cst_13 : f32 to vector<8x1xf32>
    %21 = arith.mulf %17, %20 : vector<8x1xf32>
    %22 = arith.mulf %19, %19 : vector<8x1xf32>
    %23 = arith.subf %21, %22 : vector<8x1xf32>
    %24 = vector.broadcast %19 : vector<8x1xf32> to vector<8x32xf32>
    %25 = arith.subf %10, %24 : vector<8x32xf32>
    %cst_14 = arith.constant 9.99999996E-13 : f32
    %26 = vector.broadcast %cst_14 : f32 to vector<8x1xf32>
    %27 = arith.addf %23, %26 : vector<8x1xf32>
    %28 = math.rsqrt %27 : vector<8x1xf32>
    %29 = vector.broadcast %28 : vector<8x1xf32> to vector<8x32xf32>
    %30 = arith.mulf %25, %29 : vector<8x32xf32>
    %31 = vector.broadcast %11 : vector<1x32xf32> to vector<8x32xf32>
    %32 = arith.mulf %30, %31 : vector<8x32xf32>
    %33 = vector.broadcast %12 : vector<1x32xf32> to vector<8x32xf32>
    %34 = arith.addf %32, %33 : vector<8x32xf32>
    %c0_15 = arith.constant 0 : index
    %c0_16 = arith.constant 0 : index
    %c0_17 = arith.constant 0 : index
    %35 = vector.load %arg2[%c0_15, %c0_16, %c0_17] : memref<1x1x8xi32, #tpu.memory_space<vmem>>, vector<1x1x8xi32>
    %36 = vector.shape_cast %35 : vector<1x1x8xi32> to vector<1x8xi32>
    %c0_i32 = arith.constant 0 : i32
    %37 = vector.broadcast %c0_i32 : i32 to vector<1x8xi32>
    %38 = arith.cmpi eq, %36, %37 : vector<1x8xi32>
    %cst_18 = arith.constant -1.000000e+09 : f32
    %cst_19 = arith.constant 0.000000e+00 : f32
    %39 = vector.broadcast %cst_18 : f32 to vector<1x8xf32>
    %40 = vector.broadcast %cst_19 : f32 to vector<1x8xf32>
    %41 = arith.select %38, %39, %40 : vector<1x8xi1>, vector<1x8xf32>
    %c0_20 = arith.constant 0 : index
    %c0_21 = arith.constant 0 : index
    %c0_22 = arith.constant 0 : index
    %42 = vector.load %arg7[%c0_20, %c0_21, %c0_22] : memref<2x32x96xf32, #tpu.memory_space<vmem>>, vector<1x32x96xf32>
    %43 = vector.shape_cast %42 : vector<1x32x96xf32> to vector<32x96xf32>
    %cst_23 = arith.constant dense<0.000000e+00> : vector<8x96xf32>
    %44 = tpu.matmul %34, %43, %cst_23 {dimension_numbers = #tpu.dot_dimension_numbers<[1], [0], [0], [1], [0, 0, 1, 1], [], []>} : vector<8x32xf32>, vector<32x96xf32>, vector<8x96xf32> -> vector<8x96xf32>
    %c0_24 = arith.constant 0 : index
    %c0_25 = arith.constant 0 : index
    %c0_26 = arith.constant 0 : index
    %45 = vector.load %arg8[%c0_24, %c0_25, %c0_26] : memref<2x1x96xf32, #tpu.memory_space<vmem>>, vector<1x1x96xf32>
    %46 = vector.shape_cast %45 : vector<1x1x96xf32> to vector<1x96xf32>
    %47 = vector.broadcast %46 : vector<1x96xf32> to vector<8x96xf32>
    %48 = arith.addf %44, %47 : vector<8x96xf32>
    %49 = vector.extract_strided_slice %48 {offsets = [0, 0], sizes = [8, 32], strides = [1, 1]} : vector<8x96xf32> to vector<8x32xf32>
    %cst_27 = arith.constant 0.353553385 : f32
    %50 = vector.broadcast %cst_27 : f32 to vector<8x32xf32>
    %51 = arith.mulf %49, %50 : vector<8x32xf32>
    %52 = vector.extract_strided_slice %48 {offsets = [0, 32], sizes = [8, 32], strides = [1, 1]} : vector<8x96xf32> to vector<8x32xf32>
    %53 = vector.extract_strided_slice %48 {offsets = [0, 64], sizes = [8, 32], strides = [1, 1]} : vector<8x96xf32> to vector<8x32xf32>
    %54 = vector.extract_strided_slice %51 {offsets = [0, 0], sizes = [8, 8], strides = [1, 1]} : vector<8x32xf32> to vector<8x8xf32>
    %55 = vector.extract_strided_slice %52 {offsets = [0, 0], sizes = [8, 8], strides = [1, 1]} : vector<8x32xf32> to vector<8x8xf32>
    %cst_28 = arith.constant dense<0.000000e+00> : vector<8x8xf32>
    %56 = tpu.matmul %54, %55, %cst_28 {dimension_numbers = #tpu.dot_dimension_numbers<[1], [1], [0], [0], [0, 0, 1, 0], [], []>} : vector<8x8xf32>, vector<8x8xf32>, vector<8x8xf32> -> vector<8x8xf32>
    %57 = vector.broadcast %41 : vector<1x8xf32> to vector<8x8xf32>
    %58 = arith.addf %56, %57 : vector<8x8xf32>
    %cst_29 = arith.constant dense<0xFF800000> : vector<8xf32>
    %59 = vector.multi_reduction <maximumf>, %58, %cst_29 [1] : vector<8x8xf32> to vector<8xf32>
    %60 = vector.shape_cast %59 : vector<8xf32> to vector<8x1xf32>
    %61 = vector.broadcast %60 : vector<8x1xf32> to vector<8x8xf32>
    %62 = arith.subf %58, %61 : vector<8x8xf32>
    %63 = math.exp %62 : vector<8x8xf32>
    %cst_30 = arith.constant dense<0.000000e+00> : vector<8xf32>
    %64 = vector.multi_reduction <add>, %63, %cst_30 [1] : vector<8x8xf32> to vector<8xf32>
    %65 = vector.shape_cast %64 : vector<8xf32> to vector<8x1xf32>
    %66 = tpu.reciprocal %65 {approx = true} : vector<8x1xf32> -> vector<8x1xf32>
    %67 = vector.broadcast %66 : vector<8x1xf32> to vector<8x8xf32>
    %68 = arith.mulf %63, %67 : vector<8x8xf32>
    %69 = vector.extract_strided_slice %53 {offsets = [0, 0], sizes = [8, 8], strides = [1, 1]} : vector<8x32xf32> to vector<8x8xf32>
    %cst_31 = arith.constant dense<0.000000e+00> : vector<8x8xf32>
    %70 = tpu.matmul %68, %69, %cst_31 {dimension_numbers = #tpu.dot_dimension_numbers<[1], [0], [0], [1], [0, 0, 1, 1], [], []>} : vector<8x8xf32>, vector<8x8xf32>, vector<8x8xf32> -> vector<8x8xf32>
    %c0_32 = arith.constant 0 : index
    %c0_33 = arith.constant 0 : index
    %71 = vector.load %arg22[%c0_32, %c0_33] : memref<8x32xf32, #tpu.memory_space<vmem>>, vector<8x8xf32>
    tpu.vector_store %arg22[%c0_32, %c0_33], %70 {strides = array<i32>} : memref<8x32xf32, #tpu.memory_space<vmem>>, vector<8x8xf32>,
    %72 = vector.extract_strided_slice %51 {offsets = [0, 8], sizes = [8, 8], strides = [1, 1]} : vector<8x32xf32> to vector<8x8xf32>
    %73 = vector.extract_strided_slice %52 {offsets = [0, 8], sizes = [8, 8], strides = [1, 1]} : vector<8x32xf32> to vector<8x8xf32>
    %cst_34 = arith.constant dense<0.000000e+00> : vector<8x8xf32>
    %74 = tpu.matmul %72, %73, %cst_34 {dimension_numbers = #tpu.dot_dimension_numbers<[1], [1], [0], [0], [0, 0, 1, 0], [], []>} : vector<8x8xf32>, vector<8x8xf32>, vector<8x8xf32> -> vector<8x8xf32>
    %75 = vector.broadcast %41 : vector<1x8xf32> to vector<8x8xf32>
    %76 = arith.addf %74, %75 : vector<8x8xf32>
    %cst_35 = arith.constant dense<0xFF800000> : vector<8xf32>
    %77 = vector.multi_reduction <maximumf>, %76, %cst_35 [1] : vector<8x8xf32> to vector<8xf32>
    %78 = vector.shape_cast %77 : vector<8xf32> to vector<8x1xf32>
    %79 = vector.broadcast %78 : vector<8x1xf32> to vector<8x8xf32>
    %80 = arith.subf %76, %79 : vector<8x8xf32>
    %81 = math.exp %80 : vector<8x8xf32>
    %cst_36 = arith.constant dense<0.000000e+00> : vector<8xf32>
    %82 = vector.multi_reduction <add>, %81, %cst_36 [1] : vector<8x8xf32> to vector<8xf32>
    %83 = vector.shape_cast %82 : vector<8xf32> to vector<8x1xf32>
    %84 = tpu.reciprocal %83 {approx = true} : vector<8x1xf32> -> vector<8x1xf32>
    %85 = vector.broadcast %84 : vector<8x1xf32> to vector<8x8xf32>
    %86 = arith.mulf %81, %85 : vector<8x8xf32>
    %87 = vector.extract_strided_slice %53 {offsets = [0, 8], sizes = [8, 8], strides = [1, 1]} : vector<8x32xf32> to vector<8x8xf32>
    %cst_37 = arith.constant dense<0.000000e+00> : vector<8x8xf32>
    %88 = tpu.matmul %86, %87, %cst_37 {dimension_numbers = #tpu.dot_dimension_numbers<[1], [0], [0], [1], [0, 0, 1, 1], [], []>} : vector<8x8xf32>, vector<8x8xf32>, vector<8x8xf32> -> vector<8x8xf32>
    %c0_38 = arith.constant 0 : index
    %c8 = arith.constant 8 : index
    %89 = vector.load %arg22[%c0_38, %c8] : memref<8x32xf32, #tpu.memory_space<vmem>>, vector<8x8xf32>
    tpu.vector_store %arg22[%c0_38, %c8], %88 {strides = array<i32>} : memref<8x32xf32, #tpu.memory_space<vmem>>, vector<8x8xf32>,
    %90 = vector.extract_strided_slice %51 {offsets = [0, 16], sizes = [8, 8], strides = [1, 1]} : vector<8x32xf32> to vector<8x8xf32>
    %91 = vector.extract_strided_slice %52 {offsets = [0, 16], sizes = [8, 8], strides = [1, 1]} : vector<8x32xf32> to vector<8x8xf32>
    %cst_39 = arith.constant dense<0.000000e+00> : vector<8x8xf32>
    %92 = tpu.matmul %90, %91, %cst_39 {dimension_numbers = #tpu.dot_dimension_numbers<[1], [1], [0], [0], [0, 0, 1, 0], [], []>} : vector<8x8xf32>, vector<8x8xf32>, vector<8x8xf32> -> vector<8x8xf32>
    %93 = vector.broadcast %41 : vector<1x8xf32> to vector<8x8xf32>
    %94 = arith.addf %92, %93 : vector<8x8xf32>
    %cst_40 = arith.constant dense<0xFF800000> : vector<8xf32>
    %95 = vector.multi_reduction <maximumf>, %94, %cst_40 [1] : vector<8x8xf32> to vector<8xf32>
    %96 = vector.shape_cast %95 : vector<8xf32> to vector<8x1xf32>
    %97 = vector.broadcast %96 : vector<8x1xf32> to vector<8x8xf32>
    %98 = arith.subf %94, %97 : vector<8x8xf32>
    %99 = math.exp %98 : vector<8x8xf32>
    %cst_41 = arith.constant dense<0.000000e+00> : vector<8xf32>
    %100 = vector.multi_reduction <add>, %99, %cst_41 [1] : vector<8x8xf32> to vector<8xf32>
    %101 = vector.shape_cast %100 : vector<8xf32> to vector<8x1xf32>
    %102 = tpu.reciprocal %101 {approx = true} : vector<8x1xf32> -> vector<8x1xf32>
    %103 = vector.broadcast %102 : vector<8x1xf32> to vector<8x8xf32>
    %104 = arith.mulf %99, %103 : vector<8x8xf32>
    %105 = vector.extract_strided_slice %53 {offsets = [0, 16], sizes = [8, 8], strides = [1, 1]} : vector<8x32xf32> to vector<8x8xf32>
    %cst_42 = arith.constant dense<0.000000e+00> : vector<8x8xf32>
    %106 = tpu.matmul %104, %105, %cst_42 {dimension_numbers = #tpu.dot_dimension_numbers<[1], [0], [0], [1], [0, 0, 1, 1], [], []>} : vector<8x8xf32>, vector<8x8xf32>, vector<8x8xf32> -> vector<8x8xf32>
    %c0_43 = arith.constant 0 : index
    %c16 = arith.constant 16 : index
    %107 = vector.load %arg22[%c0_43, %c16] : memref<8x32xf32, #tpu.memory_space<vmem>>, vector<8x8xf32>
    tpu.vector_store %arg22[%c0_43, %c16], %106 {strides = array<i32>} : memref<8x32xf32, #tpu.memory_space<vmem>>, vector<8x8xf32>,
    %108 = vector.extract_strided_slice %51 {offsets = [0, 24], sizes = [8, 8], strides = [1, 1]} : vector<8x32xf32> to vector<8x8xf32>
    %109 = vector.extract_strided_slice %52 {offsets = [0, 24], sizes = [8, 8], strides = [1, 1]} : vector<8x32xf32> to vector<8x8xf32>
    %cst_44 = arith.constant dense<0.000000e+00> : vector<8x8xf32>
    %110 = tpu.matmul %108, %109, %cst_44 {dimension_numbers = #tpu.dot_dimension_numbers<[1], [1], [0], [0], [0, 0, 1, 0], [], []>} : vector<8x8xf32>, vector<8x8xf32>, vector<8x8xf32> -> vector<8x8xf32>
    %111 = vector.broadcast %41 : vector<1x8xf32> to vector<8x8xf32>
    %112 = arith.addf %110, %111 : vector<8x8xf32>
    %cst_45 = arith.constant dense<0xFF800000> : vector<8xf32>
    %113 = vector.multi_reduction <maximumf>, %112, %cst_45 [1] : vector<8x8xf32> to vector<8xf32>
    %114 = vector.shape_cast %113 : vector<8xf32> to vector<8x1xf32>
    %115 = vector.broadcast %114 : vector<8x1xf32> to vector<8x8xf32>
    %116 = arith.subf %112, %115 : vector<8x8xf32>
    %117 = math.exp %116 : vector<8x8xf32>
    %cst_46 = arith.constant dense<0.000000e+00> : vector<8xf32>
    %118 = vector.multi_reduction <add>, %117, %cst_46 [1] : vector<8x8xf32> to vector<8xf32>
    %119 = vector.shape_cast %118 : vector<8xf32> to vector<8x1xf32>
    %120 = tpu.reciprocal %119 {approx = true} : vector<8x1xf32> -> vector<8x1xf32>
    %121 = vector.broadcast %120 : vector<8x1xf32> to vector<8x8xf32>
    %122 = arith.mulf %117, %121 : vector<8x8xf32>
    %123 = vector.extract_strided_slice %53 {offsets = [0, 24], sizes = [8, 8], strides = [1, 1]} : vector<8x32xf32> to vector<8x8xf32>
    %cst_47 = arith.constant dense<0.000000e+00> : vector<8x8xf32>
    %124 = tpu.matmul %122, %123, %cst_47 {dimension_numbers = #tpu.dot_dimension_numbers<[1], [0], [0], [1], [0, 0, 1, 1], [], []>} : vector<8x8xf32>, vector<8x8xf32>, vector<8x8xf32> -> vector<8x8xf32>
    %c0_48 = arith.constant 0 : index
    %c24 = arith.constant 24 : index
    %125 = vector.load %arg22[%c0_48, %c24] : memref<8x32xf32, #tpu.memory_space<vmem>>, vector<8x8xf32>
    tpu.vector_store %arg22[%c0_48, %c24], %124 {strides = array<i32>} : memref<8x32xf32, #tpu.memory_space<vmem>>, vector<8x8xf32>,
    %c0_49 = arith.constant 0 : index
    %c0_50 = arith.constant 0 : index
    %126 = vector.load %arg22[%c0_49, %c0_50] : memref<8x32xf32, #tpu.memory_space<vmem>>, vector<8x32xf32>
    %c0_51 = arith.constant 0 : index
    %c0_52 = arith.constant 0 : index
    %c0_53 = arith.constant 0 : index
    %127 = vector.load %arg9[%c0_51, %c0_52, %c0_53] : memref<2x32x32xf32, #tpu.memory_space<vmem>>, vector<1x32x32xf32>
    %128 = vector.shape_cast %127 : vector<1x32x32xf32> to vector<32x32xf32>
    %cst_54 = arith.constant dense<0.000000e+00> : vector<8x32xf32>
    %129 = tpu.matmul %126, %128, %cst_54 {dimension_numbers = #tpu.dot_dimension_numbers<[1], [0], [0], [1], [0, 0, 1, 1], [], []>} : vector<8x32xf32>, vector<32x32xf32>, vector<8x32xf32> -> vector<8x32xf32>
    %c0_55 = arith.constant 0 : index
    %c0_56 = arith.constant 0 : index
    %c0_57 = arith.constant 0 : index
    %130 = vector.load %arg10[%c0_55, %c0_56, %c0_57] : memref<2x1x32xf32, #tpu.memory_space<vmem>>, vector<1x1x32xf32>
    %131 = vector.shape_cast %130 : vector<1x1x32xf32> to vector<1x32xf32>
    %132 = vector.broadcast %131 : vector<1x32xf32> to vector<8x32xf32>
    %133 = arith.addf %129, %132 : vector<8x32xf32>
    %134 = arith.addf %133, %34 : vector<8x32xf32>
    %c0_58 = arith.constant 0 : index
    %c0_59 = arith.constant 0 : index
    %c0_60 = arith.constant 0 : index
    %135 = vector.load %arg11[%c0_58, %c0_59, %c0_60] : memref<2x1x32xf32, #tpu.memory_space<vmem>>, vector<1x1x32xf32>
    %136 = vector.shape_cast %135 : vector<1x1x32xf32> to vector<1x32xf32>
    %c0_61 = arith.constant 0 : index
    %c0_62 = arith.constant 0 : index
    %c0_63 = arith.constant 0 : index
    %137 = vector.load %arg12[%c0_61, %c0_62, %c0_63] : memref<2x1x32xf32, #tpu.memory_space<vmem>>, vector<1x1x32xf32>
    %138 = vector.shape_cast %137 : vector<1x1x32xf32> to vector<1x32xf32>
    %cst_64 = arith.constant dense<0.000000e+00> : vector<8xf32>
    %139 = vector.multi_reduction <add>, %134, %cst_64 [1] : vector<8x32xf32> to vector<8xf32>
    %140 = vector.shape_cast %139 : vector<8xf32> to vector<8x1xf32>
    %141 = arith.mulf %134, %134 : vector<8x32xf32>
    %cst_65 = arith.constant dense<0.000000e+00> : vector<8xf32>
    %142 = vector.multi_reduction <add>, %141, %cst_65 [1] : vector<8x32xf32> to vector<8xf32>
    %143 = vector.shape_cast %142 : vector<8xf32> to vector<8x1xf32>
    %cst_66 = arith.constant 3.125000e-02 : f32
    %144 = vector.broadcast %cst_66 : f32 to vector<8x1xf32>
    %145 = arith.mulf %140, %144 : vector<8x1xf32>
    %cst_67 = arith.constant 3.125000e-02 : f32
    %146 = vector.broadcast %cst_67 : f32 to vector<8x1xf32>
    %147 = arith.mulf %143, %146 : vector<8x1xf32>
    %148 = arith.mulf %145, %145 : vector<8x1xf32>
    %149 = arith.subf %147, %148 : vector<8x1xf32>
    %150 = vector.broadcast %145 : vector<8x1xf32> to vector<8x32xf32>
    %151 = arith.subf %134, %150 : vector<8x32xf32>
    %cst_68 = arith.constant 9.99999996E-13 : f32
    %152 = vector.broadcast %cst_68 : f32 to vector<8x1xf32>
    %153 = arith.addf %149, %152 : vector<8x1xf32>
    %154 = math.rsqrt %153 : vector<8x1xf32>
    %155 = vector.broadcast %154 : vector<8x1xf32> to vector<8x32xf32>
    %156 = arith.mulf %151, %155 : vector<8x32xf32>
    %157 = vector.broadcast %136 : vector<1x32xf32> to vector<8x32xf32>
    %158 = arith.mulf %156, %157 : vector<8x32xf32>
    %159 = vector.broadcast %138 : vector<1x32xf32> to vector<8x32xf32>
    %160 = arith.addf %158, %159 : vector<8x32xf32>
    %c0_69 = arith.constant 0 : index
    %c0_70 = arith.constant 0 : index
    %c0_71 = arith.constant 0 : index
    %161 = vector.load %arg13[%c0_69, %c0_70, %c0_71] : memref<2x32x64xf32, #tpu.memory_space<vmem>>, vector<1x32x64xf32>
    %162 = vector.shape_cast %161 : vector<1x32x64xf32> to vector<32x64xf32>
    %cst_72 = arith.constant dense<0.000000e+00> : vector<8x64xf32>
    %163 = tpu.matmul %160, %162, %cst_72 {dimension_numbers = #tpu.dot_dimension_numbers<[1], [0], [0], [1], [0, 0, 1, 1], [], []>} : vector<8x32xf32>, vector<32x64xf32>, vector<8x64xf32> -> vector<8x64xf32>
    %c0_73 = arith.constant 0 : index
    %c0_74 = arith.constant 0 : index
    %c0_75 = arith.constant 0 : index
    %164 = vector.load %arg14[%c0_73, %c0_74, %c0_75] : memref<2x1x64xf32, #tpu.memory_space<vmem>>, vector<1x1x64xf32>
    %165 = vector.shape_cast %164 : vector<1x1x64xf32> to vector<1x64xf32>
    %166 = vector.broadcast %165 : vector<1x64xf32> to vector<8x64xf32>
    %167 = arith.addf %163, %166 : vector<8x64xf32>
    %cst_76 = arith.constant 5.000000e-01 : f32
    %168 = vector.broadcast %cst_76 : f32 to vector<8x64xf32>
    %169 = arith.mulf %168, %167 : vector<8x64xf32>
    %cst_77 = arith.constant 4.471500e-02 : f32
    %170 = vector.broadcast %cst_77 : f32 to vector<8x64xf32>
    %171 = arith.mulf %170, %167 : vector<8x64xf32>
    %172 = arith.mulf %171, %167 : vector<8x64xf32>
    %173 = arith.mulf %172, %167 : vector<8x64xf32>
    %174 = arith.addf %167, %173 : vector<8x64xf32>
    %cst_78 = arith.constant 0.797884583 : f32
    %175 = vector.broadcast %cst_78 : f32 to vector<8x64xf32>
    %176 = arith.mulf %175, %174 : vector<8x64xf32>
    %177 = math.tanh %176 : vector<8x64xf32>
    %cst_79 = arith.constant 1.000000e+00 : f32
    %178 = vector.broadcast %cst_79 : f32 to vector<8x64xf32>
    %179 = arith.addf %178, %177 : vector<8x64xf32>
    %180 = arith.mulf %169, %179 : vector<8x64xf32>
    %c0_80 = arith.constant 0 : index
    %c0_81 = arith.constant 0 : index
    %c0_82 = arith.constant 0 : index
    %181 = vector.load %arg15[%c0_80, %c0_81, %c0_82] : memref<2x64x32xf32, #tpu.memory_space<vmem>>, vector<1x64x32xf32>
    %182 = vector.shape_cast %181 : vector<1x64x32xf32> to vector<64x32xf32>
    %cst_83 = arith.constant dense<0.000000e+00> : vector<8x32xf32>
    %183 = tpu.matmul %180, %182, %cst_83 {dimension_numbers = #tpu.dot_dimension_numbers<[1], [0], [0], [1], [0, 0, 1, 1], [], []>} : vector<8x64xf32>, vector<64x32xf32>, vector<8x32xf32> -> vector<8x32xf32>
    %c0_84 = arith.constant 0 : index
    %c0_85 = arith.constant 0 : index
    %c0_86 = arith.constant 0 : index
    %184 = vector.load %arg16[%c0_84, %c0_85, %c0_86] : memref<2x1x32xf32, #tpu.memory_space<vmem>>, vector<1x1x32xf32>
    %185 = vector.shape_cast %184 : vector<1x1x32xf32> to vector<1x32xf32>
    %186 = vector.broadcast %185 : vector<1x32xf32> to vector<8x32xf32>
    %187 = arith.addf %183, %186 : vector<8x32xf32>
    %188 = arith.addf %187, %160 : vector<8x32xf32>
    %c0_87 = arith.constant 0 : index
    %c0_88 = arith.constant 0 : index
    %c0_89 = arith.constant 0 : index
    %189 = vector.load %arg17[%c0_87, %c0_88, %c0_89] : memref<2x1x32xf32, #tpu.memory_space<vmem>>, vector<1x1x32xf32>
    %190 = vector.shape_cast %189 : vector<1x1x32xf32> to vector<1x32xf32>
    %c0_90 = arith.constant 0 : index
    %c0_91 = arith.constant 0 : index
    %c0_92 = arith.constant 0 : index
    %191 = vector.load %arg18[%c0_90, %c0_91, %c0_92] : memref<2x1x32xf32, #tpu.memory_space<vmem>>, vector<1x1x32xf32>
    %192 = vector.shape_cast %191 : vector<1x1x32xf32> to vector<1x32xf32>
    %cst_93 = arith.constant dense<0.000000e+00> : vector<8xf32>
    %193 = vector.multi_reduction <add>, %188, %cst_93 [1] : vector<8x32xf32> to vector<8xf32>
    %194 = vector.shape_cast %193 : vector<8xf32> to vector<8x1xf32>
    %195 = arith.mulf %188, %188 : vector<8x32xf32>
    %cst_94 = arith.constant dense<0.000000e+00> : vector<8xf32>
    %196 = vector.multi_reduction <add>, %195, %cst_94 [1] : vector<8x32xf32> to vector<8xf32>
    %197 = vector.shape_cast %196 : vector<8xf32> to vector<8x1xf32>
    %cst_95 = arith.constant 3.125000e-02 : f32
    %198 = vector.broadcast %cst_95 : f32 to vector<8x1xf32>
    %199 = arith.mulf %194, %198 : vector<8x1xf32>
    %cst_96 = arith.constant 3.125000e-02 : f32
    %200 = vector.broadcast %cst_96 : f32 to vector<8x1xf32>
    %201 = arith.mulf %197, %200 : vector<8x1xf32>
    %202 = arith.mulf %199, %199 : vector<8x1xf32>
    %203 = arith.subf %201, %202 : vector<8x1xf32>
    %204 = vector.broadcast %199 : vector<8x1xf32> to vector<8x32xf32>
    %205 = arith.subf %188, %204 : vector<8x32xf32>
    %cst_97 = arith.constant 9.99999996E-13 : f32
    %206 = vector.broadcast %cst_97 : f32 to vector<8x1xf32>
    %207 = arith.addf %203, %206 : vector<8x1xf32>
    %208 = math.rsqrt %207 : vector<8x1xf32>
    %209 = vector.broadcast %208 : vector<8x1xf32> to vector<8x32xf32>
    %210 = arith.mulf %205, %209 : vector<8x32xf32>
    %211 = vector.broadcast %190 : vector<1x32xf32> to vector<8x32xf32>
    %212 = arith.mulf %210, %211 : vector<8x32xf32>
    %213 = vector.broadcast %192 : vector<1x32xf32> to vector<8x32xf32>
    %214 = arith.addf %212, %213 : vector<8x32xf32>
    %c1 = arith.constant 1 : index
    %c0_98 = arith.constant 0 : index
    %c0_99 = arith.constant 0 : index
    %215 = vector.load %arg7[%c1, %c0_98, %c0_99] : memref<2x32x96xf32, #tpu.memory_space<vmem>>, vector<1x32x96xf32>
    %216 = vector.shape_cast %215 : vector<1x32x96xf32> to vector<32x96xf32>
    %cst_100 = arith.constant dense<0.000000e+00> : vector<8x96xf32>
    %217 = tpu.matmul %214, %216, %cst_100 {dimension_numbers = #tpu.dot_dimension_numbers<[1], [0], [0], [1], [0, 0, 1, 1], [], []>} : vector<8x32xf32>, vector<32x96xf32>, vector<8x96xf32> -> vector<8x96xf32>
    %c1_101 = arith.constant 1 : index
    %c0_102 = arith.constant 0 : index
    %c0_103 = arith.constant 0 : index
    %218 = vector.load %arg8[%c1_101, %c0_102, %c0_103] : memref<2x1x96xf32, #tpu.memory_space<vmem>>, vector<1x1x96xf32>
    %219 = vector.shape_cast %218 : vector<1x1x96xf32> to vector<1x96xf32>
    %220 = vector.broadcast %219 : vector<1x96xf32> to vector<8x96xf32>
    %221 = arith.addf %217, %220 : vector<8x96xf32>
    %222 = vector.extract_strided_slice %221 {offsets = [0, 0], sizes = [8, 32], strides = [1, 1]} : vector<8x96xf32> to vector<8x32xf32>
    %cst_104 = arith.constant 0.353553385 : f32
    %223 = vector.broadcast %cst_104 : f32 to vector<8x32xf32>
    %224 = arith.mulf %222, %223 : vector<8x32xf32>
    %225 = vector.extract_strided_slice %221 {offsets = [0, 32], sizes = [8, 32], strides = [1, 1]} : vector<8x96xf32> to vector<8x32xf32>
    %226 = vector.extract_strided_slice %221 {offsets = [0, 64], sizes = [8, 32], strides = [1, 1]} : vector<8x96xf32> to vector<8x32xf32>
    %227 = vector.extract_strided_slice %224 {offsets = [0, 0], sizes = [8, 8], strides = [1, 1]} : vector<8x32xf32> to vector<8x8xf32>
    %228 = vector.extract_strided_slice %225 {offsets = [0, 0], sizes = [8, 8], strides = [1, 1]} : vector<8x32xf32> to vector<8x8xf32>
    %cst_105 = arith.constant dense<0.000000e+00> : vector<8x8xf32>
    %229 = tpu.matmul %227, %228, %cst_105 {dimension_numbers = #tpu.dot_dimension_numbers<[1], [1], [0], [0], [0, 0, 1, 0], [], []>} : vector<8x8xf32>, vector<8x8xf32>, vector<8x8xf32> -> vector<8x8xf32>
    %230 = vector.broadcast %41 : vector<1x8xf32> to vector<8x8xf32>
    %231 = arith.addf %229, %230 : vector<8x8xf32>
    %cst_106 = arith.constant dense<0xFF800000> : vector<8xf32>
    %232 = vector.multi_reduction <maximumf>, %231, %cst_106 [1] : vector<8x8xf32> to vector<8xf32>
    %233 = vector.shape_cast %232 : vector<8xf32> to vector<8x1xf32>
    %234 = vector.broadcast %233 : vector<8x1xf32> to vector<8x8xf32>
    %235 = arith.subf %231, %234 : vector<8x8xf32>
    %236 = math.exp %235 : vector<8x8xf32>
    %cst_107 = arith.constant dense<0.000000e+00> : vector<8xf32>
    %237 = vector.multi_reduction <add>, %236, %cst_107 [1] : vector<8x8xf32> to vector<8xf32>
    %238 = vector.shape_cast %237 : vector<8xf32> to vector<8x1xf32>
    %239 = tpu.reciprocal %238 {approx = true} : vector<8x1xf32> -> vector<8x1xf32>
    %240 = vector.broadcast %239 : vector<8x1xf32> to vector<8x8xf32>
    %241 = arith.mulf %236, %240 : vector<8x8xf32>
    %242 = vector.extract_strided_slice %226 {offsets = [0, 0], sizes = [8, 8], strides = [1, 1]} : vector<8x32xf32> to vector<8x8xf32>
    %cst_108 = arith.constant dense<0.000000e+00> : vector<8x8xf32>
    %243 = tpu.matmul %241, %242, %cst_108 {dimension_numbers = #tpu.dot_dimension_numbers<[1], [0], [0], [1], [0, 0, 1, 1], [], []>} : vector<8x8xf32>, vector<8x8xf32>, vector<8x8xf32> -> vector<8x8xf32>
    %c0_109 = arith.constant 0 : index
    %c0_110 = arith.constant 0 : index
    %244 = vector.load %arg22[%c0_109, %c0_110] : memref<8x32xf32, #tpu.memory_space<vmem>>, vector<8x8xf32>
    tpu.vector_store %arg22[%c0_109, %c0_110], %243 {strides = array<i32>} : memref<8x32xf32, #tpu.memory_space<vmem>>, vector<8x8xf32>,
    %245 = vector.extract_strided_slice %224 {offsets = [0, 8], sizes = [8, 8], strides = [1, 1]} : vector<8x32xf32> to vector<8x8xf32>
    %246 = vector.extract_strided_slice %225 {offsets = [0, 8], sizes = [8, 8], strides = [1, 1]} : vector<8x32xf32> to vector<8x8xf32>
    %cst_111 = arith.constant dense<0.000000e+00> : vector<8x8xf32>
    %247 = tpu.matmul %245, %246, %cst_111 {dimension_numbers = #tpu.dot_dimension_numbers<[1], [1], [0], [0], [0, 0, 1, 0], [], []>} : vector<8x8xf32>, vector<8x8xf32>, vector<8x8xf32> -> vector<8x8xf32>
    %248 = vector.broadcast %41 : vector<1x8xf32> to vector<8x8xf32>
    %249 = arith.addf %247, %248 : vector<8x8xf32>
    %cst_112 = arith.constant dense<0xFF800000> : vector<8xf32>
    %250 = vector.multi_reduction <maximumf>, %249, %cst_112 [1] : vector<8x8xf32> to vector<8xf32>
    %251 = vector.shape_cast %250 : vector<8xf32> to vector<8x1xf32>
    %252 = vector.broadcast %251 : vector<8x1xf32> to vector<8x8xf32>
    %253 = arith.subf %249, %252 : vector<8x8xf32>
    %254 = math.exp %253 : vector<8x8xf32>
    %cst_113 = arith.constant dense<0.000000e+00> : vector<8xf32>
    %255 = vector.multi_reduction <add>, %254, %cst_113 [1] : vector<8x8xf32> to vector<8xf32>
    %256 = vector.shape_cast %255 : vector<8xf32> to vector<8x1xf32>
    %257 = tpu.reciprocal %256 {approx = true} : vector<8x1xf32> -> vector<8x1xf32>
    %258 = vector.broadcast %257 : vector<8x1xf32> to vector<8x8xf32>
    %259 = arith.mulf %254, %258 : vector<8x8xf32>
    %260 = vector.extract_strided_slice %226 {offsets = [0, 8], sizes = [8, 8], strides = [1, 1]} : vector<8x32xf32> to vector<8x8xf32>
    %cst_114 = arith.constant dense<0.000000e+00> : vector<8x8xf32>
    %261 = tpu.matmul %259, %260, %cst_114 {dimension_numbers = #tpu.dot_dimension_numbers<[1], [0], [0], [1], [0, 0, 1, 1], [], []>} : vector<8x8xf32>, vector<8x8xf32>, vector<8x8xf32> -> vector<8x8xf32>
    %c0_115 = arith.constant 0 : index
    %c8_116 = arith.constant 8 : index
    %262 = vector.load %arg22[%c0_115, %c8_116] : memref<8x32xf32, #tpu.memory_space<vmem>>, vector<8x8xf32>
    tpu.vector_store %arg22[%c0_115, %c8_116], %261 {strides = array<i32>} : memref<8x32xf32, #tpu.memory_space<vmem>>, vector<8x8xf32>,
    %263 = vector.extract_strided_slice %224 {offsets = [0, 16], sizes = [8, 8], strides = [1, 1]} : vector<8x32xf32> to vector<8x8xf32>
    %264 = vector.extract_strided_slice %225 {offsets = [0, 16], sizes = [8, 8], strides = [1, 1]} : vector<8x32xf32> to vector<8x8xf32>
    %cst_117 = arith.constant dense<0.000000e+00> : vector<8x8xf32>
    %265 = tpu.matmul %263, %264, %cst_117 {dimension_numbers = #tpu.dot_dimension_numbers<[1], [1], [0], [0], [0, 0, 1, 0], [], []>} : vector<8x8xf32>, vector<8x8xf32>, vector<8x8xf32> -> vector<8x8xf32>
    %266 = vector.broadcast %41 : vector<1x8xf32> to vector<8x8xf32>
    %267 = arith.addf %265, %266 : vector<8x8xf32>
    %cst_118 = arith.constant dense<0xFF800000> : vector<8xf32>
    %268 = vector.multi_reduction <maximumf>, %267, %cst_118 [1] : vector<8x8xf32> to vector<8xf32>
    %269 = vector.shape_cast %268 : vector<8xf32> to vector<8x1xf32>
    %270 = vector.broadcast %269 : vector<8x1xf32> to vector<8x8xf32>
    %271 = arith.subf %267, %270 : vector<8x8xf32>
    %272 = math.exp %271 : vector<8x8xf32>
    %cst_119 = arith.constant dense<0.000000e+00> : vector<8xf32>
    %273 = vector.multi_reduction <add>, %272, %cst_119 [1] : vector<8x8xf32> to vector<8xf32>
    %274 = vector.shape_cast %273 : vector<8xf32> to vector<8x1xf32>
    %275 = tpu.reciprocal %274 {approx = true} : vector<8x1xf32> -> vector<8x1xf32>
    %276 = vector.broadcast %275 : vector<8x1xf32> to vector<8x8xf32>
    %277 = arith.mulf %272, %276 : vector<8x8xf32>
    %278 = vector.extract_strided_slice %226 {offsets = [0, 16], sizes = [8, 8], strides = [1, 1]} : vector<8x32xf32> to vector<8x8xf32>
    %cst_120 = arith.constant dense<0.000000e+00> : vector<8x8xf32>
    %279 = tpu.matmul %277, %278, %cst_120 {dimension_numbers = #tpu.dot_dimension_numbers<[1], [0], [0], [1], [0, 0, 1, 1], [], []>} : vector<8x8xf32>, vector<8x8xf32>, vector<8x8xf32> -> vector<8x8xf32>
    %c0_121 = arith.constant 0 : index
    %c16_122 = arith.constant 16 : index
    %280 = vector.load %arg22[%c0_121, %c16_122] : memref<8x32xf32, #tpu.memory_space<vmem>>, vector<8x8xf32>
    tpu.vector_store %arg22[%c0_121, %c16_122], %279 {strides = array<i32>} : memref<8x32xf32, #tpu.memory_space<vmem>>, vector<8x8xf32>,
    %281 = vector.extract_strided_slice %224 {offsets = [0, 24], sizes = [8, 8], strides = [1, 1]} : vector<8x32xf32> to vector<8x8xf32>
    %282 = vector.extract_strided_slice %225 {offsets = [0, 24], sizes = [8, 8], strides = [1, 1]} : vector<8x32xf32> to vector<8x8xf32>
    %cst_123 = arith.constant dense<0.000000e+00> : vector<8x8xf32>
    %283 = tpu.matmul %281, %282, %cst_123 {dimension_numbers = #tpu.dot_dimension_numbers<[1], [1], [0], [0], [0, 0, 1, 0], [], []>} : vector<8x8xf32>, vector<8x8xf32>, vector<8x8xf32> -> vector<8x8xf32>
    %284 = vector.broadcast %41 : vector<1x8xf32> to vector<8x8xf32>
    %285 = arith.addf %283, %284 : vector<8x8xf32>
    %cst_124 = arith.constant dense<0xFF800000> : vector<8xf32>
    %286 = vector.multi_reduction <maximumf>, %285, %cst_124 [1] : vector<8x8xf32> to vector<8xf32>
    %287 = vector.shape_cast %286 : vector<8xf32> to vector<8x1xf32>
    %288 = vector.broadcast %287 : vector<8x1xf32> to vector<8x8xf32>
    %289 = arith.subf %285, %288 : vector<8x8xf32>
    %290 = math.exp %289 : vector<8x8xf32>
    %cst_125 = arith.constant dense<0.000000e+00> : vector<8xf32>
    %291 = vector.multi_reduction <add>, %290, %cst_125 [1] : vector<8x8xf32> to vector<8xf32>
    %292 = vector.shape_cast %291 : vector<8xf32> to vector<8x1xf32>
    %293 = tpu.reciprocal %292 {approx = true} : vector<8x1xf32> -> vector<8x1xf32>
    %294 = vector.broadcast %293 : vector<8x1xf32> to vector<8x8xf32>
    %295 = arith.mulf %290, %294 : vector<8x8xf32>
    %296 = vector.extract_strided_slice %226 {offsets = [0, 24], sizes = [8, 8], strides = [1, 1]} : vector<8x32xf32> to vector<8x8xf32>
    %cst_126 = arith.constant dense<0.000000e+00> : vector<8x8xf32>
    %297 = tpu.matmul %295, %296, %cst_126 {dimension_numbers = #tpu.dot_dimension_numbers<[1], [0], [0], [1], [0, 0, 1, 1], [], []>} : vector<8x8xf32>, vector<8x8xf32>, vector<8x8xf32> -> vector<8x8xf32>
    %c0_127 = arith.constant 0 : index
    %c24_128 = arith.constant 24 : index
    %298 = vector.load %arg22[%c0_127, %c24_128] : memref<8x32xf32, #tpu.memory_space<vmem>>, vector<8x8xf32>
    tpu.vector_store %arg22[%c0_127, %c24_128], %297 {strides = array<i32>} : memref<8x32xf32, #tpu.memory_space<vmem>>, vector<8x8xf32>,
    %c0_129 = arith.constant 0 : index
    %c0_130 = arith.constant 0 : index
    %299 = vector.load %arg22[%c0_129, %c0_130] : memref<8x32xf32, #tpu.memory_space<vmem>>, vector<8x32xf32>
    %c1_131 = arith.constant 1 : index
    %c0_132 = arith.constant 0 : index
    %c0_133 = arith.constant 0 : index
    %300 = vector.load %arg9[%c1_131, %c0_132, %c0_133] : memref<2x32x32xf32, #tpu.memory_space<vmem>>, vector<1x32x32xf32>
    %301 = vector.shape_cast %300 : vector<1x32x32xf32> to vector<32x32xf32>
    %cst_134 = arith.constant dense<0.000000e+00> : vector<8x32xf32>
    %302 = tpu.matmul %299, %301, %cst_134 {dimension_numbers = #tpu.dot_dimension_numbers<[1], [0], [0], [1], [0, 0, 1, 1], [], []>} : vector<8x32xf32>, vector<32x32xf32>, vector<8x32xf32> -> vector<8x32xf32>
    %c1_135 = arith.constant 1 : index
    %c0_136 = arith.constant 0 : index
    %c0_137 = arith.constant 0 : index
    %303 = vector.load %arg10[%c1_135, %c0_136, %c0_137] : memref<2x1x32xf32, #tpu.memory_space<vmem>>, vector<1x1x32xf32>
    %304 = vector.shape_cast %303 : vector<1x1x32xf32> to vector<1x32xf32>
    %305 = vector.broadcast %304 : vector<1x32xf32> to vector<8x32xf32>
    %306 = arith.addf %302, %305 : vector<8x32xf32>
    %307 = arith.addf %306, %214 : vector<8x32xf32>
    %c1_138 = arith.constant 1 : index
    %c0_139 = arith.constant 0 : index
    %c0_140 = arith.constant 0 : index
    %308 = vector.load %arg11[%c1_138, %c0_139, %c0_140] : memref<2x1x32xf32, #tpu.memory_space<vmem>>, vector<1x1x32xf32>
    %309 = vector.shape_cast %308 : vector<1x1x32xf32> to vector<1x32xf32>
    %c1_141 = arith.constant 1 : index
    %c0_142 = arith.constant 0 : index
    %c0_143 = arith.constant 0 : index
    %310 = vector.load %arg12[%c1_141, %c0_142, %c0_143] : memref<2x1x32xf32, #tpu.memory_space<vmem>>, vector<1x1x32xf32>
    %311 = vector.shape_cast %310 : vector<1x1x32xf32> to vector<1x32xf32>
    %cst_144 = arith.constant dense<0.000000e+00> : vector<8xf32>
    %312 = vector.multi_reduction <add>, %307, %cst_144 [1] : vector<8x32xf32> to vector<8xf32>
    %313 = vector.shape_cast %312 : vector<8xf32> to vector<8x1xf32>
    %314 = arith.mulf %307, %307 : vector<8x32xf32>
    %cst_145 = arith.constant dense<0.000000e+00> : vector<8xf32>
    %315 = vector.multi_reduction <add>, %314, %cst_145 [1] : vector<8x32xf32> to vector<8xf32>
    %316 = vector.shape_cast %315 : vector<8xf32> to vector<8x1xf32>
    %cst_146 = arith.constant 3.125000e-02 : f32
    %317 = vector.broadcast %cst_146 : f32 to vector<8x1xf32>
    %318 = arith.mulf %313, %317 : vector<8x1xf32>
    %cst_147 = arith.constant 3.125000e-02 : f32
    %319 = vector.broadcast %cst_147 : f32 to vector<8x1xf32>
    %320 = arith.mulf %316, %319 : vector<8x1xf32>
    %321 = arith.mulf %318, %318 : vector<8x1xf32>
    %322 = arith.subf %320, %321 : vector<8x1xf32>
    %323 = vector.broadcast %318 : vector<8x1xf32> to vector<8x32xf32>
    %324 = arith.subf %307, %323 : vector<8x32xf32>
    %cst_148 = arith.constant 9.99999996E-13 : f32
    %325 = vector.broadcast %cst_148 : f32 to vector<8x1xf32>
    %326 = arith.addf %322, %325 : vector<8x1xf32>
    %327 = math.rsqrt %326 : vector<8x1xf32>
    %328 = vector.broadcast %327 : vector<8x1xf32> to vector<8x32xf32>
    %329 = arith.mulf %324, %328 : vector<8x32xf32>
    %330 = vector.broadcast %309 : vector<1x32xf32> to vector<8x32xf32>
    %331 = arith.mulf %329, %330 : vector<8x32xf32>
    %332 = vector.broadcast %311 : vector<1x32xf32> to vector<8x32xf32>
    %333 = arith.addf %331, %332 : vector<8x32xf32>
    %c1_149 = arith.constant 1 : index
    %c0_150 = arith.constant 0 : index
    %c0_151 = arith.constant 0 : index
    %334 = vector.load %arg13[%c1_149, %c0_150, %c0_151] : memref<2x32x64xf32, #tpu.memory_space<vmem>>, vector<1x32x64xf32>
    %335 = vector.shape_cast %334 : vector<1x32x64xf32> to vector<32x64xf32>
    %cst_152 = arith.constant dense<0.000000e+00> : vector<8x64xf32>
    %336 = tpu.matmul %333, %335, %cst_152 {dimension_numbers = #tpu.dot_dimension_numbers<[1], [0], [0], [1], [0, 0, 1, 1], [], []>} : vector<8x32xf32>, vector<32x64xf32>, vector<8x64xf32> -> vector<8x64xf32>
    %c1_153 = arith.constant 1 : index
    %c0_154 = arith.constant 0 : index
    %c0_155 = arith.constant 0 : index
    %337 = vector.load %arg14[%c1_153, %c0_154, %c0_155] : memref<2x1x64xf32, #tpu.memory_space<vmem>>, vector<1x1x64xf32>
    %338 = vector.shape_cast %337 : vector<1x1x64xf32> to vector<1x64xf32>
    %339 = vector.broadcast %338 : vector<1x64xf32> to vector<8x64xf32>
    %340 = arith.addf %336, %339 : vector<8x64xf32>
    %cst_156 = arith.constant 5.000000e-01 : f32
    %341 = vector.broadcast %cst_156 : f32 to vector<8x64xf32>
    %342 = arith.mulf %341, %340 : vector<8x64xf32>
    %cst_157 = arith.constant 4.471500e-02 : f32
    %343 = vector.broadcast %cst_157 : f32 to vector<8x64xf32>
    %344 = arith.mulf %343, %340 : vector<8x64xf32>
    %345 = arith.mulf %344, %340 : vector<8x64xf32>
    %346 = arith.mulf %345, %340 : vector<8x64xf32>
    %347 = arith.addf %340, %346 : vector<8x64xf32>
    %cst_158 = arith.constant 0.797884583 : f32
    %348 = vector.broadcast %cst_158 : f32 to vector<8x64xf32>
    %349 = arith.mulf %348, %347 : vector<8x64xf32>
    %350 = math.tanh %349 : vector<8x64xf32>
    %cst_159 = arith.constant 1.000000e+00 : f32
    %351 = vector.broadcast %cst_159 : f32 to vector<8x64xf32>
    %352 = arith.addf %351, %350 : vector<8x64xf32>
    %353 = arith.mulf %342, %352 : vector<8x64xf32>
    %c1_160 = arith.constant 1 : index
    %c0_161 = arith.constant 0 : index
    %c0_162 = arith.constant 0 : index
    %354 = vector.load %arg15[%c1_160, %c0_161, %c0_162] : memref<2x64x32xf32, #tpu.memory_space<vmem>>, vector<1x64x32xf32>
    %355 = vector.shape_cast %354 : vector<1x64x32xf32> to vector<64x32xf32>
    %cst_163 = arith.constant dense<0.000000e+00> : vector<8x32xf32>
    %356 = tpu.matmul %353, %355, %cst_163 {dimension_numbers = #tpu.dot_dimension_numbers<[1], [0], [0], [1], [0, 0, 1, 1], [], []>} : vector<8x64xf32>, vector<64x32xf32>, vector<8x32xf32> -> vector<8x32xf32>
    %c1_164 = arith.constant 1 : index
    %c0_165 = arith.constant 0 : index
    %c0_166 = arith.constant 0 : index
    %357 = vector.load %arg16[%c1_164, %c0_165, %c0_166] : memref<2x1x32xf32, #tpu.memory_space<vmem>>, vector<1x1x32xf32>
    %358 = vector.shape_cast %357 : vector<1x1x32xf32> to vector<1x32xf32>
    %359 = vector.broadcast %358 : vector<1x32xf32> to vector<8x32xf32>
    %360 = arith.addf %356, %359 : vector<8x32xf32>
    %361 = arith.addf %360, %333 : vector<8x32xf32>
    %c1_167 = arith.constant 1 : index
    %c0_168 = arith.constant 0 : index
    %c0_169 = arith.constant 0 : index
    %362 = vector.load %arg17[%c1_167, %c0_168, %c0_169] : memref<2x1x32xf32, #tpu.memory_space<vmem>>, vector<1x1x32xf32>
    %363 = vector.shape_cast %362 : vector<1x1x32xf32> to vector<1x32xf32>
    %c1_170 = arith.constant 1 : index
    %c0_171 = arith.constant 0 : index
    %c0_172 = arith.constant 0 : index
    %364 = vector.load %arg18[%c1_170, %c0_171, %c0_172] : memref<2x1x32xf32, #tpu.memory_space<vmem>>, vector<1x1x32xf32>
    %365 = vector.shape_cast %364 : vector<1x1x32xf32> to vector<1x32xf32>
    %cst_173 = arith.constant dense<0.000000e+00> : vector<8xf32>
    %366 = vector.multi_reduction <add>, %361, %cst_173 [1] : vector<8x32xf32> to vector<8xf32>
    %367 = vector.shape_cast %366 : vector<8xf32> to vector<8x1xf32>
    %368 = arith.mulf %361, %361 : vector<8x32xf32>
    %cst_174 = arith.constant dense<0.000000e+00> : vector<8xf32>
    %369 = vector.multi_reduction <add>, %368, %cst_174 [1] : vector<8x32xf32> to vector<8xf32>
    %370 = vector.shape_cast %369 : vector<8xf32> to vector<8x1xf32>
    %cst_175 = arith.constant 3.125000e-02 : f32
    %371 = vector.broadcast %cst_175 : f32 to vector<8x1xf32>
    %372 = arith.mulf %367, %371 : vector<8x1xf32>
    %cst_176 = arith.constant 3.125000e-02 : f32
    %373 = vector.broadcast %cst_176 : f32 to vector<8x1xf32>
    %374 = arith.mulf %370, %373 : vector<8x1xf32>
    %375 = arith.mulf %372, %372 : vector<8x1xf32>
    %376 = arith.subf %374, %375 : vector<8x1xf32>
    %377 = vector.broadcast %372 : vector<8x1xf32> to vector<8x32xf32>
    %378 = arith.subf %361, %377 : vector<8x32xf32>
    %cst_177 = arith.constant 9.99999996E-13 : f32
    %379 = vector.broadcast %cst_177 : f32 to vector<8x1xf32>
    %380 = arith.addf %376, %379 : vector<8x1xf32>
    %381 = math.rsqrt %380 : vector<8x1xf32>
    %382 = vector.broadcast %381 : vector<8x1xf32> to vector<8x32xf32>
    %383 = arith.mulf %378, %382 : vector<8x32xf32>
    %384 = vector.broadcast %363 : vector<1x32xf32> to vector<8x32xf32>
    %385 = arith.mulf %383, %384 : vector<8x32xf32>
    %386 = vector.broadcast %365 : vector<1x32xf32> to vector<8x32xf32>
    %387 = arith.addf %385, %386 : vector<8x32xf32>
    %c0_178 = arith.constant 0 : index
    %c0_179 = arith.constant 0 : index
    %388 = vector.load %arg19[%c0_178, %c0_179] : memref<32x128xf32, #tpu.memory_space<vmem>>, vector<32x128xf32>
    %cst_180 = arith.constant dense<0.000000e+00> : vector<8x128xf32>
    %389 = tpu.matmul %387, %388, %cst_180 {dimension_numbers = #tpu.dot_dimension_numbers<[1], [0], [0], [1], [0, 0, 1, 1], [], []>} : vector<8x32xf32>, vector<32x128xf32>, vector<8x128xf32> -> vector<8x128xf32>
    %c0_181 = arith.constant 0 : index
    %c0_182 = arith.constant 0 : index
    %390 = vector.load %arg20[%c0_181, %c0_182] : memref<1x128xf32, #tpu.memory_space<vmem>>, vector<1x128xf32>
    %391 = vector.broadcast %390 : vector<1x128xf32> to vector<8x128xf32>
    %392 = arith.addf %389, %391 : vector<8x128xf32>
    %c0_183 = arith.constant 0 : index
    %c0_184 = arith.constant 0 : index
    %c0_185 = arith.constant 0 : index
    %393 = vector.load %arg21[%c0_183, %c0_184, %c0_185] : memref<1x8x128xf32, #tpu.memory_space<vmem>>, vector<1x8x128xf32>
    %394 = vector.shape_cast %393 : vector<1x8x128xf32> to vector<8x128xf32>
    %395 = vector.shape_cast %392 : vector<8x128xf32> to vector<1x8x128xf32>
    tpu.vector_store %arg21[%c0_183, %c0_184, %c0_185], %395 {strides = array<i32>} : memref<1x8x128xf32, #tpu.memory_space<vmem>>, vector<1x8x128xf32>,
    return
  }
  func.func @transform_0(%arg0: i32) -> (i32, i32, i32) {
    %c0_i32 = arith.constant 0 : i32
    %c0_i32_0 = arith.constant 0 : i32
    %c0_i32_1 = arith.constant 0 : i32
    return %arg0, %c0_i32, %c0_i32_0 : i32, i32, i32
  }
  func.func @transform_1(%arg0: i32) -> (i32, i32, i32) {
    %c0_i32 = arith.constant 0 : i32
    %c0_i32_0 = arith.constant 0 : i32
    %c0_i32_1 = arith.constant 0 : i32
    return %arg0, %c0_i32, %c0_i32_0 : i32, i32, i32
  }
  func.func @transform_2(%arg0: i32) -> (i32, i32) {
    %c0_i32 = arith.constant 0 : i32
    %c0_i32_0 = arith.constant 0 : i32
    %c0_i32_1 = arith.constant 0 : i32
    return %c0_i32, %c0_i32_0 : i32, i32
  }
  func.func @transform_3(%arg0: i32) -> (i32, i32) {
    %c0_i32 = arith.constant 0 : i32
    %c0_i32_0 = arith.constant 0 : i32
    %c0_i32_1 = arith.constant 0 : i32
    return %c0_i32, %c0_i32_0 : i32, i32
  }
  func.func @transform_4(%arg0: i32) -> (i32, i32) {
    %c0_i32 = arith.constant 0 : i32
    %c0_i32_0 = arith.constant 0 : i32
    %c0_i32_1 = arith.constant 0 : i32
    return %c0_i32, %c0_i32_0 : i32, i32
  }
  func.func @transform_5(%arg0: i32) -> (i32, i32) {
    %c0_i32 = arith.constant 0 : i32
    %c0_i32_0 = arith.constant 0 : i32
    %c0_i32_1 = arith.constant 0 : i32
    return %c0_i32, %c0_i32_0 : i32, i32
  }
  func.func @transform_6(%arg0: i32) -> (i32, i32, i32) {
    %c0_i32 = arith.constant 0 : i32
    %c0_i32_0 = arith.constant 0 : i32
    %c0_i32_1 = arith.constant 0 : i32
    %c0_i32_2 = arith.constant 0 : i32
    return %c0_i32, %c0_i32_0, %c0_i32_1 : i32, i32, i32
  }
  func.func @transform_7(%arg0: i32) -> (i32, i32, i32) {
    %c0_i32 = arith.constant 0 : i32
    %c0_i32_0 = arith.constant 0 : i32
    %c0_i32_1 = arith.constant 0 : i32
    %c0_i32_2 = arith.constant 0 : i32
    return %c0_i32, %c0_i32_0, %c0_i32_1 : i32, i32, i32
  }
  func.func @transform_8(%arg0: i32) -> (i32, i32, i32) {
    %c0_i32 = arith.constant 0 : i32
    %c0_i32_0 = arith.constant 0 : i32
    %c0_i32_1 = arith.constant 0 : i32
    %c0_i32_2 = arith.constant 0 : i32
    return %c0_i32, %c0_i32_0, %c0_i32_1 : i32, i32, i32
  }
  func.func @transform_9(%arg0: i32) -> (i32, i32, i32) {
    %c0_i32 = arith.constant 0 : i32
    %c0_i32_0 = arith.constant 0 : i32
    %c0_i32_1 = arith.constant 0 : i32
    %c0_i32_2 = arith.constant 0 : i32
    return %c0_i32, %c0_i32_0, %c0_i32_1 : i32, i32, i32
  }
  func.func @transform_10(%arg0: i32) -> (i32, i32, i32) {
    %c0_i32 = arith.constant 0 : i32
    %c0_i32_0 = arith.constant 0 : i32
    %c0_i32_1 = arith.constant 0 : i32
    %c0_i32_2 = arith.constant 0 : i32
    return %c0_i32, %c0_i32_0, %c0_i32_1 : i32, i32, i32
  }
  func.func @transform_11(%arg0: i32) -> (i32, i32, i32) {
    %c0_i32 = arith.constant 0 : i32
    %c0_i32_0 = arith.constant 0 : i32
    %c0_i32_1 = arith.constant 0 : i32
    %c0_i32_2 = arith.constant 0 : i32
    return %c0_i32, %c0_i32_0, %c0_i32_1 : i32, i32, i32
  }
  func.func @transform_12(%arg0: i32) -> (i32, i32, i32) {
    %c0_i32 = arith.constant 0 : i32
    %c0_i32_0 = arith.constant 0 : i32
    %c0_i32_1 = arith.constant 0 : i32
    %c0_i32_2 = arith.constant 0 : i32
    return %c0_i32, %c0_i32_0, %c0_i32_1 : i32, i32, i32
  }
  func.func @transform_13(%arg0: i32) -> (i32, i32, i32) {
    %c0_i32 = arith.constant 0 : i32
    %c0_i32_0 = arith.constant 0 : i32
    %c0_i32_1 = arith.constant 0 : i32
    %c0_i32_2 = arith.constant 0 : i32
    return %c0_i32, %c0_i32_0, %c0_i32_1 : i32, i32, i32
  }
  func.func @transform_14(%arg0: i32) -> (i32, i32, i32) {
    %c0_i32 = arith.constant 0 : i32
    %c0_i32_0 = arith.constant 0 : i32
    %c0_i32_1 = arith.constant 0 : i32
    %c0_i32_2 = arith.constant 0 : i32
    return %c0_i32, %c0_i32_0, %c0_i32_1 : i32, i32, i32
  }
  func.func @transform_15(%arg0: i32) -> (i32, i32, i32) {
    %c0_i32 = arith.constant 0 : i32
    %c0_i32_0 = arith.constant 0 : i32
    %c0_i32_1 = arith.constant 0 : i32
    %c0_i32_2 = arith.constant 0 : i32
    return %c0_i32, %c0_i32_0, %c0_i32_1 : i32, i32, i32
  }
  func.func @transform_16(%arg0: i32) -> (i32, i32, i32) {
    %c0_i32 = arith.constant 0 : i32
    %c0_i32_0 = arith.constant 0 : i32
    %c0_i32_1 = arith.constant 0 : i32
    %c0_i32_2 = arith.constant 0 : i32
    return %c0_i32, %c0_i32_0, %c0_i32_1 : i32, i32, i32
  }
  func.func @transform_17(%arg0: i32) -> (i32, i32, i32) {
    %c0_i32 = arith.constant 0 : i32
    %c0_i32_0 = arith.constant 0 : i32
    %c0_i32_1 = arith.constant 0 : i32
    %c0_i32_2 = arith.constant 0 : i32
    return %c0_i32, %c0_i32_0, %c0_i32_1 : i32, i32, i32
  }
  func.func @transform_18(%arg0: i32) -> (i32, i32) {
    %c0_i32 = arith.constant 0 : i32
    %c0_i32_0 = arith.constant 0 : i32
    %c0_i32_1 = arith.constant 0 : i32
    return %c0_i32, %c0_i32_0 : i32, i32
  }
  func.func @transform_19(%arg0: i32) -> (i32, i32) {
    %c0_i32 = arith.constant 0 : i32
    %c0_i32_0 = arith.constant 0 : i32
    %c0_i32_1 = arith.constant 0 : i32
    return %c0_i32, %c0_i32_0 : i32, i32
  }
  func.func @transform_20(%arg0: i32) -> (i32, i32, i32) {
    %c0_i32 = arith.constant 0 : i32
    %c0_i32_0 = arith.constant 0 : i32
    %c0_i32_1 = arith.constant 0 : i32
    return %arg0, %c0_i32, %c0_i32_0 : i32, i32, i32
  }
}

</mosaic_0001>

<llo_original>
// kernel: sentiment_classifier_forward.1
$region0: #{sentiment_classifier_forward.1}
  #allocation0 [shape = 'u32[]', space=smem, size = 0x4, offset = 0x4, fixed_abs, tag = 'smem constant byte address 0x4 - core index']
  #allocation1 [shape = 'u32[144,128]{1,0:T(1,128)}', space=vmem, size = 0x12000, scoped, tag = 'internal scratch']
  #allocation2 [shape = 'f32[8,32]{1,0:T(8,128)}', space=vmem, size = 0x1000, scoped, tag = 'scratch operand']
  %s0 = inlined_call_operand.vmem [shape: s32[2,8,1], index: 0, kind: input, shape index: {}]
  %s1 = inlined_call_operand.vmem [shape: s32[2,1,8], index: 1, kind: input, shape index: {}]
  %s2 = inlined_call_operand.vmem [shape: f32[64,32], index: 2, kind: input, shape index: {}]
  %s3 = inlined_call_operand.vmem [shape: f32[16,32], index: 3, kind: input, shape index: {}]
  %s4 = inlined_call_operand.vmem [shape: f32[1,32], index: 4, kind: input, shape index: {}]
  %s5 = inlined_call_operand.hbm [shape: f32[1,32], index: 5, kind: input, shape index: {}]
  %s6 = inlined_call_operand.vmem [shape: f32[2,32,96], index: 6, kind: input, shape index: {}]
  %s7 = inlined_call_operand.vmem [shape: f32[2,1,96], index: 7, kind: input, shape index: {}]
  %s8 = inlined_call_operand.vmem [shape: f32[2,32,32], index: 8, kind: input, shape index: {}]
  %s9 = inlined_call_operand.vmem [shape: f32[2,1,32], index: 9, kind: input, shape index: {}]
  %s10 = inlined_call_operand.vmem [shape: f32[2,1,32], index: 10, kind: input, shape index: {}]
  %s11 = inlined_call_operand.vmem [shape: f32[2,1,32], index: 11, kind: input, shape index: {}]
  %s12 = inlined_call_operand.vmem [shape: f32[2,32,64], index: 12, kind: input, shape index: {}]
  %s13 = inlined_call_operand.vmem [shape: f32[2,1,64], index: 13, kind: input, shape index: {}]
  %s14 = inlined_call_operand.vmem [shape: f32[2,64,32], index: 14, kind: input, shape index: {}]
  %s15 = inlined_call_operand.vmem [shape: f32[2,1,32], index: 15, kind: input, shape index: {}]
  %s16 = inlined_call_operand.vmem [shape: f32[2,1,32], index: 16, kind: input, shape index: {}]
  %s17 = inlined_call_operand.hbm [shape: f32[2,1,32], index: 17, kind: input, shape index: {}]
  %s18 = inlined_call_operand.vmem [shape: f32[32,128], index: 18, kind: input, shape index: {}]
  %s19 = inlined_call_operand.hbm [shape: f32[1,128], index: 19, kind: input, shape index: {}]
  %s20 = inlined_call_operand.vmem [shape: f32[2,8,128], index: 20, kind: output, shape index: {}]
  %s21 = sld [smem:[#allocation0]]
  $region125: #{sentiment_classifier_forward.1} parent=0
    _
  %s23 = ssub.s32 1, %s21
  %s24 = scalar_select 0, %s23, %s21
  $region1: #{sentiment_classifier_forward.1} parent=0
    #allocation3 [shape = 'u8[512]{0}', space=vmem, size = 0x400, scoped, tag = 'input window, operand 5, single buffered']
    #allocation4 [shape = 's32[2]{0}', space=sflag, size = 0x8, scoped, tag = 'scoped memory for sentiment_classifier_forward.1']
    #allocation5 [shape = 'u8[1024]{0}', space=vmem, size = 0x400, scoped, tag = 'input window, operand 17, single buffered']
    #allocation6 [shape = 's32[1]{0}', space=sflag, size = 0x4, scoped, tag = 'scoped memory for sentiment_classifier_forward.1']
    #allocation7 [shape = 'u8[512]{0}', space=vmem, size = 0x400, scoped, tag = 'input window, operand 19, single buffered']
    %25 = vsyncpa [#allocation4], 0
    %26 = vsyncpa [#allocation6], 0
    loop: start=0, step=1, limit=4
    $region2: #{sentiment_classifier_forward.1} parent=1 // loop_pre_header
      _
    $region3: #{sentiment_classifier_forward.1} parent=1 // loop_header
      %s28 = sphi 0, %s32
      %p29 = scmp.ge.s32.totalorder %s28, 4
      %s38 = sphi 0, %s40
      %s41 = sphi 0, %s38
      %s42 = sphi 0, %s41
      %s58 = sphi 0, %s42
      %s64 = sphi 0, %s66
      %s67 = sphi 0, %s64
      %s68 = sphi 0, %s67
      %s84 = sphi 0, %s68
      %s88 = sphi 0, %s88
      %s90 = sphi 0, %s88
      %s91 = sphi 0, %s90
      %s105 = sphi 0, %s91
      %s109 = sphi 0, %s109
      %s111 = sphi 0, %s109
      %s112 = sphi 0, %s111
      %s126 = sphi 0, %s112
      %s130 = sphi 0, %s130
      %s132 = sphi 0, %s130
      %s133 = sphi 0, %s132
      %s147 = sphi 0, %s133
      %s151 = sphi 0, %s151
      %s153 = sphi 0, %s151
      %s154 = sphi 0, %s153
      %s168 = sphi 0, %s154
      %s172 = sphi 0, %s172
      %s174 = sphi 0, %s172
      %s175 = sphi 0, %s174
      %s189 = sphi 0, %s175
      %s193 = sphi 0, %s193
      %s195 = sphi 0, %s193
      %s196 = sphi 0, %s195
      %s210 = sphi 0, %s196
      %s214 = sphi 0, %s214
      %s216 = sphi 0, %s214
      %s217 = sphi 0, %s216
      %s231 = sphi 0, %s217
      %s235 = sphi 0, %s235
      %s237 = sphi 0, %s235
      %s238 = sphi 0, %s237
      %s252 = sphi 0, %s238
      %s256 = sphi 0, %s256
      %s258 = sphi 0, %s256
      %s259 = sphi 0, %s258
      %s273 = sphi 0, %s259
      %s277 = sphi 0, %s277
      %s279 = sphi 0, %s277
      %s280 = sphi 0, %s279
      %s294 = sphi 0, %s280
      %s298 = sphi 0, %s298
      %s300 = sphi 0, %s298
      %s301 = sphi 0, %s300
      %s315 = sphi 0, %s301
      %s319 = sphi 0, %s319
      %s321 = sphi 0, %s319
      %s322 = sphi 0, %s321
      %s336 = sphi 0, %s322
      %s340 = sphi 0, %s340
      %s342 = sphi 0, %s340
      %s343 = sphi 0, %s342
      %s357 = sphi 0, %s343
      %s361 = sphi 0, %s361
      %s363 = sphi 0, %s361
      %s364 = sphi 0, %s363
      %s378 = sphi 0, %s364
      %s382 = sphi 0, %s382
      %s384 = sphi 0, %s382
      %s385 = sphi 0, %s384
      %s399 = sphi 0, %s385
      %s403 = sphi 0, %s403
      %s405 = sphi 0, %s403
      %s406 = sphi 0, %s405
      %s420 = sphi 0, %s406
      %s424 = sphi 0, %s424
      %s426 = sphi 0, %s424
      %s427 = sphi 0, %s426
      %s441 = sphi 0, %s427
      %s445 = sphi 0, %s445
      %s447 = sphi 0, %s445
      %s448 = sphi 0, %s447
      %s462 = sphi 0, %s448
      %s468 = sphi 0, %s470
      %s471 = sphi 0, %s468
      %s472 = sphi 0, %s471
      %s488 = sphi 0, %s472
    $region4: #{sentiment_classifier_forward.1} parent=1 // loop_header_branch
      %31 = sbr.rel (%p29) target = $region8
    $region5: #{sentiment_classifier_forward.1} parent=1 // loop_body
      %s33 = ssub.s32 %s28, 1
      %s34 = ssub.s32 %s28, 2
      %s35 = sadd.s32 %s28, 1
      %s36 = ssub.s32 %s28, %s35
      %p37 = scmp.eq.s32.totalorder %s36, 0
      %s39 = sadd.s32 %s38, 1
      %s40 = scalar_select %p37, %s38, %s39
      %p43 = pneg %p37
      %p44 = scmp.eq.s32.totalorder %s28, 1
      %p45 = por %p43, %p44
      %p46 = scmp.ne.s32.totalorder %s38, %s41
      %p47 = scmp.eq.s32.totalorder %s28, 0
      %p48 = por %p46, %p47
      %p49 = scmp.ne.s32.totalorder %s38, %s41
      %p50 = scmp.eq.s32.totalorder %s33, 1
      %p51 = por %p49, %p50
      %p52 = scmp.ne.s32.totalorder %s41, %s42
      %p53 = scmp.eq.s32.totalorder %s33, 0
      %p54 = por %p52, %p53
      %p55 = scmp.ne.s32.totalorder %s41, %s42
      %p56 = scmp.eq.s32.totalorder %s34, 1
      %p57 = por %p55, %p56
      %p59 = scmp.ne.s32.totalorder %s42, %s58
      %p60 = scmp.eq.s32.totalorder %s34, 0
      %p61 = por %p59, %p60
      %s62 = ssub.s32 %s28, %s35
      %p63 = scmp.eq.s32.totalorder %s62, 0
      %s65 = sadd.s32 %s64, 1
      %s66 = scalar_select %p63, %s64, %s65
      %p69 = pneg %p63
      %p70 = scmp.eq.s32.totalorder %s28, 1
      %p71 = por %p69, %p70
      %p72 = scmp.ne.s32.totalorder %s64, %s67
      %p73 = scmp.eq.s32.totalorder %s28, 0
      %p74 = por %p72, %p73
      %p75 = scmp.ne.s32.totalorder %s64, %s67
      %p76 = scmp.eq.s32.totalorder %s33, 1
      %p77 = por %p75, %p76
      %p78 = scmp.ne.s32.totalorder %s67, %s68
      %p79 = scmp.eq.s32.totalorder %s33, 0
      %p80 = por %p78, %p79
      %p81 = scmp.ne.s32.totalorder %s67, %s68
      %p82 = scmp.eq.s32.totalorder %s34, 1
      %p83 = por %p81, %p82
      %p85 = scmp.ne.s32.totalorder %s68, %s84
      %p86 = scmp.eq.s32.totalorder %s34, 0
      %p87 = por %p85, %p86
      %s89 = sadd.s32 %s88, 1
      %p92 = scmp.eq.s32.totalorder %s28, 1
      %p93 = scmp.ne.s32.totalorder %s88, %s90
      %p94 = scmp.eq.s32.totalorder %s28, 0
      %p95 = por %p93, %p94
      %p96 = scmp.ne.s32.totalorder %s88, %s90
      %p97 = scmp.eq.s32.totalorder %s33, 1
      %p98 = por %p96, %p97
      %p99 = scmp.ne.s32.totalorder %s90, %s91
      %p100 = scmp.eq.s32.totalorder %s33, 0
      %p101 = por %p99, %p100
      %p102 = scmp.ne.s32.totalorder %s90, %s91
      %p103 = scmp.eq.s32.totalorder %s34, 1
      %p104 = por %p102, %p103
      %p106 = scmp.ne.s32.totalorder %s91, %s105
      %p107 = scmp.eq.s32.totalorder %s34, 0
      %p108 = por %p106, %p107
      %s110 = sadd.s32 %s109, 1
      %p113 = scmp.eq.s32.totalorder %s28, 1
      %p114 = scmp.ne.s32.totalorder %s109, %s111
      %p115 = scmp.eq.s32.totalorder %s28, 0
      %p116 = por %p114, %p115
      %p117 = scmp.ne.s32.totalorder %s109, %s111
      %p118 = scmp.eq.s32.totalorder %s33, 1
      %p119 = por %p117, %p118
      %p120 = scmp.ne.s32.totalorder %s111, %s112
      %p121 = scmp.eq.s32.totalorder %s33, 0
      %p122 = por %p120, %p121
      %p123 = scmp.ne.s32.totalorder %s111, %s112
      %p124 = scmp.eq.s32.totalorder %s34, 1
      %p125 = por %p123, %p124
      %p127 = scmp.ne.s32.totalorder %s112, %s126
      %p128 = scmp.eq.s32.totalorder %s34, 0
      %p129 = por %p127, %p128
      %s131 = sadd.s32 %s130, 1
      %p134 = scmp.eq.s32.totalorder %s28, 1
      %p135 = scmp.ne.s32.totalorder %s130, %s132
      %p136 = scmp.eq.s32.totalorder %s28, 0
      %p137 = por %p135, %p136
      %p138 = scmp.ne.s32.totalorder %s130, %s132
      %p139 = scmp.eq.s32.totalorder %s33, 1
      %p140 = por %p138, %p139
      %p141 = scmp.ne.s32.totalorder %s132, %s133
      %p142 = scmp.eq.s32.totalorder %s33, 0
      %p143 = por %p141, %p142
      %p144 = scmp.ne.s32.totalorder %s132, %s133
      %p145 = scmp.eq.s32.totalorder %s34, 1
      %p146 = por %p144, %p145
      %p148 = scmp.ne.s32.totalorder %s133, %s147
      %p149 = scmp.eq.s32.totalorder %s34, 0
      %p150 = por %p148, %p149
      %s152 = sadd.s32 %s151, 1
      %p155 = scmp.eq.s32.totalorder %s28, 1
      %p156 = scmp.ne.s32.totalorder %s151, %s153
      %p157 = scmp.eq.s32.totalorder %s28, 0
      %p158 = por %p156, %p157
      %p159 = scmp.ne.s32.totalorder %s151, %s153
      %p160 = scmp.eq.s32.totalorder %s33, 1
      %p161 = por %p159, %p160
      %p162 = scmp.ne.s32.totalorder %s153, %s154
      %p163 = scmp.eq.s32.totalorder %s33, 0
      %p164 = por %p162, %p163
      %p165 = scmp.ne.s32.totalorder %s153, %s154
      %p166 = scmp.eq.s32.totalorder %s34, 1
      %p167 = por %p165, %p166
      %p169 = scmp.ne.s32.totalorder %s154, %s168
      %p170 = scmp.eq.s32.totalorder %s34, 0
      %p171 = por %p169, %p170
      %s173 = sadd.s32 %s172, 1
      %p176 = scmp.eq.s32.totalorder %s28, 1
      %p177 = scmp.ne.s32.totalorder %s172, %s174
      %p178 = scmp.eq.s32.totalorder %s28, 0
      %p179 = por %p177, %p178
      %p180 = scmp.ne.s32.totalorder %s172, %s174
      %p181 = scmp.eq.s32.totalorder %s33, 1
      %p182 = por %p180, %p181
      %p183 = scmp.ne.s32.totalorder %s174, %s175
      %p184 = scmp.eq.s32.totalorder %s33, 0
      %p185 = por %p183, %p184
      %p186 = scmp.ne.s32.totalorder %s174, %s175
      %p187 = scmp.eq.s32.totalorder %s34, 1
      %p188 = por %p186, %p187
      %p190 = scmp.ne.s32.totalorder %s175, %s189
      %p191 = scmp.eq.s32.totalorder %s34, 0
      %p192 = por %p190, %p191
      %s194 = sadd.s32 %s193, 1
      %p197 = scmp.eq.s32.totalorder %s28, 1
      %p198 = scmp.ne.s32.totalorder %s193, %s195
      %p199 = scmp.eq.s32.totalorder %s28, 0
      %p200 = por %p198, %p199
      %p201 = scmp.ne.s32.totalorder %s193, %s195
      %p202 = scmp.eq.s32.totalorder %s33, 1
      %p203 = por %p201, %p202
      %p204 = scmp.ne.s32.totalorder %s195, %s196
      %p205 = scmp.eq.s32.totalorder %s33, 0
      %p206 = por %p204, %p205
      %p207 = scmp.ne.s32.totalorder %s195, %s196
      %p208 = scmp.eq.s32.totalorder %s34, 1
      %p209 = por %p207, %p208
      %p211 = scmp.ne.s32.totalorder %s196, %s210
      %p212 = scmp.eq.s32.totalorder %s34, 0
      %p213 = por %p211, %p212
      %s215 = sadd.s32 %s214, 1
      %p218 = scmp.eq.s32.totalorder %s28, 1
      %p219 = scmp.ne.s32.totalorder %s214, %s216
      %p220 = scmp.eq.s32.totalorder %s28, 0
      %p221 = por %p219, %p220
      %p222 = scmp.ne.s32.totalorder %s214, %s216
      %p223 = scmp.eq.s32.totalorder %s33, 1
      %p224 = por %p222, %p223
      %p225 = scmp.ne.s32.totalorder %s216, %s217
      %p226 = scmp.eq.s32.totalorder %s33, 0
      %p227 = por %p225, %p226
      %p228 = scmp.ne.s32.totalorder %s216, %s217
      %p229 = scmp.eq.s32.totalorder %s34, 1
      %p230 = por %p228, %p229
      %p232 = scmp.ne.s32.totalorder %s217, %s231
      %p233 = scmp.eq.s32.totalorder %s34, 0
      %p234 = por %p232, %p233
      %s236 = sadd.s32 %s235, 1
      %p239 = scmp.eq.s32.totalorder %s28, 1
      %p240 = scmp.ne.s32.totalorder %s235, %s237
      %p241 = scmp.eq.s32.totalorder %s28, 0
      %p242 = por %p240, %p241
      %p243 = scmp.ne.s32.totalorder %s235, %s237
      %p244 = scmp.eq.s32.totalorder %s33, 1
      %p245 = por %p243, %p244
      %p246 = scmp.ne.s32.totalorder %s237, %s238
      %p247 = scmp.eq.s32.totalorder %s33, 0
      %p248 = por %p246, %p247
      %p249 = scmp.ne.s32.totalorder %s237, %s238
      %p250 = scmp.eq.s32.totalorder %s34, 1
      %p251 = por %p249, %p250
      %p253 = scmp.ne.s32.totalorder %s238, %s252
      %p254 = scmp.eq.s32.totalorder %s34, 0
      %p255 = por %p253, %p254
      %s257 = sadd.s32 %s256, 1
      %p260 = scmp.eq.s32.totalorder %s28, 1
      %p261 = scmp.ne.s32.totalorder %s256, %s258
      %p262 = scmp.eq.s32.totalorder %s28, 0
      %p263 = por %p261, %p262
      %p264 = scmp.ne.s32.totalorder %s256, %s258
      %p265 = scmp.eq.s32.totalorder %s33, 1
      %p266 = por %p264, %p265
      %p267 = scmp.ne.s32.totalorder %s258, %s259
      %p268 = scmp.eq.s32.totalorder %s33, 0
      %p269 = por %p267, %p268
      %p270 = scmp.ne.s32.totalorder %s258, %s259
      %p271 = scmp.eq.s32.totalorder %s34, 1
      %p272 = por %p270, %p271
      %p274 = scmp.ne.s32.totalorder %s259, %s273
      %p275 = scmp.eq.s32.totalorder %s34, 0
      %p276 = por %p274, %p275
      %s278 = sadd.s32 %s277, 1
      %p281 = scmp.eq.s32.totalorder %s28, 1
      %p282 = scmp.ne.s32.totalorder %s277, %s279
      %p283 = scmp.eq.s32.totalorder %s28, 0
      %p284 = por %p282, %p283
      %p285 = scmp.ne.s32.totalorder %s277, %s279
      %p286 = scmp.eq.s32.totalorder %s33, 1
      %p287 = por %p285, %p286
      %p288 = scmp.ne.s32.totalorder %s279, %s280
      %p289 = scmp.eq.s32.totalorder %s33, 0
      %p290 = por %p288, %p289
      %p291 = scmp.ne.s32.totalorder %s279, %s280
      %p292 = scmp.eq.s32.totalorder %s34, 1
      %p293 = por %p291, %p292
      %p295 = scmp.ne.s32.totalorder %s280, %s294
      %p296 = scmp.eq.s32.totalorder %s34, 0
      %p297 = por %p295, %p296
      %s299 = sadd.s32 %s298, 1
      %p302 = scmp.eq.s32.totalorder %s28, 1
      %p303 = scmp.ne.s32.totalorder %s298, %s300
      %p304 = scmp.eq.s32.totalorder %s28, 0
      %p305 = por %p303, %p304
      %p306 = scmp.ne.s32.totalorder %s298, %s300
      %p307 = scmp.eq.s32.totalorder %s33, 1
      %p308 = por %p306, %p307
      %p309 = scmp.ne.s32.totalorder %s300, %s301
      %p310 = scmp.eq.s32.totalorder %s33, 0
      %p311 = por %p309, %p310
      %p312 = scmp.ne.s32.totalorder %s300, %s301
      %p313 = scmp.eq.s32.totalorder %s34, 1
      %p314 = por %p312, %p313
      %p316 = scmp.ne.s32.totalorder %s301, %s315
      %p317 = scmp.eq.s32.totalorder %s34, 0
      %p318 = por %p316, %p317
      %s320 = sadd.s32 %s319, 1
      %p323 = scmp.eq.s32.totalorder %s28, 1
      %p324 = scmp.ne.s32.totalorder %s319, %s321
      %p325 = scmp.eq.s32.totalorder %s28, 0
      %p326 = por %p324, %p325
      %p327 = scmp.ne.s32.totalorder %s319, %s321
      %p328 = scmp.eq.s32.totalorder %s33, 1
      %p329 = por %p327, %p328
      %p330 = scmp.ne.s32.totalorder %s321, %s322
      %p331 = scmp.eq.s32.totalorder %s33, 0
      %p332 = por %p330, %p331
      %p333 = scmp.ne.s32.totalorder %s321, %s322
      %p334 = scmp.eq.s32.totalorder %s34, 1
      %p335 = por %p333, %p334
      %p337 = scmp.ne.s32.totalorder %s322, %s336
      %p338 = scmp.eq.s32.totalorder %s34, 0
      %p339 = por %p337, %p338
      %s341 = sadd.s32 %s340, 1
      %p344 = scmp.eq.s32.totalorder %s28, 1
      %p345 = scmp.ne.s32.totalorder %s340, %s342
      %p346 = scmp.eq.s32.totalorder %s28, 0
      %p347 = por %p345, %p346
      %p348 = scmp.ne.s32.totalorder %s340, %s342
      %p349 = scmp.eq.s32.totalorder %s33, 1
      %p350 = por %p348, %p349
      %p351 = scmp.ne.s32.totalorder %s342, %s343
      %p352 = scmp.eq.s32.totalorder %s33, 0
      %p353 = por %p351, %p352
      %p354 = scmp.ne.s32.totalorder %s342, %s343
      %p355 = scmp.eq.s32.totalorder %s34, 1
      %p356 = por %p354, %p355
      %p358 = scmp.ne.s32.totalorder %s343, %s357
      %p359 = scmp.eq.s32.totalorder %s34, 0
      %p360 = por %p358, %p359
      %s362 = sadd.s32 %s361, 1
      %p365 = scmp.eq.s32.totalorder %s28, 1
      %p366 = scmp.ne.s32.totalorder %s361, %s363
      %p367 = scmp.eq.s32.totalorder %s28, 0
      %p368 = por %p366, %p367
      %p369 = scmp.ne.s32.totalorder %s361, %s363
      %p370 = scmp.eq.s32.totalorder %s33, 1
      %p371 = por %p369, %p370
      %p372 = scmp.ne.s32.totalorder %s363, %s364
      %p373 = scmp.eq.s32.totalorder %s33, 0
      %p374 = por %p372, %p373
      %p375 = scmp.ne.s32.totalorder %s363, %s364
      %p376 = scmp.eq.s32.totalorder %s34, 1
      %p377 = por %p375, %p376
      %p379 = scmp.ne.s32.totalorder %s364, %s378
      %p380 = scmp.eq.s32.totalorder %s34, 0
      %p381 = por %p379, %p380
      %s383 = sadd.s32 %s382, 1
      %p386 = scmp.eq.s32.totalorder %s28, 1
      %p387 = scmp.ne.s32.totalorder %s382, %s384
      %p388 = scmp.eq.s32.totalorder %s28, 0
      %p389 = por %p387, %p388
      %p390 = scmp.ne.s32.totalorder %s382, %s384
      %p391 = scmp.eq.s32.totalorder %s33, 1
      %p392 = por %p390, %p391
      %p393 = scmp.ne.s32.totalorder %s384, %s385
      %p394 = scmp.eq.s32.totalorder %s33, 0
      %p395 = por %p393, %p394
      %p396 = scmp.ne.s32.totalorder %s384, %s385
      %p397 = scmp.eq.s32.totalorder %s34, 1
      %p398 = por %p396, %p397
      %p400 = scmp.ne.s32.totalorder %s385, %s399
      %p401 = scmp.eq.s32.totalorder %s34, 0
      %p402 = por %p400, %p401
      %s404 = sadd.s32 %s403, 1
      %p407 = scmp.eq.s32.totalorder %s28, 1
      %p408 = scmp.ne.s32.totalorder %s403, %s405
      %p409 = scmp.eq.s32.totalorder %s28, 0
      %p410 = por %p408, %p409
      %p411 = scmp.ne.s32.totalorder %s403, %s405
      %p412 = scmp.eq.s32.totalorder %s33, 1
      %p413 = por %p411, %p412
      %p414 = scmp.ne.s32.totalorder %s405, %s406
      %p415 = scmp.eq.s32.totalorder %s33, 0
      %p416 = por %p414, %p415
      %p417 = scmp.ne.s32.totalorder %s405, %s406
      %p418 = scmp.eq.s32.totalorder %s34, 1
      %p419 = por %p417, %p418
      %p421 = scmp.ne.s32.totalorder %s406, %s420
      %p422 = scmp.eq.s32.totalorder %s34, 0
      %p423 = por %p421, %p422
      %s425 = sadd.s32 %s424, 1
      %p428 = scmp.eq.s32.totalorder %s28, 1
      %p429 = scmp.ne.s32.totalorder %s424, %s426
      %p430 = scmp.eq.s32.totalorder %s28, 0
      %p431 = por %p429, %p430
      %p432 = scmp.ne.s32.totalorder %s424, %s426
      %p433 = scmp.eq.s32.totalorder %s33, 1
      %p434 = por %p432, %p433
      %p435 = scmp.ne.s32.totalorder %s426, %s427
      %p436 = scmp.eq.s32.totalorder %s33, 0
      %p437 = por %p435, %p436
      %p438 = scmp.ne.s32.totalorder %s426, %s427
      %p439 = scmp.eq.s32.totalorder %s34, 1
      %p440 = por %p438, %p439
      %p442 = scmp.ne.s32.totalorder %s427, %s441
      %p443 = scmp.eq.s32.totalorder %s34, 0
      %p444 = por %p442, %p443
      %s446 = sadd.s32 %s445, 1
      %p449 = scmp.eq.s32.totalorder %s28, 1
      %p450 = scmp.ne.s32.totalorder %s445, %s447
      %p451 = scmp.eq.s32.totalorder %s28, 0
      %p452 = por %p450, %p451
      %p453 = scmp.ne.s32.totalorder %s445, %s447
      %p454 = scmp.eq.s32.totalorder %s33, 1
      %p455 = por %p453, %p454
      %p456 = scmp.ne.s32.totalorder %s447, %s448
      %p457 = scmp.eq.s32.totalorder %s33, 0
      %p458 = por %p456, %p457
      %p459 = scmp.ne.s32.totalorder %s447, %s448
      %p460 = scmp.eq.s32.totalorder %s34, 1
      %p461 = por %p459, %p460
      %p463 = scmp.ne.s32.totalorder %s448, %s462
      %p464 = scmp.eq.s32.totalorder %s34, 0
      %p465 = por %p463, %p464
      %s466 = ssub.s32 %s28, %s35
      %p467 = scmp.eq.s32.totalorder %s466, 0
      %s469 = sadd.s32 %s468, 1
      %s470 = scalar_select %p467, %s468, %s469
      %p473 = pneg %p467
      %p474 = scmp.eq.s32.totalorder %s28, 1
      %p475 = por %p473, %p474
      %p476 = scmp.ne.s32.totalorder %s468, %s471
      %p477 = scmp.eq.s32.totalorder %s28, 0
      %p478 = por %p476, %p477
      %p479 = scmp.ne.s32.totalorder %s468, %s471
      %p480 = scmp.eq.s32.totalorder %s33, 1
      %p481 = por %p479, %p480
      %p482 = scmp.ne.s32.totalorder %s471, %s472
      %p483 = scmp.eq.s32.totalorder %s33, 0
      %p484 = por %p482, %p483
      %p485 = scmp.ne.s32.totalorder %s471, %s472
      %p486 = scmp.eq.s32.totalorder %s34, 1
      %p487 = por %p485, %p486
      %p489 = scmp.ne.s32.totalorder %s472, %s488
      %p490 = scmp.eq.s32.totalorder %s34, 0
      %p491 = por %p489, %p490
      %p492 = scmp.le.s32.totalorder 1, %s28
      %p493 = scmp.lt.s32.totalorder %s28, 3
      %p494 = pnand %p492, %p493
      %p495 = pneg %p494
      // Predicated region
      $region9: #{sentiment_classifier_forward.1} parent=5 // pred_check
        _
      $region10: #{sentiment_classifier_forward.1} parent=5 // pred_check_branch
        %497 = sbr.rel (%p494) target = $region12
      $region11: #{sentiment_classifier_forward.1} parent=5 // pred_region
        %s498 = ssub.s32 %s28, 1
        // Predicated region
        $region13: #{sentiment_classifier_forward.1} parent=11 // pred_check
          %p499 = pneg %p101
        $region14: #{sentiment_classifier_forward.1} parent=11 // pred_check_branch
          %501 = sbr.rel (%p499) target = $region16
        $region15: #{sentiment_classifier_forward.1} parent=11 // pred_region
          _
        $region16: #{sentiment_classifier_forward.1} parent=11 // pred_fallthru
          _
        // Predicated region
        $region17: #{sentiment_classifier_forward.1} parent=11 // pred_check
          %p502 = pneg %p122
        $region18: #{sentiment_classifier_forward.1} parent=11 // pred_check_branch
          %504 = sbr.rel (%p502) target = $region20
        $region19: #{sentiment_classifier_forward.1} parent=11 // pred_region
          _
        $region20: #{sentiment_classifier_forward.1} parent=11 // pred_fallthru
          _
        // Predicated region
        $region21: #{sentiment_classifier_forward.1} parent=11 // pred_check
          %p505 = pneg %p143
        $region22: #{sentiment_classifier_forward.1} parent=11 // pred_check_branch
          %507 = sbr.rel (%p505) target = $region24
        $region23: #{sentiment_classifier_forward.1} parent=11 // pred_region
          _
        $region24: #{sentiment_classifier_forward.1} parent=11 // pred_fallthru
          _
        // Predicated region
        $region25: #{sentiment_classifier_forward.1} parent=11 // pred_check
          %p508 = pneg %p164
        $region26: #{sentiment_classifier_forward.1} parent=11 // pred_check_branch
          %510 = sbr.rel (%p508) target = $region28
        $region27: #{sentiment_classifier_forward.1} parent=11 // pred_region
          %s512 = ssub.s32 16, 16
          %513 = vsyncadd [#allocation4], %s512
          %s515 = sshll.u32 [#allocation3], 4
          %s516 = int_to_ptr.vmem [resolvable:$true] %s515
          %518 = dma.hbm_to_vmem [thread:$0]  %s5, 16, %s516, [#allocation4]
        $region28: #{sentiment_classifier_forward.1} parent=11 // pred_fallthru
          _
        // Predicated region
        $region29: #{sentiment_classifier_forward.1} parent=11 // pred_check
          %p519 = pneg %p185
        $region30: #{sentiment_classifier_forward.1} parent=11 // pred_check_branch
          %521 = sbr.rel (%p519) target = $region32
        $region31: #{sentiment_classifier_forward.1} parent=11 // pred_region
          _
        $region32: #{sentiment_classifier_forward.1} parent=11 // pred_fallthru
          _
        // Predicated region
        $region33: #{sentiment_classifier_forward.1} parent=11 // pred_check
          %p522 = pneg %p206
        $region34: #{sentiment_classifier_forward.1} parent=11 // pred_check_branch
          %524 = sbr.rel (%p522) target = $region36
        $region35: #{sentiment_classifier_forward.1} parent=11 // pred_region
          _
        $region36: #{sentiment_classifier_forward.1} parent=11 // pred_fallthru
          _
        // Predicated region
        $region37: #{sentiment_classifier_forward.1} parent=11 // pred_check
          %p525 = pneg %p227
        $region38: #{sentiment_classifier_forward.1} parent=11 // pred_check_branch
          %527 = sbr.rel (%p525) target = $region40
        $region39: #{sentiment_classifier_forward.1} parent=11 // pred_region
          _
        $region40: #{sentiment_classifier_forward.1} parent=11 // pred_fallthru
          _
        // Predicated region
        $region41: #{sentiment_classifier_forward.1} parent=11 // pred_check
          %p528 = pneg %p248
        $region42: #{sentiment_classifier_forward.1} parent=11 // pred_check_branch
          %530 = sbr.rel (%p528) target = $region44
        $region43: #{sentiment_classifier_forward.1} parent=11 // pred_region
          _
        $region44: #{sentiment_classifier_forward.1} parent=11 // pred_fallthru
          _
        // Predicated region
        $region45: #{sentiment_classifier_forward.1} parent=11 // pred_check
          %p531 = pneg %p269
        $region46: #{sentiment_classifier_forward.1} parent=11 // pred_check_branch
          %533 = sbr.rel (%p531) target = $region48
        $region47: #{sentiment_classifier_forward.1} parent=11 // pred_region
          _
        $region48: #{sentiment_classifier_forward.1} parent=11 // pred_fallthru
          _
        // Predicated region
        $region49: #{sentiment_classifier_forward.1} parent=11 // pred_check
          %p534 = pneg %p290
        $region50: #{sentiment_classifier_forward.1} parent=11 // pred_check_branch
          %536 = sbr.rel (%p534) target = $region52
        $region51: #{sentiment_classifier_forward.1} parent=11 // pred_region
          _
        $region52: #{sentiment_classifier_forward.1} parent=11 // pred_fallthru
          _
        // Predicated region
        $region53: #{sentiment_classifier_forward.1} parent=11 // pred_check
          %p537 = pneg %p311
        $region54: #{sentiment_classifier_forward.1} parent=11 // pred_check_branch
          %539 = sbr.rel (%p537) target = $region56
        $region55: #{sentiment_classifier_forward.1} parent=11 // pred_region
          _
        $region56: #{sentiment_classifier_forward.1} parent=11 // pred_fallthru
          _
        // Predicated region
        $region57: #{sentiment_classifier_forward.1} parent=11 // pred_check
          %p540 = pneg %p332
        $region58: #{sentiment_classifier_forward.1} parent=11 // pred_check_branch
          %542 = sbr.rel (%p540) target = $region60
        $region59: #{sentiment_classifier_forward.1} parent=11 // pred_region
          _
        $region60: #{sentiment_classifier_forward.1} parent=11 // pred_fallthru
          _
        // Predicated region
        $region61: #{sentiment_classifier_forward.1} parent=11 // pred_check
          %p543 = pneg %p353
        $region62: #{sentiment_classifier_forward.1} parent=11 // pred_check_branch
          %545 = sbr.rel (%p543) target = $region64
        $region63: #{sentiment_classifier_forward.1} parent=11 // pred_region
          _
        $region64: #{sentiment_classifier_forward.1} parent=11 // pred_fallthru
          _
        // Predicated region
        $region65: #{sentiment_classifier_forward.1} parent=11 // pred_check
          %p546 = pneg %p374
        $region66: #{sentiment_classifier_forward.1} parent=11 // pred_check_branch
          %548 = sbr.rel (%p546) target = $region68
        $region67: #{sentiment_classifier_forward.1} parent=11 // pred_region
          _
        $region68: #{sentiment_classifier_forward.1} parent=11 // pred_fallthru
          _
        // Predicated region
        $region69: #{sentiment_classifier_forward.1} parent=11 // pred_check
          %p549 = pneg %p395
        $region70: #{sentiment_classifier_forward.1} parent=11 // pred_check_branch
          %551 = sbr.rel (%p549) target = $region72
        $region71: #{sentiment_classifier_forward.1} parent=11 // pred_region
          _
        $region72: #{sentiment_classifier_forward.1} parent=11 // pred_fallthru
          _
        // Predicated region
        $region73: #{sentiment_classifier_forward.1} parent=11 // pred_check
          %p552 = pneg %p416
        $region74: #{sentiment_classifier_forward.1} parent=11 // pred_check_branch
          %554 = sbr.rel (%p552) target = $region76
        $region75: #{sentiment_classifier_forward.1} parent=11 // pred_region
          %s556 = ssub.s32 32, 32
          %557 = vsyncadd [#allocation6], %s556
          %s558 = sshll.u32 [#allocation5], 4
          %s559 = int_to_ptr.vmem [resolvable:$true] %s558
          %564 = dma.hbm_to_vmem [thread:$0]  %s17, 32, %s559, [#allocation6], 16, 16, 1
        $region76: #{sentiment_classifier_forward.1} parent=11 // pred_fallthru
          _
        // Predicated region
        $region77: #{sentiment_classifier_forward.1} parent=11 // pred_check
          %p565 = pneg %p437
        $region78: #{sentiment_classifier_forward.1} parent=11 // pred_check_branch
          %567 = sbr.rel (%p565) target = $region80
        $region79: #{sentiment_classifier_forward.1} parent=11 // pred_region
          _
        $region80: #{sentiment_classifier_forward.1} parent=11 // pred_fallthru
          _
        // Predicated region
        $region81: #{sentiment_classifier_forward.1} parent=11 // pred_check
          %p568 = pneg %p458
        $region82: #{sentiment_classifier_forward.1} parent=11 // pred_check_branch
          %570 = sbr.rel (%p568) target = $region84
        $region83: #{sentiment_classifier_forward.1} parent=11 // pred_region
          %s572 = ssub.s32 16, 16
          %573 = vsyncadd [#allocation6], %s572
          %s575 = sshll.u32 [#allocation7], 4
          %s576 = int_to_ptr.vmem [resolvable:$true] %s575
          %578 = dma.hbm_to_vmem [thread:$0]  %s19, 16, %s576, [#allocation6]
        $region84: #{sentiment_classifier_forward.1} parent=11 // pred_fallthru
          _
      $region12: #{sentiment_classifier_forward.1} parent=5 // pred_fallthru
        _
      %p579 = scmp.lt.s32.totalorder %s28, 2
      // Predicated region
      $region85: #{sentiment_classifier_forward.1} parent=5 // pred_check
        %p580 = pneg %p579
      $region86: #{sentiment_classifier_forward.1} parent=5 // pred_check_branch
        %582 = sbr.rel (%p580) target = $region88
      $region87: #{sentiment_classifier_forward.1} parent=5 // pred_region
        // Predicated region
        $region89: #{sentiment_classifier_forward.1} parent=87 // pred_check
          %p583 = pneg %p48
        $region90: #{sentiment_classifier_forward.1} parent=87 // pred_check_branch
          %585 = sbr.rel (%p583) target = $region92
        $region91: #{sentiment_classifier_forward.1} parent=87 // pred_region
          %p586 = scmp.lt.s32.totalorder %s28, 1
          %s587 = scalar_select %p586, %s28, 1
          %s588 = smul.addr %s587, 8
          %s589 = scalar_lea.vmem %s0, %s588
        $region92: #{sentiment_classifier_forward.1} parent=87 // pred_fallthru
          _
        // Predicated region
        $region93: #{sentiment_classifier_forward.1} parent=87 // pred_check
          %p590 = pneg %p74
        $region94: #{sentiment_classifier_forward.1} parent=87 // pred_check_branch
          %592 = sbr.rel (%p590) target = $region96
        $region95: #{sentiment_classifier_forward.1} parent=87 // pred_region
          %p593 = scmp.lt.s32.totalorder %s28, 1
          %s594 = scalar_select %p593, %s28, 1
          %s595 = scalar_lea.vmem %s1, %s594
        $region96: #{sentiment_classifier_forward.1} parent=87 // pred_fallthru
          _
      $region88: #{sentiment_classifier_forward.1} parent=5 // pred_fallthru
        _
      %p596 = scmp.le.s32.totalorder 1, %s28
      %p597 = scmp.lt.s32.totalorder %s28, 3
      %p598 = pnand %p596, %p597
      %p599 = pneg %p598
      // Predicated region
      $region97: #{sentiment_classifier_forward.1} parent=5 // pred_check
        _
      $region98: #{sentiment_classifier_forward.1} parent=5 // pred_check_branch
        %601 = sbr.rel (%p598) target = $region100
      $region99: #{sentiment_classifier_forward.1} parent=5 // pred_region
        %s602 = ssub.s32 %s28, 1
        // Predicated region
        $region101: #{sentiment_classifier_forward.1} parent=99 // pred_check
          %p603 = pneg %p164
        $region102: #{sentiment_classifier_forward.1} parent=99 // pred_check_branch
          %605 = sbr.rel (%p603) target = $region104
        $region103: #{sentiment_classifier_forward.1} parent=99 // pred_region
          %606 = dma.done [#allocation4], 16
        $region104: #{sentiment_classifier_forward.1} parent=99 // pred_fallthru
          _
        // Predicated region
        $region105: #{sentiment_classifier_forward.1} parent=99 // pred_check
          %p607 = pneg %p416
        $region106: #{sentiment_classifier_forward.1} parent=99 // pred_check_branch
          %609 = sbr.rel (%p607) target = $region108
        $region107: #{sentiment_classifier_forward.1} parent=99 // pred_region
          %610 = dma.done [#allocation6], 32
        $region108: #{sentiment_classifier_forward.1} parent=99 // pred_fallthru
          _
        // Predicated region
        $region109: #{sentiment_classifier_forward.1} parent=99 // pred_check
          %p611 = pneg %p458
        $region110: #{sentiment_classifier_forward.1} parent=99 // pred_check_branch
          %613 = sbr.rel (%p611) target = $region112
        $region111: #{sentiment_classifier_forward.1} parent=99 // pred_region
          %614 = dma.done [#allocation6], 16
        $region112: #{sentiment_classifier_forward.1} parent=99 // pred_fallthru
          _
        %p615 = scmp.lt.s32.totalorder %s33, 1
        %s616 = scalar_select %p615, %s33, 1
        %s617 = smul.addr %s616, 8
        %s618 = scalar_lea.vmem %s0, %s617
        %p619 = pneg %p54
        %p620 = pneg %p51
        %p621 = scmp.lt.s32.totalorder %s33, 1
        %s622 = scalar_select %p621, %s33, 1
        %s623 = scalar_lea.vmem %s1, %s622
        %p624 = pneg %p80
        %p625 = pneg %p77
        %p626 = pneg %p101
        %p627 = pneg %p98
        %p628 = pneg %p122
        %p629 = pneg %p119
        %p630 = pneg %p143
        %p631 = pneg %p140
        %p632 = pneg %p164
        %p633 = pneg %p161
        %p634 = pneg %p185
        %p635 = pneg %p182
        %p636 = pneg %p206
        %p637 = pneg %p203
        %p638 = pneg %p227
        %p639 = pneg %p224
        %p640 = pneg %p248
        %p641 = pneg %p245
        %p642 = pneg %p269
        %p643 = pneg %p266
        %p644 = pneg %p290
        %p645 = pneg %p287
        %p646 = pneg %p311
        %p647 = pneg %p308
        %p648 = pneg %p332
        %p649 = pneg %p329
        %p650 = pneg %p353
        %p651 = pneg %p350
        %p652 = pneg %p374
        %p653 = pneg %p371
        %p654 = pneg %p395
        %p655 = pneg %p392
        %p656 = pneg %p416
        %p657 = pneg %p413
        %p658 = pneg %p437
        %p659 = pneg %p434
        %p660 = pneg %p458
        %p661 = pneg %p455
        %p662 = pneg %p484
        %p663 = pneg %p481
        %p664 = scmp.lt.s32.totalorder %s33, 1
        %s665 = scalar_select %p664, %s33, 1
        %s666 = smul.addr %s665, 8
        %s667 = scalar_lea.vmem %s20, %s666
        %p668 = scmp.lt.s32.totalorder %s33, 1
        %s669 = scalar_select %p668, %s33, 1
        %s670 = smul.addr %s669, 8
        %s671 = scalar_lea.vmem %s0, %s670
        %p672 = scmp.lt.s32.totalorder %s33, 1
        %s673 = scalar_select %p672, %s33, 1
        %s674 = scalar_lea.vmem %s1, %s673
        %p675 = scmp.lt.s32.totalorder %s33, 1
        %s676 = scalar_select %p675, %s33, 1
        %s677 = smul.addr %s676, 8
        %s678 = scalar_lea.vmem %s20, %s677
        %v679 = vld [vmem:[%s671] sm:$0xff]
        %v680 = vlaneseq
        %v681 = vand.u32 %v680, 127
        %682 = vset.pattern.permute.xlu0 0
        %683 = vperm.xlu0 %682, %v679
        %v684 = vpop.permute.xlu0 %683
        %vm685 = vcmp.eq.s32.totalorder %v681, %v684
        %v686 = vsel %vm685, 1, 0
        %v687 = vcvt.s32.f32 %v686
        %v688 = vld [vmem:[%s2] sm:$0xff]
        %v689 = vld [vmem:[%s2 + $0x8] sm:$0xff]
        %v690 = vld [vmem:[%s2 + $0x10] sm:$0xff]
        %v691 = vld [vmem:[%s2 + $0x18] sm:$0xff]
        %v692 = vld [vmem:[%s2 + $0x20] sm:$0xff]
        %v693 = vld [vmem:[%s2 + $0x28] sm:$0xff]
        %v694 = vld [vmem:[%s2 + $0x30] sm:$0xff]
        %v695 = vld [vmem:[%s2 + $0x38] sm:$0xff]
        %v696 = vld [vmem:[%s3] sm:$0xff]
        %vm697 = vcmask 523264
        %v699 = vsel %vm697, %v687, 0
        %701 = vmatprep.subr.mxu0 0.0
        %702 = vmatpush1.msra.mxu0 %v688
        %703 = vmatprep.subr.mxu0 0.0
        %704 = vmatpush1.msra.mxu0 %v689
        %705 = vmatprep.subr.mxu0 0.0
        %706 = vmatpush1.msra.mxu0 %v690
        %707 = vmatprep.subr.mxu0 0.0
        %708 = vmatpush1.msra.mxu0 %v691
        %709 = vmatprep.subr.mxu0 0.0
        %710 = vmatpush1.msra.mxu0 %v692
        %711 = vmatprep.subr.mxu0 0.0
        %712 = vmatpush1.msra.mxu0 %v693
        %713 = vmatprep.subr.mxu0 0.0
        %714 = vmatpush1.msra.mxu0 %v694
        %715 = vmatprep.subr.mxu0 0.0
        %716 = vmatpush1.msra.mxu0 %v695
        %717 = vmatprep.subr.mxu0 0.0
        %718 = vmatpush1.msra.mxu0 0.0
        %719 = vmatprep.subr.mxu0 0.0
        %720 = vmatpush1.msra.mxu0 0.0
        %721 = vmatprep.subr.mxu0 0.0
        %722 = vmatpush1.msra.mxu0 0.0
        %723 = vmatprep.subr.mxu0 0.0
        %724 = vmatpush1.msra.mxu0 0.0
        %725 = vmatprep.subr.mxu0 0.0
        %726 = vmatpush1.msra.mxu0 0.0
        %727 = vmatprep.subr.mxu0 0.0
        %728 = vmatpush1.msra.mxu0 0.0
        %729 = vmatprep.subr.mxu0 0.0
        %730 = vmatpush1.msra.mxu0 0.0
        %731 = vmatprep.subr.mxu0 0.0
        %732 = vmatpush1.msra.mxu0 0.0
        %733 = vmatprep.subr.mxu0 0.0
        %734 = vmatpush1.msra.mxu0 0.0
        %735 = vmatprep.subr.mxu0 0.0
        %736 = vmatpush1.msra.mxu0 0.0
        %737 = vmatprep.subr.mxu0 0.0
        %738 = vmatpush1.msra.mxu0 0.0
        %739 = vmatprep.subr.mxu0 0.0
        %740 = vmatpush1.msra.mxu0 0.0
        %741 = vmatprep.subr.mxu0 0.0
        %742 = vmatpush1.msra.mxu0 0.0
        %743 = vmatprep.subr.mxu0 0.0
        %744 = vmatpush1.msra.mxu0 0.0
        %745 = vmatprep.subr.mxu0 0.0
        %746 = vmatpush1.msra.mxu0 0.0
        %747 = vmatprep.subr.mxu0 0.0
        %748 = vmatpush1.msra.mxu0 0.0
        %749 = vmatprep.subr.mxu0 0.0
        %750 = vmatpush1.msra.mxu0 0.0
        %751 = vmatprep.subr.mxu0 0.0
        %752 = vmatpush1.msra.mxu0 0.0
        %753 = vmatprep.subr.mxu0 0.0
        %754 = vmatpush1.msra.mxu0 0.0
        %755 = vmatprep.subr.mxu0 0.0
        %756 = vmatpush1.msra.mxu0 0.0
        %757 = vmatprep.subr.mxu0 0.0
        %758 = vmatpush1.msra.mxu0 0.0
        %759 = vmatprep.subr.mxu0 0.0
        %760 = vmatpush1.msra.mxu0 0.0
        %761 = vmatprep.subr.mxu0 0.0
        %762 = vmatpush1.msra.mxu0 0.0
        %763 = vmatprep.subr.mxu0 0.0
        %764 = vmatpush1.msra.mxu0 0.0
        %765 = vmatprep.mubr.f32.mxu0 0.0
        %766 = vmatmul.mubr.f32.gmra.mrb[0].mxu0 %v699
        %v767 = vpop.f32.mrb[0].mxu0
        %v768 = vadd.f32 %v696, %v767
        %v769 = vpop.f32.mrb[0].mxu0
        %770 = vdwg.mxu0
        %v771 = vld [vmem:[%s4] sm:$0x1]
        %v772 = vld [vmem:[#allocation3] sm:$0x1]
        %vm773 = vcmask 261120
        %v774 = vsel %vm773, %v768, 0.0
        %775 = vadd.xlane.f32.xlu0 %v774
        %v776 = vpop.xlane.xlu0 %775
        %v777 = vmul.f32 %v768, %v768
        %v778 = vsel %vm773, %v777, 0.0
        %779 = vadd.xlane.f32.xlu0 %v778
        %v780 = vpop.xlane.xlu0 %779
        %v781 = vmul.f32 %v776, 0.03125
        %v782 = vmul.f32 %v780, 0.03125
        %v783 = vmul.f32 %v781, %v781
        %v784 = vsub.f32 %v782, %v783
        %v785 = vsub.f32 %v768, %v781
        %v786 = vadd.f32 %v784, 1e-12
        %v787 = vrsqrt.pop %v786
        %v788 = vmul.f32 %v785, %v787
        %v790 = vlaneseq
        %v791 = vshrl.u32 %v790, 7
        %v792 = vsub.s32 0, %v791
        %v793 = vrot.slane %v771, %v792
        %v795 = vmul.f32 %v788, %v793
        %v797 = vlaneseq
        %v798 = vshrl.u32 %v797, 7
        %v799 = vsub.s32 0, %v798
        %v800 = vrot.slane %v772, %v799
        %v802 = vadd.f32 %v795, %v800
        %v803 = vld [vmem:[%s674] sm:$0x1]
        %vm804 = vcmp.eq.s32.totalorder %v803, 0
        %v805 = vsel %vm804, -1e+09, 0.0
        %v806 = vld [vmem:[%s6] sm:$0xff]
        %v807 = vld [vmem:[%s6 + $0x8] sm:$0xff]
        %v808 = vld [vmem:[%s6 + $0x10] sm:$0xff]
        %v809 = vld [vmem:[%s6 + $0x18] sm:$0xff]
        %v810 = vld [vmem:[%s7] sm:$0x1]
        %v812 = vlaneseq
        %v813 = vshrl.u32 %v812, 7
        %v814 = vsub.s32 0, %v813
        %v815 = vrot.slane %v810, %v814
        %v818 = vsel %vm773, %v802, 0
        %820 = vmatprep.subr.mxu0 0.0
        %821 = vmatpush1.msra.mxu0 %v806
        %822 = vmatprep.subr.mxu0 0.0
        %823 = vmatpush1.msra.mxu0 %v807
        %824 = vmatprep.subr.mxu0 0.0
        %825 = vmatpush1.msra.mxu0 %v808
        %826 = vmatprep.subr.mxu0 0.0
        %827 = vmatpush1.msra.mxu0 %v809
        %828 = vmatprep.subr.mxu0 0.0
        %829 = vmatpush1.msra.mxu0 0.0
        %830 = vmatprep.subr.mxu0 0.0
        %831 = vmatpush1.msra.mxu0 0.0
        %832 = vmatprep.subr.mxu0 0.0
        %833 = vmatpush1.msra.mxu0 0.0
        %834 = vmatprep.subr.mxu0 0.0
        %835 = vmatpush1.msra.mxu0 0.0
        %836 = vmatprep.subr.mxu0 0.0
        %837 = vmatpush1.msra.mxu0 0.0
        %838 = vmatprep.subr.mxu0 0.0
        %839 = vmatpush1.msra.mxu0 0.0
        %840 = vmatprep.subr.mxu0 0.0
        %841 = vmatpush1.msra.mxu0 0.0
        %842 = vmatprep.subr.mxu0 0.0
        %843 = vmatpush1.msra.mxu0 0.0
        %844 = vmatprep.subr.mxu0 0.0
        %845 = vmatpush1.msra.mxu0 0.0
        %846 = vmatprep.subr.mxu0 0.0
        %847 = vmatpush1.msra.mxu0 0.0
        %848 = vmatprep.subr.mxu0 0.0
        %849 = vmatpush1.msra.mxu0 0.0
        %850 = vmatprep.subr.mxu0 0.0
        %851 = vmatpush1.msra.mxu0 0.0
        %852 = vmatprep.subr.mxu0 0.0
        %853 = vmatpush1.msra.mxu0 0.0
        %854 = vmatprep.subr.mxu0 0.0
        %855 = vmatpush1.msra.mxu0 0.0
        %856 = vmatprep.subr.mxu0 0.0
        %857 = vmatpush1.msra.mxu0 0.0
        %858 = vmatprep.subr.mxu0 0.0
        %859 = vmatpush1.msra.mxu0 0.0
        %860 = vmatprep.subr.mxu0 0.0
        %861 = vmatpush1.msra.mxu0 0.0
        %862 = vmatprep.subr.mxu0 0.0
        %863 = vmatpush1.msra.mxu0 0.0
        %864 = vmatprep.subr.mxu0 0.0
        %865 = vmatpush1.msra.mxu0 0.0
        %866 = vmatprep.subr.mxu0 0.0
        %867 = vmatpush1.msra.mxu0 0.0
        %868 = vmatprep.subr.mxu0 0.0
        %869 = vmatpush1.msra.mxu0 0.0
        %870 = vmatprep.subr.mxu0 0.0
        %871 = vmatpush1.msra.mxu0 0.0
        %872 = vmatprep.subr.mxu0 0.0
        %873 = vmatpush1.msra.mxu0 0.0
        %874 = vmatprep.subr.mxu0 0.0
        %875 = vmatpush1.msra.mxu0 0.0
        %876 = vmatprep.subr.mxu0 0.0
        %877 = vmatpush1.msra.mxu0 0.0
        %878 = vmatprep.subr.mxu0 0.0
        %879 = vmatpush1.msra.mxu0 0.0
        %880 = vmatprep.subr.mxu0 0.0
        %881 = vmatpush1.msra.mxu0 0.0
        %882 = vmatprep.subr.mxu0 0.0
        %883 = vmatpush1.msra.mxu0 0.0
        %884 = vmatprep.mubr.f32.mxu0 0.0
        %885 = vmatmul.mubr.f32.gmra.mrb[0].mxu0 %v818
        %v886 = vpop.f32.mrb[0].mxu0
        %v887 = vadd.f32 %v815, %v886
        %v888 = vpop.f32.mrb[0].mxu0
        %889 = vdwg.mxu0
        %v890 = vmul.f32 %v887, 0.35355338
        %v892 = vlaneseq
        %v893 = vshrl.u32 %v892, 7
        %v894 = vsub.s32 0, %v893
        %v895 = vrot.slane %v805, %v894
        %898 = vrot.lane.b32.xlu0 %v887, 96
        %v899 = vpop.permute.xlu0 %898
        %vm900 = vcmask 64512
        %v902 = vsel %vm900, %v890, 0
        %v904 = vsel %vm900, %v899, 0
        %906 = vmatprep.subr.mxu0 0.0
        %907 = vmatpush1.xpose.msra.mxu0 %v904
        %908 = vmatprep.subr.mxu0 0.0
        %909 = vmatpush1.xpose.msra.mxu0 0.0
        %910 = vmatprep.subr.mxu0 0.0
        %911 = vmatpush1.xpose.msra.mxu0 0.0
        %912 = vmatprep.subr.mxu0 0.0
        %913 = vmatpush1.xpose.msra.mxu0 0.0
        %914 = vmatprep.subr.mxu0 0.0
        %915 = vmatpush1.xpose.msra.mxu0 0.0
        %916 = vmatprep.subr.mxu0 0.0
        %917 = vmatpush1.xpose.msra.mxu0 0.0
        %918 = vmatprep.subr.mxu0 0.0
        %919 = vmatpush1.xpose.msra.mxu0 0.0
        %920 = vmatprep.subr.mxu0 0.0
        %921 = vmatpush1.xpose.msra.mxu0 0.0
        %922 = vmatprep.subr.mxu0 0.0
        %923 = vmatpush1.xpose.msra.mxu0 0.0
        %924 = vmatprep.subr.mxu0 0.0
        %925 = vmatpush1.xpose.msra.mxu0 0.0
        %926 = vmatprep.subr.mxu0 0.0
        %927 = vmatpush1.xpose.msra.mxu0 0.0
        %928 = vmatprep.subr.mxu0 0.0
        %929 = vmatpush1.xpose.msra.mxu0 0.0
        %930 = vmatprep.subr.mxu0 0.0
        %931 = vmatpush1.xpose.msra.mxu0 0.0
        %932 = vmatprep.subr.mxu0 0.0
        %933 = vmatpush1.xpose.msra.mxu0 0.0
        %934 = vmatprep.subr.mxu0 0.0
        %935 = vmatpush1.xpose.msra.mxu0 0.0
        %936 = vmatprep.subr.mxu0 0.0
        %937 = vmatpush1.xpose.msra.mxu0 0.0
        %938 = vmatprep.subr.mxu0 0.0
        %939 = vmatpush1.xpose.msra.mxu0 0.0
        %940 = vmatprep.subr.mxu0 0.0
        %941 = vmatpush1.xpose.msra.mxu0 0.0
        %942 = vmatprep.subr.mxu0 0.0
        %943 = vmatpush1.xpose.msra.mxu0 0.0
        %944 = vmatprep.subr.mxu0 0.0
        %945 = vmatpush1.xpose.msra.mxu0 0.0
        %946 = vmatprep.subr.mxu0 0.0
        %947 = vmatpush1.xpose.msra.mxu0 0.0
        %948 = vmatprep.subr.mxu0 0.0
        %949 = vmatpush1.xpose.msra.mxu0 0.0
        %950 = vmatprep.subr.mxu0 0.0
        %951 = vmatpush1.xpose.msra.mxu0 0.0
        %952 = vmatprep.subr.mxu0 0.0
        %953 = vmatpush1.xpose.msra.mxu0 0.0
        %954 = vmatprep.subr.mxu0 0.0
        %955 = vmatpush1.xpose.msra.mxu0 0.0
        %956 = vmatprep.subr.mxu0 0.0
        %957 = vmatpush1.xpose.msra.mxu0 0.0
        %958 = vmatprep.subr.mxu0 0.0
        %959 = vmatpush1.xpose.msra.mxu0 0.0
        %960 = vmatprep.subr.mxu0 0.0
        %961 = vmatpush1.xpose.msra.mxu0 0.0
        %962 = vmatprep.subr.mxu0 0.0
        %963 = vmatpush1.xpose.msra.mxu0 0.0
        %964 = vmatprep.subr.mxu0 0.0
        %965 = vmatpush1.xpose.msra.mxu0 0.0
        %966 = vmatprep.subr.mxu0 0.0
        %967 = vmatpush1.xpose.msra.mxu0 0.0
        %968 = vmatprep.subr.mxu0 0.0
        %969 = vmatpush1.xpose.msra.mxu0 0.0
        %970 = vmatprep.mubr.f32.mxu0 0.0
        %971 = vmatmul.mubr.f32.gmra.mrb[0].mxu0 %v902
        %v972 = vpop.f32.mrb[0].mxu0
        %v973 = vadd.f32 %v895, %v972
        %v974 = vpop.f32.mrb[0].mxu0
        %975 = vdwg.mxu0
        %v976 = vsel %vm900, %v973, -inf
        %977 = vmax.xlane.f32.xlu0 %v976
        %v978 = vpop.xlane.xlu0 %977
        %v979 = vsub.f32 %v973, %v978
        %v980 = vmul.f32 %v979, 1.442695
        %v981 = vpow.pop %v980
        %v982 = vsel %vm900, %v981, 0.0
        %983 = vadd.xlane.f32.xlu0 %v982
        %v984 = vpop.xlane.xlu0 %983
        %v985 = vrcp.pop %v984
        %v986 = vmul.f32 %v981, %v985
        %987 = vrot.lane.b32.xlu0 %v887, 64
        %v988 = vpop.permute.xlu0 %987
        %v991 = vsel %vm900, %v986, 0
        %993 = vmatprep.subr.mxu0 0.0
        %994 = vmatpush1.msra.mxu0 %v988
        %995 = vmatprep.subr.mxu0 0.0
        %996 = vmatpush1.msra.mxu0 0.0
        %997 = vmatprep.subr.mxu0 0.0
        %998 = vmatpush1.msra.mxu0 0.0
        %999 = vmatprep.subr.mxu0 0.0
        %1000 = vmatpush1.msra.mxu0 0.0
        %1001 = vmatprep.subr.mxu0 0.0
        %1002 = vmatpush1.msra.mxu0 0.0
        %1003 = vmatprep.subr.mxu0 0.0
        %1004 = vmatpush1.msra.mxu0 0.0
        %1005 = vmatprep.subr.mxu0 0.0
        %1006 = vmatpush1.msra.mxu0 0.0
        %1007 = vmatprep.subr.mxu0 0.0
        %1008 = vmatpush1.msra.mxu0 0.0
        %1009 = vmatprep.subr.mxu0 0.0
        %1010 = vmatpush1.msra.mxu0 0.0
        %1011 = vmatprep.subr.mxu0 0.0
        %1012 = vmatpush1.msra.mxu0 0.0
        %1013 = vmatprep.subr.mxu0 0.0
        %1014 = vmatpush1.msra.mxu0 0.0
        %1015 = vmatprep.subr.mxu0 0.0
        %1016 = vmatpush1.msra.mxu0 0.0
        %1017 = vmatprep.subr.mxu0 0.0
        %1018 = vmatpush1.msra.mxu0 0.0
        %1019 = vmatprep.subr.mxu0 0.0
        %1020 = vmatpush1.msra.mxu0 0.0
        %1021 = vmatprep.subr.mxu0 0.0
        %1022 = vmatpush1.msra.mxu0 0.0
        %1023 = vmatprep.subr.mxu0 0.0
        %1024 = vmatpush1.msra.mxu0 0.0
        %1025 = vmatprep.subr.mxu0 0.0
        %1026 = vmatpush1.msra.mxu0 0.0
        %1027 = vmatprep.subr.mxu0 0.0
        %1028 = vmatpush1.msra.mxu0 0.0
        %1029 = vmatprep.subr.mxu0 0.0
        %1030 = vmatpush1.msra.mxu0 0.0
        %1031 = vmatprep.subr.mxu0 0.0
        %1032 = vmatpush1.msra.mxu0 0.0
        %1033 = vmatprep.subr.mxu0 0.0
        %1034 = vmatpush1.msra.mxu0 0.0
        %1035 = vmatprep.subr.mxu0 0.0
        %1036 = vmatpush1.msra.mxu0 0.0
        %1037 = vmatprep.subr.mxu0 0.0
        %1038 = vmatpush1.msra.mxu0 0.0
        %1039 = vmatprep.subr.mxu0 0.0
        %1040 = vmatpush1.msra.mxu0 0.0
        %1041 = vmatprep.subr.mxu0 0.0
        %1042 = vmatpush1.msra.mxu0 0.0
        %1043 = vmatprep.subr.mxu0 0.0
        %1044 = vmatpush1.msra.mxu0 0.0
        %1045 = vmatprep.subr.mxu0 0.0
        %1046 = vmatpush1.msra.mxu0 0.0
        %1047 = vmatprep.subr.mxu0 0.0
        %1048 = vmatpush1.msra.mxu0 0.0
        %1049 = vmatprep.subr.mxu0 0.0
        %1050 = vmatpush1.msra.mxu0 0.0
        %1051 = vmatprep.subr.mxu0 0.0
        %1052 = vmatpush1.msra.mxu0 0.0
        %1053 = vmatprep.subr.mxu0 0.0
        %1054 = vmatpush1.msra.mxu0 0.0
        %1055 = vmatprep.subr.mxu0 0.0
        %1056 = vmatpush1.msra.mxu0 0.0
        %1057 = vmatprep.mubr.f32.mxu0 0.0
        %1058 = vmatmul.mubr.f32.gmra.mrb[0].mxu0 %v991
        %v1059 = vpop.f32.mrb[0].mxu0
        %v1060 = vadd.f32 0.0, %v1059
        %v1061 = vpop.f32.mrb[0].mxu0
        %1062 = vdwg.mxu0
        %1063 = vst.msk [vmem:[#allocation2] sm:$0xff] %vm900, %v1060
        %1064 = vrot.lane.b32.xlu0 %v890, 120
        %v1065 = vpop.permute.xlu0 %1064
        %1066 = vrot.lane.b32.xlu0 %v887, 88
        %v1067 = vpop.permute.xlu0 %1066
        %v1068 = vsel %vm900, %v1065, 0
        %v1070 = vsel %vm900, %v1067, 0
        %1072 = vmatprep.subr.mxu0 0.0
        %1073 = vmatpush1.xpose.msra.mxu0 %v1070
        %1074 = vmatprep.subr.mxu0 0.0
        %1075 = vmatpush1.xpose.msra.mxu0 0.0
        %1076 = vmatprep.subr.mxu0 0.0
        %1077 = vmatpush1.xpose.msra.mxu0 0.0
        %1078 = vmatprep.subr.mxu0 0.0
        %1079 = vmatpush1.xpose.msra.mxu0 0.0
        %1080 = vmatprep.subr.mxu0 0.0
        %1081 = vmatpush1.xpose.msra.mxu0 0.0
        %1082 = vmatprep.subr.mxu0 0.0
        %1083 = vmatpush1.xpose.msra.mxu0 0.0
        %1084 = vmatprep.subr.mxu0 0.0
        %1085 = vmatpush1.xpose.msra.mxu0 0.0
        %1086 = vmatprep.subr.mxu0 0.0
        %1087 = vmatpush1.xpose.msra.mxu0 0.0
        %1088 = vmatprep.subr.mxu0 0.0
        %1089 = vmatpush1.xpose.msra.mxu0 0.0
        %1090 = vmatprep.subr.mxu0 0.0
        %1091 = vmatpush1.xpose.msra.mxu0 0.0
        %1092 = vmatprep.subr.mxu0 0.0
        %1093 = vmatpush1.xpose.msra.mxu0 0.0
        %1094 = vmatprep.subr.mxu0 0.0
        %1095 = vmatpush1.xpose.msra.mxu0 0.0
        %1096 = vmatprep.subr.mxu0 0.0
        %1097 = vmatpush1.xpose.msra.mxu0 0.0
        %1098 = vmatprep.subr.mxu0 0.0
        %1099 = vmatpush1.xpose.msra.mxu0 0.0
        %1100 = vmatprep.subr.mxu0 0.0
        %1101 = vmatpush1.xpose.msra.mxu0 0.0
        %1102 = vmatprep.subr.mxu0 0.0
        %1103 = vmatpush1.xpose.msra.mxu0 0.0
        %1104 = vmatprep.subr.mxu0 0.0
        %1105 = vmatpush1.xpose.msra.mxu0 0.0
        %1106 = vmatprep.subr.mxu0 0.0
        %1107 = vmatpush1.xpose.msra.mxu0 0.0
        %1108 = vmatprep.subr.mxu0 0.0
        %1109 = vmatpush1.xpose.msra.mxu0 0.0
        %1110 = vmatprep.subr.mxu0 0.0
        %1111 = vmatpush1.xpose.msra.mxu0 0.0
        %1112 = vmatprep.subr.mxu0 0.0
        %1113 = vmatpush1.xpose.msra.mxu0 0.0
        %1114 = vmatprep.subr.mxu0 0.0
        %1115 = vmatpush1.xpose.msra.mxu0 0.0
        %1116 = vmatprep.subr.mxu0 0.0
        %1117 = vmatpush1.xpose.msra.mxu0 0.0
        %1118 = vmatprep.subr.mxu0 0.0
        %1119 = vmatpush1.xpose.msra.mxu0 0.0
        %1120 = vmatprep.subr.mxu0 0.0
        %1121 = vmatpush1.xpose.msra.mxu0 0.0
        %1122 = vmatprep.subr.mxu0 0.0
        %1123 = vmatpush1.xpose.msra.mxu0 0.0
        %1124 = vmatprep.subr.mxu0 0.0
        %1125 = vmatpush1.xpose.msra.mxu0 0.0
        %1126 = vmatprep.subr.mxu0 0.0
        %1127 = vmatpush1.xpose.msra.mxu0 0.0
        %1128 = vmatprep.subr.mxu0 0.0
        %1129 = vmatpush1.xpose.msra.mxu0 0.0
        %1130 = vmatprep.subr.mxu0 0.0
        %1131 = vmatpush1.xpose.msra.mxu0 0.0
        %1132 = vmatprep.subr.mxu0 0.0
        %1133 = vmatpush1.xpose.msra.mxu0 0.0
        %1134 = vmatprep.subr.mxu0 0.0
        %1135 = vmatpush1.xpose.msra.mxu0 0.0
        %1136 = vmatprep.mubr.f32.mxu0 0.0
        %1137 = vmatmul.mubr.f32.gmra.mrb[0].mxu0 %v1068
        %v1138 = vpop.f32.mrb[0].mxu0
        %v1139 = vadd.f32 %v895, %v1138
        %v1140 = vpop.f32.mrb[0].mxu0
        %1141 = vdwg.mxu0
        %v1142 = vsel %vm900, %v1139, -inf
        %1143 = vmax.xlane.f32.xlu0 %v1142
        %v1144 = vpop.xlane.xlu0 %1143
        %v1145 = vsub.f32 %v1139, %v1144
        %v1146 = vmul.f32 %v1145, 1.442695
        %v1147 = vpow.pop %v1146
        %v1148 = vsel %vm900, %v1147, 0.0
        %1149 = vadd.xlane.f32.xlu0 %v1148
        %v1150 = vpop.xlane.xlu0 %1149
        %v1151 = vrcp.pop %v1150
        %v1152 = vmul.f32 %v1147, %v1151
        %1153 = vrot.lane.b32.xlu0 %v887, 56
        %v1154 = vpop.permute.xlu0 %1153
        %v1157 = vsel %vm900, %v1152, 0
        %1159 = vmatprep.subr.mxu0 0.0
        %1160 = vmatpush1.msra.mxu0 %v1154
        %1161 = vmatprep.subr.mxu0 0.0
        %1162 = vmatpush1.msra.mxu0 0.0
        %1163 = vmatprep.subr.mxu0 0.0
        %1164 = vmatpush1.msra.mxu0 0.0
        %1165 = vmatprep.subr.mxu0 0.0
        %1166 = vmatpush1.msra.mxu0 0.0
        %1167 = vmatprep.subr.mxu0 0.0
        %1168 = vmatpush1.msra.mxu0 0.0
        %1169 = vmatprep.subr.mxu0 0.0
        %1170 = vmatpush1.msra.mxu0 0.0
        %1171 = vmatprep.subr.mxu0 0.0
        %1172 = vmatpush1.msra.mxu0 0.0
        %1173 = vmatprep.subr.mxu0 0.0
        %1174 = vmatpush1.msra.mxu0 0.0
        %1175 = vmatprep.subr.mxu0 0.0
        %1176 = vmatpush1.msra.mxu0 0.0
        %1177 = vmatprep.subr.mxu0 0.0
        %1178 = vmatpush1.msra.mxu0 0.0
        %1179 = vmatprep.subr.mxu0 0.0
        %1180 = vmatpush1.msra.mxu0 0.0
        %1181 = vmatprep.subr.mxu0 0.0
        %1182 = vmatpush1.msra.mxu0 0.0
        %1183 = vmatprep.subr.mxu0 0.0
        %1184 = vmatpush1.msra.mxu0 0.0
        %1185 = vmatprep.subr.mxu0 0.0
        %1186 = vmatpush1.msra.mxu0 0.0
        %1187 = vmatprep.subr.mxu0 0.0
        %1188 = vmatpush1.msra.mxu0 0.0
        %1189 = vmatprep.subr.mxu0 0.0
        %1190 = vmatpush1.msra.mxu0 0.0
        %1191 = vmatprep.subr.mxu0 0.0
        %1192 = vmatpush1.msra.mxu0 0.0
        %1193 = vmatprep.subr.mxu0 0.0
        %1194 = vmatpush1.msra.mxu0 0.0
        %1195 = vmatprep.subr.mxu0 0.0
        %1196 = vmatpush1.msra.mxu0 0.0
        %1197 = vmatprep.subr.mxu0 0.0
        %1198 = vmatpush1.msra.mxu0 0.0
        %1199 = vmatprep.subr.mxu0 0.0
        %1200 = vmatpush1.msra.mxu0 0.0
        %1201 = vmatprep.subr.mxu0 0.0
        %1202 = vmatpush1.msra.mxu0 0.0
        %1203 = vmatprep.subr.mxu0 0.0
        %1204 = vmatpush1.msra.mxu0 0.0
        %1205 = vmatprep.subr.mxu0 0.0
        %1206 = vmatpush1.msra.mxu0 0.0
        %1207 = vmatprep.subr.mxu0 0.0
        %1208 = vmatpush1.msra.mxu0 0.0
        %1209 = vmatprep.subr.mxu0 0.0
        %1210 = vmatpush1.msra.mxu0 0.0
        %1211 = vmatprep.subr.mxu0 0.0
        %1212 = vmatpush1.msra.mxu0 0.0
        %1213 = vmatprep.subr.mxu0 0.0
        %1214 = vmatpush1.msra.mxu0 0.0
        %1215 = vmatprep.subr.mxu0 0.0
        %1216 = vmatpush1.msra.mxu0 0.0
        %1217 = vmatprep.subr.mxu0 0.0
        %1218 = vmatpush1.msra.mxu0 0.0
        %1219 = vmatprep.subr.mxu0 0.0
        %1220 = vmatpush1.msra.mxu0 0.0
        %1221 = vmatprep.subr.mxu0 0.0
        %1222 = vmatpush1.msra.mxu0 0.0
        %1223 = vmatprep.mubr.f32.mxu0 0.0
        %1224 = vmatmul.mubr.f32.gmra.mrb[0].mxu0 %v1157
        %v1225 = vpop.f32.mrb[0].mxu0
        %v1226 = vadd.f32 0.0, %v1225
        %v1227 = vpop.f32.mrb[0].mxu0
        %1228 = vdwg.mxu0
        %1230 = vrot.lane.b32.xlu0 %v1226, 8
        %v1231 = vpop.permute.xlu0 %1230
        %vm1233 = vcmask 130112
        %1234 = vst.msk [vmem:[#allocation2] sm:$0xff] %vm1233, %v1231
        %1235 = vrot.lane.b32.xlu0 %v890, 112
        %v1236 = vpop.permute.xlu0 %1235
        %1237 = vrot.lane.b32.xlu0 %v887, 80
        %v1238 = vpop.permute.xlu0 %1237
        %v1239 = vsel %vm900, %v1236, 0
        %v1241 = vsel %vm900, %v1238, 0
        %1243 = vmatprep.subr.mxu0 0.0
        %1244 = vmatpush1.xpose.msra.mxu0 %v1241
        %1245 = vmatprep.subr.mxu0 0.0
        %1246 = vmatpush1.xpose.msra.mxu0 0.0
        %1247 = vmatprep.subr.mxu0 0.0
        %1248 = vmatpush1.xpose.msra.mxu0 0.0
        %1249 = vmatprep.subr.mxu0 0.0
        %1250 = vmatpush1.xpose.msra.mxu0 0.0
        %1251 = vmatprep.subr.mxu0 0.0
        %1252 = vmatpush1.xpose.msra.mxu0 0.0
        %1253 = vmatprep.subr.mxu0 0.0
        %1254 = vmatpush1.xpose.msra.mxu0 0.0
        %1255 = vmatprep.subr.mxu0 0.0
        %1256 = vmatpush1.xpose.msra.mxu0 0.0
        %1257 = vmatprep.subr.mxu0 0.0
        %1258 = vmatpush1.xpose.msra.mxu0 0.0
        %1259 = vmatprep.subr.mxu0 0.0
        %1260 = vmatpush1.xpose.msra.mxu0 0.0
        %1261 = vmatprep.subr.mxu0 0.0
        %1262 = vmatpush1.xpose.msra.mxu0 0.0
        %1263 = vmatprep.subr.mxu0 0.0
        %1264 = vmatpush1.xpose.msra.mxu0 0.0
        %1265 = vmatprep.subr.mxu0 0.0
        %1266 = vmatpush1.xpose.msra.mxu0 0.0
        %1267 = vmatprep.subr.mxu0 0.0
        %1268 = vmatpush1.xpose.msra.mxu0 0.0
        %1269 = vmatprep.subr.mxu0 0.0
        %1270 = vmatpush1.xpose.msra.mxu0 0.0
        %1271 = vmatprep.subr.mxu0 0.0
        %1272 = vmatpush1.xpose.msra.mxu0 0.0
        %1273 = vmatprep.subr.mxu0 0.0
        %1274 = vmatpush1.xpose.msra.mxu0 0.0
        %1275 = vmatprep.subr.mxu0 0.0
        %1276 = vmatpush1.xpose.msra.mxu0 0.0
        %1277 = vmatprep.subr.mxu0 0.0
        %1278 = vmatpush1.xpose.msra.mxu0 0.0
        %1279 = vmatprep.subr.mxu0 0.0
        %1280 = vmatpush1.xpose.msra.mxu0 0.0
        %1281 = vmatprep.subr.mxu0 0.0
        %1282 = vmatpush1.xpose.msra.mxu0 0.0
        %1283 = vmatprep.subr.mxu0 0.0
        %1284 = vmatpush1.xpose.msra.mxu0 0.0
        %1285 = vmatprep.subr.mxu0 0.0
        %1286 = vmatpush1.xpose.msra.mxu0 0.0
        %1287 = vmatprep.subr.mxu0 0.0
        %1288 = vmatpush1.xpose.msra.mxu0 0.0
        %1289 = vmatprep.subr.mxu0 0.0
        %1290 = vmatpush1.xpose.msra.mxu0 0.0
        %1291 = vmatprep.subr.mxu0 0.0
        %1292 = vmatpush1.xpose.msra.mxu0 0.0
        %1293 = vmatprep.subr.mxu0 0.0
        %1294 = vmatpush1.xpose.msra.mxu0 0.0
        %1295 = vmatprep.subr.mxu0 0.0
        %1296 = vmatpush1.xpose.msra.mxu0 0.0
        %1297 = vmatprep.subr.mxu0 0.0
        %1298 = vmatpush1.xpose.msra.mxu0 0.0
        %1299 = vmatprep.subr.mxu0 0.0
        %1300 = vmatpush1.xpose.msra.mxu0 0.0
        %1301 = vmatprep.subr.mxu0 0.0
        %1302 = vmatpush1.xpose.msra.mxu0 0.0
        %1303 = vmatprep.subr.mxu0 0.0
        %1304 = vmatpush1.xpose.msra.mxu0 0.0
        %1305 = vmatprep.subr.mxu0 0.0
        %1306 = vmatpush1.xpose.msra.mxu0 0.0
        %1307 = vmatprep.mubr.f32.mxu0 0.0
        %1308 = vmatmul.mubr.f32.gmra.mrb[0].mxu0 %v1239
        %v1309 = vpop.f32.mrb[0].mxu0
        %v1310 = vadd.f32 %v895, %v1309
        %v1311 = vpop.f32.mrb[0].mxu0
        %1312 = vdwg.mxu0
        %v1313 = vsel %vm900, %v1310, -inf
        %1314 = vmax.xlane.f32.xlu0 %v1313
        %v1315 = vpop.xlane.xlu0 %1314
        %v1316 = vsub.f32 %v1310, %v1315
        %v1317 = vmul.f32 %v1316, 1.442695
        %v1318 = vpow.pop %v1317
        %v1319 = vsel %vm900, %v1318, 0.0
        %1320 = vadd.xlane.f32.xlu0 %v1319
        %v1321 = vpop.xlane.xlu0 %1320
        %v1322 = vrcp.pop %v1321
        %v1323 = vmul.f32 %v1318, %v1322
        %1324 = vrot.lane.b32.xlu0 %v887, 48
        %v1325 = vpop.permute.xlu0 %1324
        %v1328 = vsel %vm900, %v1323, 0
        %1330 = vmatprep.subr.mxu0 0.0
        %1331 = vmatpush1.msra.mxu0 %v1325
        %1332 = vmatprep.subr.mxu0 0.0
        %1333 = vmatpush1.msra.mxu0 0.0
        %1334 = vmatprep.subr.mxu0 0.0
        %1335 = vmatpush1.msra.mxu0 0.0
        %1336 = vmatprep.subr.mxu0 0.0
        %1337 = vmatpush1.msra.mxu0 0.0
        %1338 = vmatprep.subr.mxu0 0.0
        %1339 = vmatpush1.msra.mxu0 0.0
        %1340 = vmatprep.subr.mxu0 0.0
        %1341 = vmatpush1.msra.mxu0 0.0
        %1342 = vmatprep.subr.mxu0 0.0
        %1343 = vmatpush1.msra.mxu0 0.0
        %1344 = vmatprep.subr.mxu0 0.0
        %1345 = vmatpush1.msra.mxu0 0.0
        %1346 = vmatprep.subr.mxu0 0.0
        %1347 = vmatpush1.msra.mxu0 0.0
        %1348 = vmatprep.subr.mxu0 0.0
        %1349 = vmatpush1.msra.mxu0 0.0
        %1350 = vmatprep.subr.mxu0 0.0
        %1351 = vmatpush1.msra.mxu0 0.0
        %1352 = vmatprep.subr.mxu0 0.0
        %1353 = vmatpush1.msra.mxu0 0.0
        %1354 = vmatprep.subr.mxu0 0.0
        %1355 = vmatpush1.msra.mxu0 0.0
        %1356 = vmatprep.subr.mxu0 0.0
        %1357 = vmatpush1.msra.mxu0 0.0
        %1358 = vmatprep.subr.mxu0 0.0
        %1359 = vmatpush1.msra.mxu0 0.0
        %1360 = vmatprep.subr.mxu0 0.0
        %1361 = vmatpush1.msra.mxu0 0.0
        %1362 = vmatprep.subr.mxu0 0.0
        %1363 = vmatpush1.msra.mxu0 0.0
        %1364 = vmatprep.subr.mxu0 0.0
        %1365 = vmatpush1.msra.mxu0 0.0
        %1366 = vmatprep.subr.mxu0 0.0
        %1367 = vmatpush1.msra.mxu0 0.0
        %1368 = vmatprep.subr.mxu0 0.0
        %1369 = vmatpush1.msra.mxu0 0.0
        %1370 = vmatprep.subr.mxu0 0.0
        %1371 = vmatpush1.msra.mxu0 0.0
        %1372 = vmatprep.subr.mxu0 0.0
        %1373 = vmatpush1.msra.mxu0 0.0
        %1374 = vmatprep.subr.mxu0 0.0
        %1375 = vmatpush1.msra.mxu0 0.0
        %1376 = vmatprep.subr.mxu0 0.0
        %1377 = vmatpush1.msra.mxu0 0.0
        %1378 = vmatprep.subr.mxu0 0.0
        %1379 = vmatpush1.msra.mxu0 0.0
        %1380 = vmatprep.subr.mxu0 0.0
        %1381 = vmatpush1.msra.mxu0 0.0
        %1382 = vmatprep.subr.mxu0 0.0
        %1383 = vmatpush1.msra.mxu0 0.0
        %1384 = vmatprep.subr.mxu0 0.0
        %1385 = vmatpush1.msra.mxu0 0.0
        %1386 = vmatprep.subr.mxu0 0.0
        %1387 = vmatpush1.msra.mxu0 0.0
        %1388 = vmatprep.subr.mxu0 0.0
        %1389 = vmatpush1.msra.mxu0 0.0
        %1390 = vmatprep.subr.mxu0 0.0
        %1391 = vmatpush1.msra.mxu0 0.0
        %1392 = vmatprep.subr.mxu0 0.0
        %1393 = vmatpush1.msra.mxu0 0.0
        %1394 = vmatprep.mubr.f32.mxu0 0.0
        %1395 = vmatmul.mubr.f32.gmra.mrb[0].mxu0 %v1328
        %v1396 = vpop.f32.mrb[0].mxu0
        %v1397 = vadd.f32 0.0, %v1396
        %v1398 = vpop.f32.mrb[0].mxu0
        %1399 = vdwg.mxu0
        %1401 = vrot.lane.b32.xlu0 %v1397, 16
        %v1402 = vpop.permute.xlu0 %1401
        %vm1404 = vcmask 195712
        %1405 = vst.msk [vmem:[#allocation2] sm:$0xff] %vm1404, %v1402
        %1406 = vrot.lane.b32.xlu0 %v890, 104
        %v1407 = vpop.permute.xlu0 %1406
        %1408 = vrot.lane.b32.xlu0 %v887, 72
        %v1409 = vpop.permute.xlu0 %1408
        %v1410 = vsel %vm900, %v1407, 0
        %v1412 = vsel %vm900, %v1409, 0
        %1414 = vmatprep.subr.mxu0 0.0
        %1415 = vmatpush1.xpose.msra.mxu0 %v1412
        %1416 = vmatprep.subr.mxu0 0.0
        %1417 = vmatpush1.xpose.msra.mxu0 0.0
        %1418 = vmatprep.subr.mxu0 0.0
        %1419 = vmatpush1.xpose.msra.mxu0 0.0
        %1420 = vmatprep.subr.mxu0 0.0
        %1421 = vmatpush1.xpose.msra.mxu0 0.0
        %1422 = vmatprep.subr.mxu0 0.0
        %1423 = vmatpush1.xpose.msra.mxu0 0.0
        %1424 = vmatprep.subr.mxu0 0.0
        %1425 = vmatpush1.xpose.msra.mxu0 0.0
        %1426 = vmatprep.subr.mxu0 0.0
        %1427 = vmatpush1.xpose.msra.mxu0 0.0
        %1428 = vmatprep.subr.mxu0 0.0
        %1429 = vmatpush1.xpose.msra.mxu0 0.0
        %1430 = vmatprep.subr.mxu0 0.0
        %1431 = vmatpush1.xpose.msra.mxu0 0.0
        %1432 = vmatprep.subr.mxu0 0.0
        %1433 = vmatpush1.xpose.msra.mxu0 0.0
        %1434 = vmatprep.subr.mxu0 0.0
        %1435 = vmatpush1.xpose.msra.mxu0 0.0
        %1436 = vmatprep.subr.mxu0 0.0
        %1437 = vmatpush1.xpose.msra.mxu0 0.0
        %1438 = vmatprep.subr.mxu0 0.0
        %1439 = vmatpush1.xpose.msra.mxu0 0.0
        %1440 = vmatprep.subr.mxu0 0.0
        %1441 = vmatpush1.xpose.msra.mxu0 0.0
        %1442 = vmatprep.subr.mxu0 0.0
        %1443 = vmatpush1.xpose.msra.mxu0 0.0
        %1444 = vmatprep.subr.mxu0 0.0
        %1445 = vmatpush1.xpose.msra.mxu0 0.0
        %1446 = vmatprep.subr.mxu0 0.0
        %1447 = vmatpush1.xpose.msra.mxu0 0.0
        %1448 = vmatprep.subr.mxu0 0.0
        %1449 = vmatpush1.xpose.msra.mxu0 0.0
        %1450 = vmatprep.subr.mxu0 0.0
        %1451 = vmatpush1.xpose.msra.mxu0 0.0
        %1452 = vmatprep.subr.mxu0 0.0
        %1453 = vmatpush1.xpose.msra.mxu0 0.0
        %1454 = vmatprep.subr.mxu0 0.0
        %1455 = vmatpush1.xpose.msra.mxu0 0.0
        %1456 = vmatprep.subr.mxu0 0.0
        %1457 = vmatpush1.xpose.msra.mxu0 0.0
        %1458 = vmatprep.subr.mxu0 0.0
        %1459 = vmatpush1.xpose.msra.mxu0 0.0
        %1460 = vmatprep.subr.mxu0 0.0
        %1461 = vmatpush1.xpose.msra.mxu0 0.0
        %1462 = vmatprep.subr.mxu0 0.0
        %1463 = vmatpush1.xpose.msra.mxu0 0.0
        %1464 = vmatprep.subr.mxu0 0.0
        %1465 = vmatpush1.xpose.msra.mxu0 0.0
        %1466 = vmatprep.subr.mxu0 0.0
        %1467 = vmatpush1.xpose.msra.mxu0 0.0
        %1468 = vmatprep.subr.mxu0 0.0
        %1469 = vmatpush1.xpose.msra.mxu0 0.0
        %1470 = vmatprep.subr.mxu0 0.0
        %1471 = vmatpush1.xpose.msra.mxu0 0.0
        %1472 = vmatprep.subr.mxu0 0.0
        %1473 = vmatpush1.xpose.msra.mxu0 0.0
        %1474 = vmatprep.subr.mxu0 0.0
        %1475 = vmatpush1.xpose.msra.mxu0 0.0
        %1476 = vmatprep.subr.mxu0 0.0
        %1477 = vmatpush1.xpose.msra.mxu0 0.0
        %1478 = vmatprep.mubr.f32.mxu0 0.0
        %1479 = vmatmul.mubr.f32.gmra.mrb[0].mxu0 %v1410
        %v1480 = vpop.f32.mrb[0].mxu0
        %v1481 = vadd.f32 %v895, %v1480
        %v1482 = vpop.f32.mrb[0].mxu0
        %1483 = vdwg.mxu0
        %v1484 = vsel %vm900, %v1481, -inf
        %1485 = vmax.xlane.f32.xlu0 %v1484
        %v1486 = vpop.xlane.xlu0 %1485
        %v1487 = vsub.f32 %v1481, %v1486
        %v1488 = vmul.f32 %v1487, 1.442695
        %v1489 = vpow.pop %v1488
        %v1490 = vsel %vm900, %v1489, 0.0
        %1491 = vadd.xlane.f32.xlu0 %v1490
        %v1492 = vpop.xlane.xlu0 %1491
        %v1493 = vrcp.pop %v1492
        %v1494 = vmul.f32 %v1489, %v1493
        %1495 = vrot.lane.b32.xlu0 %v887, 40
        %v1496 = vpop.permute.xlu0 %1495
        %v1499 = vsel %vm900, %v1494, 0
        %1501 = vmatprep.subr.mxu0 0.0
        %1502 = vmatpush1.msra.mxu0 %v1496
        %1503 = vmatprep.subr.mxu0 0.0
        %1504 = vmatpush1.msra.mxu0 0.0
        %1505 = vmatprep.subr.mxu0 0.0
        %1506 = vmatpush1.msra.mxu0 0.0
        %1507 = vmatprep.subr.mxu0 0.0
        %1508 = vmatpush1.msra.mxu0 0.0
        %1509 = vmatprep.subr.mxu0 0.0
        %1510 = vmatpush1.msra.mxu0 0.0
        %1511 = vmatprep.subr.mxu0 0.0
        %1512 = vmatpush1.msra.mxu0 0.0
        %1513 = vmatprep.subr.mxu0 0.0
        %1514 = vmatpush1.msra.mxu0 0.0
        %1515 = vmatprep.subr.mxu0 0.0
        %1516 = vmatpush1.msra.mxu0 0.0
        %1517 = vmatprep.subr.mxu0 0.0
        %1518 = vmatpush1.msra.mxu0 0.0
        %1519 = vmatprep.subr.mxu0 0.0
        %1520 = vmatpush1.msra.mxu0 0.0
        %1521 = vmatprep.subr.mxu0 0.0
        %1522 = vmatpush1.msra.mxu0 0.0
        %1523 = vmatprep.subr.mxu0 0.0
        %1524 = vmatpush1.msra.mxu0 0.0
        %1525 = vmatprep.subr.mxu0 0.0
        %1526 = vmatpush1.msra.mxu0 0.0
        %1527 = vmatprep.subr.mxu0 0.0
        %1528 = vmatpush1.msra.mxu0 0.0
        %1529 = vmatprep.subr.mxu0 0.0
        %1530 = vmatpush1.msra.mxu0 0.0
        %1531 = vmatprep.subr.mxu0 0.0
        %1532 = vmatpush1.msra.mxu0 0.0
        %1533 = vmatprep.subr.mxu0 0.0
        %1534 = vmatpush1.msra.mxu0 0.0
        %1535 = vmatprep.subr.mxu0 0.0
        %1536 = vmatpush1.msra.mxu0 0.0
        %1537 = vmatprep.subr.mxu0 0.0
        %1538 = vmatpush1.msra.mxu0 0.0
        %1539 = vmatprep.subr.mxu0 0.0
        %1540 = vmatpush1.msra.mxu0 0.0
        %1541 = vmatprep.subr.mxu0 0.0
        %1542 = vmatpush1.msra.mxu0 0.0
        %1543 = vmatprep.subr.mxu0 0.0
        %1544 = vmatpush1.msra.mxu0 0.0
        %1545 = vmatprep.subr.mxu0 0.0
        %1546 = vmatpush1.msra.mxu0 0.0
        %1547 = vmatprep.subr.mxu0 0.0
        %1548 = vmatpush1.msra.mxu0 0.0
        %1549 = vmatprep.subr.mxu0 0.0
        %1550 = vmatpush1.msra.mxu0 0.0
        %1551 = vmatprep.subr.mxu0 0.0
        %1552 = vmatpush1.msra.mxu0 0.0
        %1553 = vmatprep.subr.mxu0 0.0
        %1554 = vmatpush1.msra.mxu0 0.0
        %1555 = vmatprep.subr.mxu0 0.0
        %1556 = vmatpush1.msra.mxu0 0.0
        %1557 = vmatprep.subr.mxu0 0.0
        %1558 = vmatpush1.msra.mxu0 0.0
        %1559 = vmatprep.subr.mxu0 0.0
        %1560 = vmatpush1.msra.mxu0 0.0
        %1561 = vmatprep.subr.mxu0 0.0
        %1562 = vmatpush1.msra.mxu0 0.0
        %1563 = vmatprep.subr.mxu0 0.0
        %1564 = vmatpush1.msra.mxu0 0.0
        %1565 = vmatprep.mubr.f32.mxu0 0.0
        %1566 = vmatmul.mubr.f32.gmra.mrb[0].mxu0 %v1499
        %v1567 = vpop.f32.mrb[0].mxu0
        %v1568 = vadd.f32 0.0, %v1567
        %v1569 = vpop.f32.mrb[0].mxu0
        %1570 = vdwg.mxu0
        %1572 = vrot.lane.b32.xlu0 %v1568, 24
        %v1573 = vpop.permute.xlu0 %1572
        %vm1575 = vcmask 261312
        %1576 = vst.msk [vmem:[#allocation2] sm:$0xff] %vm1575, %v1573
        %v1577 = vld [vmem:[#allocation2] sm:$0xff]
        %v1578 = vld [vmem:[%s8] sm:$0xff]
        %v1579 = vld [vmem:[%s8 + $0x8] sm:$0xff]
        %v1580 = vld [vmem:[%s8 + $0x10] sm:$0xff]
        %v1581 = vld [vmem:[%s8 + $0x18] sm:$0xff]
        %v1582 = vld [vmem:[%s9] sm:$0x1]
        %v1584 = vlaneseq
        %v1585 = vshrl.u32 %v1584, 7
        %v1586 = vsub.s32 0, %v1585
        %v1587 = vrot.slane %v1582, %v1586
        %v1590 = vsel %vm773, %v1577, 0
        %1592 = vmatprep.subr.mxu0 0.0
        %1593 = vmatpush1.msra.mxu0 %v1578
        %1594 = vmatprep.subr.mxu0 0.0
        %1595 = vmatpush1.msra.mxu0 %v1579
        %1596 = vmatprep.subr.mxu0 0.0
        %1597 = vmatpush1.msra.mxu0 %v1580
        %1598 = vmatprep.subr.mxu0 0.0
        %1599 = vmatpush1.msra.mxu0 %v1581
        %1600 = vmatprep.subr.mxu0 0.0
        %1601 = vmatpush1.msra.mxu0 0.0
        %1602 = vmatprep.subr.mxu0 0.0
        %1603 = vmatpush1.msra.mxu0 0.0
        %1604 = vmatprep.subr.mxu0 0.0
        %1605 = vmatpush1.msra.mxu0 0.0
        %1606 = vmatprep.subr.mxu0 0.0
        %1607 = vmatpush1.msra.mxu0 0.0
        %1608 = vmatprep.subr.mxu0 0.0
        %1609 = vmatpush1.msra.mxu0 0.0
        %1610 = vmatprep.subr.mxu0 0.0
        %1611 = vmatpush1.msra.mxu0 0.0
        %1612 = vmatprep.subr.mxu0 0.0
        %1613 = vmatpush1.msra.mxu0 0.0
        %1614 = vmatprep.subr.mxu0 0.0
        %1615 = vmatpush1.msra.mxu0 0.0
        %1616 = vmatprep.subr.mxu0 0.0
        %1617 = vmatpush1.msra.mxu0 0.0
        %1618 = vmatprep.subr.mxu0 0.0
        %1619 = vmatpush1.msra.mxu0 0.0
        %1620 = vmatprep.subr.mxu0 0.0
        %1621 = vmatpush1.msra.mxu0 0.0
        %1622 = vmatprep.subr.mxu0 0.0
        %1623 = vmatpush1.msra.mxu0 0.0
        %1624 = vmatprep.subr.mxu0 0.0
        %1625 = vmatpush1.msra.mxu0 0.0
        %1626 = vmatprep.subr.mxu0 0.0
        %1627 = vmatpush1.msra.mxu0 0.0
        %1628 = vmatprep.subr.mxu0 0.0
        %1629 = vmatpush1.msra.mxu0 0.0
        %1630 = vmatprep.subr.mxu0 0.0
        %1631 = vmatpush1.msra.mxu0 0.0
        %1632 = vmatprep.subr.mxu0 0.0
        %1633 = vmatpush1.msra.mxu0 0.0
        %1634 = vmatprep.subr.mxu0 0.0
        %1635 = vmatpush1.msra.mxu0 0.0
        %1636 = vmatprep.subr.mxu0 0.0
        %1637 = vmatpush1.msra.mxu0 0.0
        %1638 = vmatprep.subr.mxu0 0.0
        %1639 = vmatpush1.msra.mxu0 0.0
        %1640 = vmatprep.subr.mxu0 0.0
        %1641 = vmatpush1.msra.mxu0 0.0
        %1642 = vmatprep.subr.mxu0 0.0
        %1643 = vmatpush1.msra.mxu0 0.0
        %1644 = vmatprep.subr.mxu0 0.0
        %1645 = vmatpush1.msra.mxu0 0.0
        %1646 = vmatprep.subr.mxu0 0.0
        %1647 = vmatpush1.msra.mxu0 0.0
        %1648 = vmatprep.subr.mxu0 0.0
        %1649 = vmatpush1.msra.mxu0 0.0
        %1650 = vmatprep.subr.mxu0 0.0
        %1651 = vmatpush1.msra.mxu0 0.0
        %1652 = vmatprep.subr.mxu0 0.0
        %1653 = vmatpush1.msra.mxu0 0.0
        %1654 = vmatprep.subr.mxu0 0.0
        %1655 = vmatpush1.msra.mxu0 0.0
        %1656 = vmatprep.mubr.f32.mxu0 0.0
        %1657 = vmatmul.mubr.f32.gmra.mrb[0].mxu0 %v1590
        %v1658 = vpop.f32.mrb[0].mxu0
        %v1659 = vadd.f32 %v1587, %v1658
        %v1660 = vpop.f32.mrb[0].mxu0
        %1661 = vdwg.mxu0
        %v1662 = vadd.f32 %v1659, %v802
        %v1663 = vld [vmem:[%s10] sm:$0x1]
        %v1664 = vld [vmem:[%s11] sm:$0x1]
        %v1665 = vsel %vm773, %v1662, 0.0
        %1666 = vadd.xlane.f32.xlu0 %v1665
        %v1667 = vpop.xlane.xlu0 %1666
        %v1668 = vmul.f32 %v1662, %v1662
        %v1669 = vsel %vm773, %v1668, 0.0
        %1670 = vadd.xlane.f32.xlu0 %v1669
        %v1671 = vpop.xlane.xlu0 %1670
        %v1672 = vmul.f32 %v1667, 0.03125
        %v1673 = vmul.f32 %v1671, 0.03125
        %v1674 = vmul.f32 %v1672, %v1672
        %v1675 = vsub.f32 %v1673, %v1674
        %v1676 = vsub.f32 %v1662, %v1672
        %v1677 = vadd.f32 %v1675, 1e-12
        %v1678 = vrsqrt.pop %v1677
        %v1679 = vmul.f32 %v1676, %v1678
        %v1681 = vlaneseq
        %v1682 = vshrl.u32 %v1681, 7
        %v1683 = vsub.s32 0, %v1682
        %v1684 = vrot.slane %v1663, %v1683
        %v1686 = vmul.f32 %v1679, %v1684
        %v1688 = vlaneseq
        %v1689 = vshrl.u32 %v1688, 7
        %v1690 = vsub.s32 0, %v1689
        %v1691 = vrot.slane %v1664, %v1690
        %v1693 = vadd.f32 %v1686, %v1691
        %v1694 = vld [vmem:[%s12] sm:$0xff]
        %v1695 = vld [vmem:[%s12 + $0x8] sm:$0xff]
        %v1696 = vld [vmem:[%s12 + $0x10] sm:$0xff]
        %v1697 = vld [vmem:[%s12 + $0x18] sm:$0xff]
        %v1698 = vld [vmem:[%s13] sm:$0x1]
        %v1700 = vlaneseq
        %v1701 = vshrl.u32 %v1700, 7
        %v1702 = vsub.s32 0, %v1701
        %v1703 = vrot.slane %v1698, %v1702
        %v1706 = vsel %vm773, %v1693, 0
        %1708 = vmatprep.subr.mxu0 0.0
        %1709 = vmatpush1.msra.mxu0 %v1694
        %1710 = vmatprep.subr.mxu0 0.0
        %1711 = vmatpush1.msra.mxu0 %v1695
        %1712 = vmatprep.subr.mxu0 0.0
        %1713 = vmatpush1.msra.mxu0 %v1696
        %1714 = vmatprep.subr.mxu0 0.0
        %1715 = vmatpush1.msra.mxu0 %v1697
        %1716 = vmatprep.subr.mxu0 0.0
        %1717 = vmatpush1.msra.mxu0 0.0
        %1718 = vmatprep.subr.mxu0 0.0
        %1719 = vmatpush1.msra.mxu0 0.0
        %1720 = vmatprep.subr.mxu0 0.0
        %1721 = vmatpush1.msra.mxu0 0.0
        %1722 = vmatprep.subr.mxu0 0.0
        %1723 = vmatpush1.msra.mxu0 0.0
        %1724 = vmatprep.subr.mxu0 0.0
        %1725 = vmatpush1.msra.mxu0 0.0
        %1726 = vmatprep.subr.mxu0 0.0
        %1727 = vmatpush1.msra.mxu0 0.0
        %1728 = vmatprep.subr.mxu0 0.0
        %1729 = vmatpush1.msra.mxu0 0.0
        %1730 = vmatprep.subr.mxu0 0.0
        %1731 = vmatpush1.msra.mxu0 0.0
        %1732 = vmatprep.subr.mxu0 0.0
        %1733 = vmatpush1.msra.mxu0 0.0
        %1734 = vmatprep.subr.mxu0 0.0
        %1735 = vmatpush1.msra.mxu0 0.0
        %1736 = vmatprep.subr.mxu0 0.0
        %1737 = vmatpush1.msra.mxu0 0.0
        %1738 = vmatprep.subr.mxu0 0.0
        %1739 = vmatpush1.msra.mxu0 0.0
        %1740 = vmatprep.subr.mxu0 0.0
        %1741 = vmatpush1.msra.mxu0 0.0
        %1742 = vmatprep.subr.mxu0 0.0
        %1743 = vmatpush1.msra.mxu0 0.0
        %1744 = vmatprep.subr.mxu0 0.0
        %1745 = vmatpush1.msra.mxu0 0.0
        %1746 = vmatprep.subr.mxu0 0.0
        %1747 = vmatpush1.msra.mxu0 0.0
        %1748 = vmatprep.subr.mxu0 0.0
        %1749 = vmatpush1.msra.mxu0 0.0
        %1750 = vmatprep.subr.mxu0 0.0
        %1751 = vmatpush1.msra.mxu0 0.0
        %1752 = vmatprep.subr.mxu0 0.0
        %1753 = vmatpush1.msra.mxu0 0.0
        %1754 = vmatprep.subr.mxu0 0.0
        %1755 = vmatpush1.msra.mxu0 0.0
        %1756 = vmatprep.subr.mxu0 0.0
        %1757 = vmatpush1.msra.mxu0 0.0
        %1758 = vmatprep.subr.mxu0 0.0
        %1759 = vmatpush1.msra.mxu0 0.0
        %1760 = vmatprep.subr.mxu0 0.0
        %1761 = vmatpush1.msra.mxu0 0.0
        %1762 = vmatprep.subr.mxu0 0.0
        %1763 = vmatpush1.msra.mxu0 0.0
        %1764 = vmatprep.subr.mxu0 0.0
        %1765 = vmatpush1.msra.mxu0 0.0
        %1766 = vmatprep.subr.mxu0 0.0
        %1767 = vmatpush1.msra.mxu0 0.0
        %1768 = vmatprep.subr.mxu0 0.0
        %1769 = vmatpush1.msra.mxu0 0.0
        %1770 = vmatprep.subr.mxu0 0.0
        %1771 = vmatpush1.msra.mxu0 0.0
        %1772 = vmatprep.mubr.f32.mxu0 0.0
        %1773 = vmatmul.mubr.f32.gmra.mrb[0].mxu0 %v1706
        %v1774 = vpop.f32.mrb[0].mxu0
        %v1775 = vadd.f32 %v1703, %v1774
        %v1776 = vpop.f32.mrb[0].mxu0
        %1777 = vdwg.mxu0
        %v1778 = vmul.f32 %v1775, 0.5
        %v1779 = vmul.f32 %v1775, 0.044715
        %v1780 = vmul.f32 %v1779, %v1775
        %v1781 = vmul.f32 %v1780, %v1775
        %v1782 = vadd.f32 %v1775, %v1781
        %v1783 = vmul.f32 %v1782, 0.7978846
        %v1784 = vtanh.pop %v1783
        %v1785 = vadd.f32 %v1784, 1.0
        %v1786 = vmul.f32 %v1778, %v1785
        %v1787 = vld [vmem:[%s14] sm:$0xff]
        %v1788 = vld [vmem:[%s14 + $0x8] sm:$0xff]
        %v1789 = vld [vmem:[%s14 + $0x10] sm:$0xff]
        %v1790 = vld [vmem:[%s14 + $0x18] sm:$0xff]
        %v1791 = vld [vmem:[%s14 + $0x20] sm:$0xff]
        %v1792 = vld [vmem:[%s14 + $0x28] sm:$0xff]
        %v1793 = vld [vmem:[%s14 + $0x30] sm:$0xff]
        %v1794 = vld [vmem:[%s14 + $0x38] sm:$0xff]
        %v1795 = vld [vmem:[%s15] sm:$0x1]
        %v1797 = vlaneseq
        %v1798 = vshrl.u32 %v1797, 7
        %v1799 = vsub.s32 0, %v1798
        %v1800 = vrot.slane %v1795, %v1799
        %v1803 = vsel %vm697, %v1786, 0
        %1805 = vmatprep.subr.mxu0 0.0
        %1806 = vmatpush1.msra.mxu0 %v1787
        %1807 = vmatprep.subr.mxu0 0.0
        %1808 = vmatpush1.msra.mxu0 %v1788
        %1809 = vmatprep.subr.mxu0 0.0
        %1810 = vmatpush1.msra.mxu0 %v1789
        %1811 = vmatprep.subr.mxu0 0.0
        %1812 = vmatpush1.msra.mxu0 %v1790
        %1813 = vmatprep.subr.mxu0 0.0
        %1814 = vmatpush1.msra.mxu0 %v1791
        %1815 = vmatprep.subr.mxu0 0.0
        %1816 = vmatpush1.msra.mxu0 %v1792
        %1817 = vmatprep.subr.mxu0 0.0
        %1818 = vmatpush1.msra.mxu0 %v1793
        %1819 = vmatprep.subr.mxu0 0.0
        %1820 = vmatpush1.msra.mxu0 %v1794
        %1821 = vmatprep.subr.mxu0 0.0
        %1822 = vmatpush1.msra.mxu0 0.0
        %1823 = vmatprep.subr.mxu0 0.0
        %1824 = vmatpush1.msra.mxu0 0.0
        %1825 = vmatprep.subr.mxu0 0.0
        %1826 = vmatpush1.msra.mxu0 0.0
        %1827 = vmatprep.subr.mxu0 0.0
        %1828 = vmatpush1.msra.mxu0 0.0
        %1829 = vmatprep.subr.mxu0 0.0
        %1830 = vmatpush1.msra.mxu0 0.0
        %1831 = vmatprep.subr.mxu0 0.0
        %1832 = vmatpush1.msra.mxu0 0.0
        %1833 = vmatprep.subr.mxu0 0.0
        %1834 = vmatpush1.msra.mxu0 0.0
        %1835 = vmatprep.subr.mxu0 0.0
        %1836 = vmatpush1.msra.mxu0 0.0
        %1837 = vmatprep.subr.mxu0 0.0
        %1838 = vmatpush1.msra.mxu0 0.0
        %1839 = vmatprep.subr.mxu0 0.0
        %1840 = vmatpush1.msra.mxu0 0.0
        %1841 = vmatprep.subr.mxu0 0.0
        %1842 = vmatpush1.msra.mxu0 0.0
        %1843 = vmatprep.subr.mxu0 0.0
        %1844 = vmatpush1.msra.mxu0 0.0
        %1845 = vmatprep.subr.mxu0 0.0
        %1846 = vmatpush1.msra.mxu0 0.0
        %1847 = vmatprep.subr.mxu0 0.0
        %1848 = vmatpush1.msra.mxu0 0.0
        %1849 = vmatprep.subr.mxu0 0.0
        %1850 = vmatpush1.msra.mxu0 0.0
        %1851 = vmatprep.subr.mxu0 0.0
        %1852 = vmatpush1.msra.mxu0 0.0
        %1853 = vmatprep.subr.mxu0 0.0
        %1854 = vmatpush1.msra.mxu0 0.0
        %1855 = vmatprep.subr.mxu0 0.0
        %1856 = vmatpush1.msra.mxu0 0.0
        %1857 = vmatprep.subr.mxu0 0.0
        %1858 = vmatpush1.msra.mxu0 0.0
        %1859 = vmatprep.subr.mxu0 0.0
        %1860 = vmatpush1.msra.mxu0 0.0
        %1861 = vmatprep.subr.mxu0 0.0
        %1862 = vmatpush1.msra.mxu0 0.0
        %1863 = vmatprep.subr.mxu0 0.0
        %1864 = vmatpush1.msra.mxu0 0.0
        %1865 = vmatprep.subr.mxu0 0.0
        %1866 = vmatpush1.msra.mxu0 0.0
        %1867 = vmatprep.subr.mxu0 0.0
        %1868 = vmatpush1.msra.mxu0 0.0
        %1869 = vmatprep.mubr.f32.mxu0 0.0
        %1870 = vmatmul.mubr.f32.gmra.mrb[0].mxu0 %v1803
        %v1871 = vpop.f32.mrb[0].mxu0
        %v1872 = vadd.f32 %v1800, %v1871
        %v1873 = vpop.f32.mrb[0].mxu0
        %1874 = vdwg.mxu0
        %v1875 = vadd.f32 %v1872, %v1693
        %v1876 = vld [vmem:[%s16] sm:$0x1]
        %v1877 = vld [vmem:[#allocation5] sm:$0x1]
        %v1878 = vsel %vm773, %v1875, 0.0
        %1879 = vadd.xlane.f32.xlu0 %v1878
        %v1880 = vpop.xlane.xlu0 %1879
        %v1881 = vmul.f32 %v1875, %v1875
        %v1882 = vsel %vm773, %v1881, 0.0
        %1883 = vadd.xlane.f32.xlu0 %v1882
        %v1884 = vpop.xlane.xlu0 %1883
        %v1885 = vmul.f32 %v1880, 0.03125
        %v1886 = vmul.f32 %v1884, 0.03125
        %v1887 = vmul.f32 %v1885, %v1885
        %v1888 = vsub.f32 %v1886, %v1887
        %v1889 = vsub.f32 %v1875, %v1885
        %v1890 = vadd.f32 %v1888, 1e-12
        %v1891 = vrsqrt.pop %v1890
        %v1892 = vmul.f32 %v1889, %v1891
        %v1894 = vlaneseq
        %v1895 = vshrl.u32 %v1894, 7
        %v1896 = vsub.s32 0, %v1895
        %v1897 = vrot.slane %v1876, %v1896
        %v1899 = vmul.f32 %v1892, %v1897
        %v1901 = vlaneseq
        %v1902 = vshrl.u32 %v1901, 7
        %v1903 = vsub.s32 0, %v1902
        %v1904 = vrot.slane %v1877, %v1903
        %v1906 = vadd.f32 %v1899, %v1904
        %s1907 = scalar_lea.vmem %s6, 32
        %v1908 = vld [vmem:[%s1907] sm:$0xff]
        %v1909 = vld [vmem:[%s1907 + $0x8] sm:$0xff]
        %v1910 = vld [vmem:[%s1907 + $0x10] sm:$0xff]
        %v1911 = vld [vmem:[%s1907 + $0x18] sm:$0xff]
        %s1912 = scalar_lea.vmem %s7, 1
        %v1913 = vld [vmem:[%s1912] sm:$0x1]
        %v1915 = vlaneseq
        %v1916 = vshrl.u32 %v1915, 7
        %v1917 = vsub.s32 0, %v1916
        %v1918 = vrot.slane %v1913, %v1917
        %v1921 = vsel %vm773, %v1906, 0
        %1923 = vmatprep.subr.mxu0 0.0
        %1924 = vmatpush1.msra.mxu0 %v1908
        %1925 = vmatprep.subr.mxu0 0.0
        %1926 = vmatpush1.msra.mxu0 %v1909
        %1927 = vmatprep.subr.mxu0 0.0
        %1928 = vmatpush1.msra.mxu0 %v1910
        %1929 = vmatprep.subr.mxu0 0.0
        %1930 = vmatpush1.msra.mxu0 %v1911
        %1931 = vmatprep.subr.mxu0 0.0
        %1932 = vmatpush1.msra.mxu0 0.0
        %1933 = vmatprep.subr.mxu0 0.0
        %1934 = vmatpush1.msra.mxu0 0.0
        %1935 = vmatprep.subr.mxu0 0.0
        %1936 = vmatpush1.msra.mxu0 0.0
        %1937 = vmatprep.subr.mxu0 0.0
        %1938 = vmatpush1.msra.mxu0 0.0
        %1939 = vmatprep.subr.mxu0 0.0
        %1940 = vmatpush1.msra.mxu0 0.0
        %1941 = vmatprep.subr.mxu0 0.0
        %1942 = vmatpush1.msra.mxu0 0.0
        %1943 = vmatprep.subr.mxu0 0.0
        %1944 = vmatpush1.msra.mxu0 0.0
        %1945 = vmatprep.subr.mxu0 0.0
        %1946 = vmatpush1.msra.mxu0 0.0
        %1947 = vmatprep.subr.mxu0 0.0
        %1948 = vmatpush1.msra.mxu0 0.0
        %1949 = vmatprep.subr.mxu0 0.0
        %1950 = vmatpush1.msra.mxu0 0.0
        %1951 = vmatprep.subr.mxu0 0.0
        %1952 = vmatpush1.msra.mxu0 0.0
        %1953 = vmatprep.subr.mxu0 0.0
        %1954 = vmatpush1.msra.mxu0 0.0
        %1955 = vmatprep.subr.mxu0 0.0
        %1956 = vmatpush1.msra.mxu0 0.0
        %1957 = vmatprep.subr.mxu0 0.0
        %1958 = vmatpush1.msra.mxu0 0.0
        %1959 = vmatprep.subr.mxu0 0.0
        %1960 = vmatpush1.msra.mxu0 0.0
        %1961 = vmatprep.subr.mxu0 0.0
        %1962 = vmatpush1.msra.mxu0 0.0
        %1963 = vmatprep.subr.mxu0 0.0
        %1964 = vmatpush1.msra.mxu0 0.0
        %1965 = vmatprep.subr.mxu0 0.0
        %1966 = vmatpush1.msra.mxu0 0.0
        %1967 = vmatprep.subr.mxu0 0.0
        %1968 = vmatpush1.msra.mxu0 0.0
        %1969 = vmatprep.subr.mxu0 0.0
        %1970 = vmatpush1.msra.mxu0 0.0
        %1971 = vmatprep.subr.mxu0 0.0
        %1972 = vmatpush1.msra.mxu0 0.0
        %1973 = vmatprep.subr.mxu0 0.0
        %1974 = vmatpush1.msra.mxu0 0.0
        %1975 = vmatprep.subr.mxu0 0.0
        %1976 = vmatpush1.msra.mxu0 0.0
        %1977 = vmatprep.subr.mxu0 0.0
        %1978 = vmatpush1.msra.mxu0 0.0
        %1979 = vmatprep.subr.mxu0 0.0
        %1980 = vmatpush1.msra.mxu0 0.0
        %1981 = vmatprep.subr.mxu0 0.0
        %1982 = vmatpush1.msra.mxu0 0.0
        %1983 = vmatprep.subr.mxu0 0.0
        %1984 = vmatpush1.msra.mxu0 0.0
        %1985 = vmatprep.subr.mxu0 0.0
        %1986 = vmatpush1.msra.mxu0 0.0
        %1987 = vmatprep.mubr.f32.mxu0 0.0
        %1988 = vmatmul.mubr.f32.gmra.mrb[0].mxu0 %v1921
        %v1989 = vpop.f32.mrb[0].mxu0
        %v1990 = vadd.f32 %v1918, %v1989
        %v1991 = vpop.f32.mrb[0].mxu0
        %1992 = vdwg.mxu0
        %v1993 = vmul.f32 %v1990, 0.35355338
        %1995 = vrot.lane.b32.xlu0 %v1990, 96
        %v1996 = vpop.permute.xlu0 %1995
        %v1998 = vsel %vm900, %v1993, 0
        %v2000 = vsel %vm900, %v1996, 0
        %2002 = vmatprep.subr.mxu0 0.0
        %2003 = vmatpush1.xpose.msra.mxu0 %v2000
        %2004 = vmatprep.subr.mxu0 0.0
        %2005 = vmatpush1.xpose.msra.mxu0 0.0
        %2006 = vmatprep.subr.mxu0 0.0
        %2007 = vmatpush1.xpose.msra.mxu0 0.0
        %2008 = vmatprep.subr.mxu0 0.0
        %2009 = vmatpush1.xpose.msra.mxu0 0.0
        %2010 = vmatprep.subr.mxu0 0.0
        %2011 = vmatpush1.xpose.msra.mxu0 0.0
        %2012 = vmatprep.subr.mxu0 0.0
        %2013 = vmatpush1.xpose.msra.mxu0 0.0
        %2014 = vmatprep.subr.mxu0 0.0
        %2015 = vmatpush1.xpose.msra.mxu0 0.0
        %2016 = vmatprep.subr.mxu0 0.0
        %2017 = vmatpush1.xpose.msra.mxu0 0.0
        %2018 = vmatprep.subr.mxu0 0.0
        %2019 = vmatpush1.xpose.msra.mxu0 0.0
        %2020 = vmatprep.subr.mxu0 0.0
        %2021 = vmatpush1.xpose.msra.mxu0 0.0
        %2022 = vmatprep.subr.mxu0 0.0
        %2023 = vmatpush1.xpose.msra.mxu0 0.0
        %2024 = vmatprep.subr.mxu0 0.0
        %2025 = vmatpush1.xpose.msra.mxu0 0.0
        %2026 = vmatprep.subr.mxu0 0.0
        %2027 = vmatpush1.xpose.msra.mxu0 0.0
        %2028 = vmatprep.subr.mxu0 0.0
        %2029 = vmatpush1.xpose.msra.mxu0 0.0
        %2030 = vmatprep.subr.mxu0 0.0
        %2031 = vmatpush1.xpose.msra.mxu0 0.0
        %2032 = vmatprep.subr.mxu0 0.0
        %2033 = vmatpush1.xpose.msra.mxu0 0.0
        %2034 = vmatprep.subr.mxu0 0.0
        %2035 = vmatpush1.xpose.msra.mxu0 0.0
        %2036 = vmatprep.subr.mxu0 0.0
        %2037 = vmatpush1.xpose.msra.mxu0 0.0
        %2038 = vmatprep.subr.mxu0 0.0
        %2039 = vmatpush1.xpose.msra.mxu0 0.0
        %2040 = vmatprep.subr.mxu0 0.0
        %2041 = vmatpush1.xpose.msra.mxu0 0.0
        %2042 = vmatprep.subr.mxu0 0.0
        %2043 = vmatpush1.xpose.msra.mxu0 0.0
        %2044 = vmatprep.subr.mxu0 0.0
        %2045 = vmatpush1.xpose.msra.mxu0 0.0
        %2046 = vmatprep.subr.mxu0 0.0
        %2047 = vmatpush1.xpose.msra.mxu0 0.0
        %2048 = vmatprep.subr.mxu0 0.0
        %2049 = vmatpush1.xpose.msra.mxu0 0.0
        %2050 = vmatprep.subr.mxu0 0.0
        %2051 = vmatpush1.xpose.msra.mxu0 0.0
        %2052 = vmatprep.subr.mxu0 0.0
        %2053 = vmatpush1.xpose.msra.mxu0 0.0
        %2054 = vmatprep.subr.mxu0 0.0
        %2055 = vmatpush1.xpose.msra.mxu0 0.0
        %2056 = vmatprep.subr.mxu0 0.0
        %2057 = vmatpush1.xpose.msra.mxu0 0.0
        %2058 = vmatprep.subr.mxu0 0.0
        %2059 = vmatpush1.xpose.msra.mxu0 0.0
        %2060 = vmatprep.subr.mxu0 0.0
        %2061 = vmatpush1.xpose.msra.mxu0 0.0
        %2062 = vmatprep.subr.mxu0 0.0
        %2063 = vmatpush1.xpose.msra.mxu0 0.0
        %2064 = vmatprep.subr.mxu0 0.0
        %2065 = vmatpush1.xpose.msra.mxu0 0.0
        %2066 = vmatprep.mubr.f32.mxu0 0.0
        %2067 = vmatmul.mubr.f32.gmra.mrb[0].mxu0 %v1998
        %v2068 = vpop.f32.mrb[0].mxu0
        %v2069 = vadd.f32 %v895, %v2068
        %v2070 = vpop.f32.mrb[0].mxu0
        %2071 = vdwg.mxu0
        %v2072 = vsel %vm900, %v2069, -inf
        %2073 = vmax.xlane.f32.xlu0 %v2072
        %v2074 = vpop.xlane.xlu0 %2073
        %v2075 = vsub.f32 %v2069, %v2074
        %v2076 = vmul.f32 %v2075, 1.442695
        %v2077 = vpow.pop %v2076
        %v2078 = vsel %vm900, %v2077, 0.0
        %2079 = vadd.xlane.f32.xlu0 %v2078
        %v2080 = vpop.xlane.xlu0 %2079
        %v2081 = vrcp.pop %v2080
        %v2082 = vmul.f32 %v2077, %v2081
        %2083 = vrot.lane.b32.xlu0 %v1990, 64
        %v2084 = vpop.permute.xlu0 %2083
        %v2087 = vsel %vm900, %v2082, 0
        %2089 = vmatprep.subr.mxu0 0.0
        %2090 = vmatpush1.msra.mxu0 %v2084
        %2091 = vmatprep.subr.mxu0 0.0
        %2092 = vmatpush1.msra.mxu0 0.0
        %2093 = vmatprep.subr.mxu0 0.0
        %2094 = vmatpush1.msra.mxu0 0.0
        %2095 = vmatprep.subr.mxu0 0.0
        %2096 = vmatpush1.msra.mxu0 0.0
        %2097 = vmatprep.subr.mxu0 0.0
        %2098 = vmatpush1.msra.mxu0 0.0
        %2099 = vmatprep.subr.mxu0 0.0
        %2100 = vmatpush1.msra.mxu0 0.0
        %2101 = vmatprep.subr.mxu0 0.0
        %2102 = vmatpush1.msra.mxu0 0.0
        %2103 = vmatprep.subr.mxu0 0.0
        %2104 = vmatpush1.msra.mxu0 0.0
        %2105 = vmatprep.subr.mxu0 0.0
        %2106 = vmatpush1.msra.mxu0 0.0
        %2107 = vmatprep.subr.mxu0 0.0
        %2108 = vmatpush1.msra.mxu0 0.0
        %2109 = vmatprep.subr.mxu0 0.0
        %2110 = vmatpush1.msra.mxu0 0.0
        %2111 = vmatprep.subr.mxu0 0.0
        %2112 = vmatpush1.msra.mxu0 0.0
        %2113 = vmatprep.subr.mxu0 0.0
        %2114 = vmatpush1.msra.mxu0 0.0
        %2115 = vmatprep.subr.mxu0 0.0
        %2116 = vmatpush1.msra.mxu0 0.0
        %2117 = vmatprep.subr.mxu0 0.0
        %2118 = vmatpush1.msra.mxu0 0.0
        %2119 = vmatprep.subr.mxu0 0.0
        %2120 = vmatpush1.msra.mxu0 0.0
        %2121 = vmatprep.subr.mxu0 0.0
        %2122 = vmatpush1.msra.mxu0 0.0
        %2123 = vmatprep.subr.mxu0 0.0
        %2124 = vmatpush1.msra.mxu0 0.0
        %2125 = vmatprep.subr.mxu0 0.0
        %2126 = vmatpush1.msra.mxu0 0.0
        %2127 = vmatprep.subr.mxu0 0.0
        %2128 = vmatpush1.msra.mxu0 0.0
        %2129 = vmatprep.subr.mxu0 0.0
        %2130 = vmatpush1.msra.mxu0 0.0
        %2131 = vmatprep.subr.mxu0 0.0
        %2132 = vmatpush1.msra.mxu0 0.0
        %2133 = vmatprep.subr.mxu0 0.0
        %2134 = vmatpush1.msra.mxu0 0.0
        %2135 = vmatprep.subr.mxu0 0.0
        %2136 = vmatpush1.msra.mxu0 0.0
        %2137 = vmatprep.subr.mxu0 0.0
        %2138 = vmatpush1.msra.mxu0 0.0
        %2139 = vmatprep.subr.mxu0 0.0
        %2140 = vmatpush1.msra.mxu0 0.0
        %2141 = vmatprep.subr.mxu0 0.0
        %2142 = vmatpush1.msra.mxu0 0.0
        %2143 = vmatprep.subr.mxu0 0.0
        %2144 = vmatpush1.msra.mxu0 0.0
        %2145 = vmatprep.subr.mxu0 0.0
        %2146 = vmatpush1.msra.mxu0 0.0
        %2147 = vmatprep.subr.mxu0 0.0
        %2148 = vmatpush1.msra.mxu0 0.0
        %2149 = vmatprep.subr.mxu0 0.0
        %2150 = vmatpush1.msra.mxu0 0.0
        %2151 = vmatprep.subr.mxu0 0.0
        %2152 = vmatpush1.msra.mxu0 0.0
        %2153 = vmatprep.mubr.f32.mxu0 0.0
        %2154 = vmatmul.mubr.f32.gmra.mrb[0].mxu0 %v2087
        %v2155 = vpop.f32.mrb[0].mxu0
        %v2156 = vadd.f32 0.0, %v2155
        %v2157 = vpop.f32.mrb[0].mxu0
        %2158 = vdwg.mxu0
        %2159 = vst.msk [vmem:[#allocation2] sm:$0xff] %vm900, %v2156
        %2160 = vrot.lane.b32.xlu0 %v1993, 120
        %v2161 = vpop.permute.xlu0 %2160
        %2162 = vrot.lane.b32.xlu0 %v1990, 88
        %v2163 = vpop.permute.xlu0 %2162
        %v2164 = vsel %vm900, %v2161, 0
        %v2166 = vsel %vm900, %v2163, 0
        %2168 = vmatprep.subr.mxu0 0.0
        %2169 = vmatpush1.xpose.msra.mxu0 %v2166
        %2170 = vmatprep.subr.mxu0 0.0
        %2171 = vmatpush1.xpose.msra.mxu0 0.0
        %2172 = vmatprep.subr.mxu0 0.0
        %2173 = vmatpush1.xpose.msra.mxu0 0.0
        %2174 = vmatprep.subr.mxu0 0.0
        %2175 = vmatpush1.xpose.msra.mxu0 0.0
        %2176 = vmatprep.subr.mxu0 0.0
        %2177 = vmatpush1.xpose.msra.mxu0 0.0
        %2178 = vmatprep.subr.mxu0 0.0
        %2179 = vmatpush1.xpose.msra.mxu0 0.0
        %2180 = vmatprep.subr.mxu0 0.0
        %2181 = vmatpush1.xpose.msra.mxu0 0.0
        %2182 = vmatprep.subr.mxu0 0.0
        %2183 = vmatpush1.xpose.msra.mxu0 0.0
        %2184 = vmatprep.subr.mxu0 0.0
        %2185 = vmatpush1.xpose.msra.mxu0 0.0
        %2186 = vmatprep.subr.mxu0 0.0
        %2187 = vmatpush1.xpose.msra.mxu0 0.0
        %2188 = vmatprep.subr.mxu0 0.0
        %2189 = vmatpush1.xpose.msra.mxu0 0.0
        %2190 = vmatprep.subr.mxu0 0.0
        %2191 = vmatpush1.xpose.msra.mxu0 0.0
        %2192 = vmatprep.subr.mxu0 0.0
        %2193 = vmatpush1.xpose.msra.mxu0 0.0
        %2194 = vmatprep.subr.mxu0 0.0
        %2195 = vmatpush1.xpose.msra.mxu0 0.0
        %2196 = vmatprep.subr.mxu0 0.0
        %2197 = vmatpush1.xpose.msra.mxu0 0.0
        %2198 = vmatprep.subr.mxu0 0.0
        %2199 = vmatpush1.xpose.msra.mxu0 0.0
        %2200 = vmatprep.subr.mxu0 0.0
        %2201 = vmatpush1.xpose.msra.mxu0 0.0
        %2202 = vmatprep.subr.mxu0 0.0
        %2203 = vmatpush1.xpose.msra.mxu0 0.0
        %2204 = vmatprep.subr.mxu0 0.0
        %2205 = vmatpush1.xpose.msra.mxu0 0.0
        %2206 = vmatprep.subr.mxu0 0.0
        %2207 = vmatpush1.xpose.msra.mxu0 0.0
        %2208 = vmatprep.subr.mxu0 0.0
        %2209 = vmatpush1.xpose.msra.mxu0 0.0
        %2210 = vmatprep.subr.mxu0 0.0
        %2211 = vmatpush1.xpose.msra.mxu0 0.0
        %2212 = vmatprep.subr.mxu0 0.0
        %2213 = vmatpush1.xpose.msra.mxu0 0.0
        %2214 = vmatprep.subr.mxu0 0.0
        %2215 = vmatpush1.xpose.msra.mxu0 0.0
        %2216 = vmatprep.subr.mxu0 0.0
        %2217 = vmatpush1.xpose.msra.mxu0 0.0
        %2218 = vmatprep.subr.mxu0 0.0
        %2219 = vmatpush1.xpose.msra.mxu0 0.0
        %2220 = vmatprep.subr.mxu0 0.0
        %2221 = vmatpush1.xpose.msra.mxu0 0.0
        %2222 = vmatprep.subr.mxu0 0.0
        %2223 = vmatpush1.xpose.msra.mxu0 0.0
        %2224 = vmatprep.subr.mxu0 0.0
        %2225 = vmatpush1.xpose.msra.mxu0 0.0
        %2226 = vmatprep.subr.mxu0 0.0
        %2227 = vmatpush1.xpose.msra.mxu0 0.0
        %2228 = vmatprep.subr.mxu0 0.0
        %2229 = vmatpush1.xpose.msra.mxu0 0.0
        %2230 = vmatprep.subr.mxu0 0.0
        %2231 = vmatpush1.xpose.msra.mxu0 0.0
        %2232 = vmatprep.mubr.f32.mxu0 0.0
        %2233 = vmatmul.mubr.f32.gmra.mrb[0].mxu0 %v2164
        %v2234 = vpop.f32.mrb[0].mxu0
        %v2235 = vadd.f32 %v895, %v2234
        %v2236 = vpop.f32.mrb[0].mxu0
        %2237 = vdwg.mxu0
        %v2238 = vsel %vm900, %v2235, -inf
        %2239 = vmax.xlane.f32.xlu0 %v2238
        %v2240 = vpop.xlane.xlu0 %2239
        %v2241 = vsub.f32 %v2235, %v2240
        %v2242 = vmul.f32 %v2241, 1.442695
        %v2243 = vpow.pop %v2242
        %v2244 = vsel %vm900, %v2243, 0.0
        %2245 = vadd.xlane.f32.xlu0 %v2244
        %v2246 = vpop.xlane.xlu0 %2245
        %v2247 = vrcp.pop %v2246
        %v2248 = vmul.f32 %v2243, %v2247
        %2249 = vrot.lane.b32.xlu0 %v1990, 56
        %v2250 = vpop.permute.xlu0 %2249
        %v2253 = vsel %vm900, %v2248, 0
        %2255 = vmatprep.subr.mxu0 0.0
        %2256 = vmatpush1.msra.mxu0 %v2250
        %2257 = vmatprep.subr.mxu0 0.0
        %2258 = vmatpush1.msra.mxu0 0.0
        %2259 = vmatprep.subr.mxu0 0.0
        %2260 = vmatpush1.msra.mxu0 0.0
        %2261 = vmatprep.subr.mxu0 0.0
        %2262 = vmatpush1.msra.mxu0 0.0
        %2263 = vmatprep.subr.mxu0 0.0
        %2264 = vmatpush1.msra.mxu0 0.0
        %2265 = vmatprep.subr.mxu0 0.0
        %2266 = vmatpush1.msra.mxu0 0.0
        %2267 = vmatprep.subr.mxu0 0.0
        %2268 = vmatpush1.msra.mxu0 0.0
        %2269 = vmatprep.subr.mxu0 0.0
        %2270 = vmatpush1.msra.mxu0 0.0
        %2271 = vmatprep.subr.mxu0 0.0
        %2272 = vmatpush1.msra.mxu0 0.0
        %2273 = vmatprep.subr.mxu0 0.0
        %2274 = vmatpush1.msra.mxu0 0.0
        %2275 = vmatprep.subr.mxu0 0.0
        %2276 = vmatpush1.msra.mxu0 0.0
        %2277 = vmatprep.subr.mxu0 0.0
        %2278 = vmatpush1.msra.mxu0 0.0
        %2279 = vmatprep.subr.mxu0 0.0
        %2280 = vmatpush1.msra.mxu0 0.0
        %2281 = vmatprep.subr.mxu0 0.0
        %2282 = vmatpush1.msra.mxu0 0.0
        %2283 = vmatprep.subr.mxu0 0.0
        %2284 = vmatpush1.msra.mxu0 0.0
        %2285 = vmatprep.subr.mxu0 0.0
        %2286 = vmatpush1.msra.mxu0 0.0
        %2287 = vmatprep.subr.mxu0 0.0
        %2288 = vmatpush1.msra.mxu0 0.0
        %2289 = vmatprep.subr.mxu0 0.0
        %2290 = vmatpush1.msra.mxu0 0.0
        %2291 = vmatprep.subr.mxu0 0.0
        %2292 = vmatpush1.msra.mxu0 0.0
        %2293 = vmatprep.subr.mxu0 0.0
        %2294 = vmatpush1.msra.mxu0 0.0
        %2295 = vmatprep.subr.mxu0 0.0
        %2296 = vmatpush1.msra.mxu0 0.0
        %2297 = vmatprep.subr.mxu0 0.0
        %2298 = vmatpush1.msra.mxu0 0.0
        %2299 = vmatprep.subr.mxu0 0.0
        %2300 = vmatpush1.msra.mxu0 0.0
        %2301 = vmatprep.subr.mxu0 0.0
        %2302 = vmatpush1.msra.mxu0 0.0
        %2303 = vmatprep.subr.mxu0 0.0
        %2304 = vmatpush1.msra.mxu0 0.0
        %2305 = vmatprep.subr.mxu0 0.0
        %2306 = vmatpush1.msra.mxu0 0.0
        %2307 = vmatprep.subr.mxu0 0.0
        %2308 = vmatpush1.msra.mxu0 0.0
        %2309 = vmatprep.subr.mxu0 0.0
        %2310 = vmatpush1.msra.mxu0 0.0
        %2311 = vmatprep.subr.mxu0 0.0
        %2312 = vmatpush1.msra.mxu0 0.0
        %2313 = vmatprep.subr.mxu0 0.0
        %2314 = vmatpush1.msra.mxu0 0.0
        %2315 = vmatprep.subr.mxu0 0.0
        %2316 = vmatpush1.msra.mxu0 0.0
        %2317 = vmatprep.subr.mxu0 0.0
        %2318 = vmatpush1.msra.mxu0 0.0
        %2319 = vmatprep.mubr.f32.mxu0 0.0
        %2320 = vmatmul.mubr.f32.gmra.mrb[0].mxu0 %v2253
        %v2321 = vpop.f32.mrb[0].mxu0
        %v2322 = vadd.f32 0.0, %v2321
        %v2323 = vpop.f32.mrb[0].mxu0
        %2324 = vdwg.mxu0
        %2326 = vrot.lane.b32.xlu0 %v2322, 8
        %v2327 = vpop.permute.xlu0 %2326
        %2329 = vst.msk [vmem:[#allocation2] sm:$0xff] %vm1233, %v2327
        %2330 = vrot.lane.b32.xlu0 %v1993, 112
        %v2331 = vpop.permute.xlu0 %2330
        %2332 = vrot.lane.b32.xlu0 %v1990, 80
        %v2333 = vpop.permute.xlu0 %2332
        %v2334 = vsel %vm900, %v2331, 0
        %v2336 = vsel %vm900, %v2333, 0
        %2338 = vmatprep.subr.mxu0 0.0
        %2339 = vmatpush1.xpose.msra.mxu0 %v2336
        %2340 = vmatprep.subr.mxu0 0.0
        %2341 = vmatpush1.xpose.msra.mxu0 0.0
        %2342 = vmatprep.subr.mxu0 0.0
        %2343 = vmatpush1.xpose.msra.mxu0 0.0
        %2344 = vmatprep.subr.mxu0 0.0
        %2345 = vmatpush1.xpose.msra.mxu0 0.0
        %2346 = vmatprep.subr.mxu0 0.0
        %2347 = vmatpush1.xpose.msra.mxu0 0.0
        %2348 = vmatprep.subr.mxu0 0.0
        %2349 = vmatpush1.xpose.msra.mxu0 0.0
        %2350 = vmatprep.subr.mxu0 0.0
        %2351 = vmatpush1.xpose.msra.mxu0 0.0
        %2352 = vmatprep.subr.mxu0 0.0
        %2353 = vmatpush1.xpose.msra.mxu0 0.0
        %2354 = vmatprep.subr.mxu0 0.0
        %2355 = vmatpush1.xpose.msra.mxu0 0.0
        %2356 = vmatprep.subr.mxu0 0.0
        %2357 = vmatpush1.xpose.msra.mxu0 0.0
        %2358 = vmatprep.subr.mxu0 0.0
        %2359 = vmatpush1.xpose.msra.mxu0 0.0
        %2360 = vmatprep.subr.mxu0 0.0
        %2361 = vmatpush1.xpose.msra.mxu0 0.0
        %2362 = vmatprep.subr.mxu0 0.0
        %2363 = vmatpush1.xpose.msra.mxu0 0.0
        %2364 = vmatprep.subr.mxu0 0.0
        %2365 = vmatpush1.xpose.msra.mxu0 0.0
        %2366 = vmatprep.subr.mxu0 0.0
        %2367 = vmatpush1.xpose.msra.mxu0 0.0
        %2368 = vmatprep.subr.mxu0 0.0
        %2369 = vmatpush1.xpose.msra.mxu0 0.0
        %2370 = vmatprep.subr.mxu0 0.0
        %2371 = vmatpush1.xpose.msra.mxu0 0.0
        %2372 = vmatprep.subr.mxu0 0.0
        %2373 = vmatpush1.xpose.msra.mxu0 0.0
        %2374 = vmatprep.subr.mxu0 0.0
        %2375 = vmatpush1.xpose.msra.mxu0 0.0
        %2376 = vmatprep.subr.mxu0 0.0
        %2377 = vmatpush1.xpose.msra.mxu0 0.0
        %2378 = vmatprep.subr.mxu0 0.0
        %2379 = vmatpush1.xpose.msra.mxu0 0.0
        %2380 = vmatprep.subr.mxu0 0.0
        %2381 = vmatpush1.xpose.msra.mxu0 0.0
        %2382 = vmatprep.subr.mxu0 0.0
        %2383 = vmatpush1.xpose.msra.mxu0 0.0
        %2384 = vmatprep.subr.mxu0 0.0
        %2385 = vmatpush1.xpose.msra.mxu0 0.0
        %2386 = vmatprep.subr.mxu0 0.0
        %2387 = vmatpush1.xpose.msra.mxu0 0.0
        %2388 = vmatprep.subr.mxu0 0.0
        %2389 = vmatpush1.xpose.msra.mxu0 0.0
        %2390 = vmatprep.subr.mxu0 0.0
        %2391 = vmatpush1.xpose.msra.mxu0 0.0
        %2392 = vmatprep.subr.mxu0 0.0
        %2393 = vmatpush1.xpose.msra.mxu0 0.0
        %2394 = vmatprep.subr.mxu0 0.0
        %2395 = vmatpush1.xpose.msra.mxu0 0.0
        %2396 = vmatprep.subr.mxu0 0.0
        %2397 = vmatpush1.xpose.msra.mxu0 0.0
        %2398 = vmatprep.subr.mxu0 0.0
        %2399 = vmatpush1.xpose.msra.mxu0 0.0
        %2400 = vmatprep.subr.mxu0 0.0
        %2401 = vmatpush1.xpose.msra.mxu0 0.0
        %2402 = vmatprep.mubr.f32.mxu0 0.0
        %2403 = vmatmul.mubr.f32.gmra.mrb[0].mxu0 %v2334
        %v2404 = vpop.f32.mrb[0].mxu0
        %v2405 = vadd.f32 %v895, %v2404
        %v2406 = vpop.f32.mrb[0].mxu0
        %2407 = vdwg.mxu0
        %v2408 = vsel %vm900, %v2405, -inf
        %2409 = vmax.xlane.f32.xlu0 %v2408
        %v2410 = vpop.xlane.xlu0 %2409
        %v2411 = vsub.f32 %v2405, %v2410
        %v2412 = vmul.f32 %v2411, 1.442695
        %v2413 = vpow.pop %v2412
        %v2414 = vsel %vm900, %v2413, 0.0
        %2415 = vadd.xlane.f32.xlu0 %v2414
        %v2416 = vpop.xlane.xlu0 %2415
        %v2417 = vrcp.pop %v2416
        %v2418 = vmul.f32 %v2413, %v2417
        %2419 = vrot.lane.b32.xlu0 %v1990, 48
        %v2420 = vpop.permute.xlu0 %2419
        %v2423 = vsel %vm900, %v2418, 0
        %2425 = vmatprep.subr.mxu0 0.0
        %2426 = vmatpush1.msra.mxu0 %v2420
        %2427 = vmatprep.subr.mxu0 0.0
        %2428 = vmatpush1.msra.mxu0 0.0
        %2429 = vmatprep.subr.mxu0 0.0
        %2430 = vmatpush1.msra.mxu0 0.0
        %2431 = vmatprep.subr.mxu0 0.0
        %2432 = vmatpush1.msra.mxu0 0.0
        %2433 = vmatprep.subr.mxu0 0.0
        %2434 = vmatpush1.msra.mxu0 0.0
        %2435 = vmatprep.subr.mxu0 0.0
        %2436 = vmatpush1.msra.mxu0 0.0
        %2437 = vmatprep.subr.mxu0 0.0
        %2438 = vmatpush1.msra.mxu0 0.0
        %2439 = vmatprep.subr.mxu0 0.0
        %2440 = vmatpush1.msra.mxu0 0.0
        %2441 = vmatprep.subr.mxu0 0.0
        %2442 = vmatpush1.msra.mxu0 0.0
        %2443 = vmatprep.subr.mxu0 0.0
        %2444 = vmatpush1.msra.mxu0 0.0
        %2445 = vmatprep.subr.mxu0 0.0
        %2446 = vmatpush1.msra.mxu0 0.0
        %2447 = vmatprep.subr.mxu0 0.0
        %2448 = vmatpush1.msra.mxu0 0.0
        %2449 = vmatprep.subr.mxu0 0.0
        %2450 = vmatpush1.msra.mxu0 0.0
        %2451 = vmatprep.subr.mxu0 0.0
        %2452 = vmatpush1.msra.mxu0 0.0
        %2453 = vmatprep.subr.mxu0 0.0
        %2454 = vmatpush1.msra.mxu0 0.0
        %2455 = vmatprep.subr.mxu0 0.0
        %2456 = vmatpush1.msra.mxu0 0.0
        %2457 = vmatprep.subr.mxu0 0.0
        %2458 = vmatpush1.msra.mxu0 0.0
        %2459 = vmatprep.subr.mxu0 0.0
        %2460 = vmatpush1.msra.mxu0 0.0
        %2461 = vmatprep.subr.mxu0 0.0
        %2462 = vmatpush1.msra.mxu0 0.0
        %2463 = vmatprep.subr.mxu0 0.0
        %2464 = vmatpush1.msra.mxu0 0.0
        %2465 = vmatprep.subr.mxu0 0.0
        %2466 = vmatpush1.msra.mxu0 0.0
        %2467 = vmatprep.subr.mxu0 0.0
        %2468 = vmatpush1.msra.mxu0 0.0
        %2469 = vmatprep.subr.mxu0 0.0
        %2470 = vmatpush1.msra.mxu0 0.0
        %2471 = vmatprep.subr.mxu0 0.0
        %2472 = vmatpush1.msra.mxu0 0.0
        %2473 = vmatprep.subr.mxu0 0.0
        %2474 = vmatpush1.msra.mxu0 0.0
        %2475 = vmatprep.subr.mxu0 0.0
        %2476 = vmatpush1.msra.mxu0 0.0
        %2477 = vmatprep.subr.mxu0 0.0
        %2478 = vmatpush1.msra.mxu0 0.0
        %2479 = vmatprep.subr.mxu0 0.0
        %2480 = vmatpush1.msra.mxu0 0.0
        %2481 = vmatprep.subr.mxu0 0.0
        %2482 = vmatpush1.msra.mxu0 0.0
        %2483 = vmatprep.subr.mxu0 0.0
        %2484 = vmatpush1.msra.mxu0 0.0
        %2485 = vmatprep.subr.mxu0 0.0
        %2486 = vmatpush1.msra.mxu0 0.0
        %2487 = vmatprep.subr.mxu0 0.0
        %2488 = vmatpush1.msra.mxu0 0.0
        %2489 = vmatprep.mubr.f32.mxu0 0.0
        %2490 = vmatmul.mubr.f32.gmra.mrb[0].mxu0 %v2423
        %v2491 = vpop.f32.mrb[0].mxu0
        %v2492 = vadd.f32 0.0, %v2491
        %v2493 = vpop.f32.mrb[0].mxu0
        %2494 = vdwg.mxu0
        %2496 = vrot.lane.b32.xlu0 %v2492, 16
        %v2497 = vpop.permute.xlu0 %2496
        %2499 = vst.msk [vmem:[#allocation2] sm:$0xff] %vm1404, %v2497
        %2500 = vrot.lane.b32.xlu0 %v1993, 104
        %v2501 = vpop.permute.xlu0 %2500
        %2502 = vrot.lane.b32.xlu0 %v1990, 72
        %v2503 = vpop.permute.xlu0 %2502
        %v2504 = vsel %vm900, %v2501, 0
        %v2506 = vsel %vm900, %v2503, 0
        %2508 = vmatprep.subr.mxu0 0.0
        %2509 = vmatpush1.xpose.msra.mxu0 %v2506
        %2510 = vmatprep.subr.mxu0 0.0
        %2511 = vmatpush1.xpose.msra.mxu0 0.0
        %2512 = vmatprep.subr.mxu0 0.0
        %2513 = vmatpush1.xpose.msra.mxu0 0.0
        %2514 = vmatprep.subr.mxu0 0.0
        %2515 = vmatpush1.xpose.msra.mxu0 0.0
        %2516 = vmatprep.subr.mxu0 0.0
        %2517 = vmatpush1.xpose.msra.mxu0 0.0
        %2518 = vmatprep.subr.mxu0 0.0
        %2519 = vmatpush1.xpose.msra.mxu0 0.0
        %2520 = vmatprep.subr.mxu0 0.0
        %2521 = vmatpush1.xpose.msra.mxu0 0.0
        %2522 = vmatprep.subr.mxu0 0.0
        %2523 = vmatpush1.xpose.msra.mxu0 0.0
        %2524 = vmatprep.subr.mxu0 0.0
        %2525 = vmatpush1.xpose.msra.mxu0 0.0
        %2526 = vmatprep.subr.mxu0 0.0
        %2527 = vmatpush1.xpose.msra.mxu0 0.0
        %2528 = vmatprep.subr.mxu0 0.0
        %2529 = vmatpush1.xpose.msra.mxu0 0.0
        %2530 = vmatprep.subr.mxu0 0.0
        %2531 = vmatpush1.xpose.msra.mxu0 0.0
        %2532 = vmatprep.subr.mxu0 0.0
        %2533 = vmatpush1.xpose.msra.mxu0 0.0
        %2534 = vmatprep.subr.mxu0 0.0
        %2535 = vmatpush1.xpose.msra.mxu0 0.0
        %2536 = vmatprep.subr.mxu0 0.0
        %2537 = vmatpush1.xpose.msra.mxu0 0.0
        %2538 = vmatprep.subr.mxu0 0.0
        %2539 = vmatpush1.xpose.msra.mxu0 0.0
        %2540 = vmatprep.subr.mxu0 0.0
        %2541 = vmatpush1.xpose.msra.mxu0 0.0
        %2542 = vmatprep.subr.mxu0 0.0
        %2543 = vmatpush1.xpose.msra.mxu0 0.0
        %2544 = vmatprep.subr.mxu0 0.0
        %2545 = vmatpush1.xpose.msra.mxu0 0.0
        %2546 = vmatprep.subr.mxu0 0.0
        %2547 = vmatpush1.xpose.msra.mxu0 0.0
        %2548 = vmatprep.subr.mxu0 0.0
        %2549 = vmatpush1.xpose.msra.mxu0 0.0
        %2550 = vmatprep.subr.mxu0 0.0
        %2551 = vmatpush1.xpose.msra.mxu0 0.0
        %2552 = vmatprep.subr.mxu0 0.0
        %2553 = vmatpush1.xpose.msra.mxu0 0.0
        %2554 = vmatprep.subr.mxu0 0.0
        %2555 = vmatpush1.xpose.msra.mxu0 0.0
        %2556 = vmatprep.subr.mxu0 0.0
        %2557 = vmatpush1.xpose.msra.mxu0 0.0
        %2558 = vmatprep.subr.mxu0 0.0
        %2559 = vmatpush1.xpose.msra.mxu0 0.0
        %2560 = vmatprep.subr.mxu0 0.0
        %2561 = vmatpush1.xpose.msra.mxu0 0.0
        %2562 = vmatprep.subr.mxu0 0.0
        %2563 = vmatpush1.xpose.msra.mxu0 0.0
        %2564 = vmatprep.subr.mxu0 0.0
        %2565 = vmatpush1.xpose.msra.mxu0 0.0
        %2566 = vmatprep.subr.mxu0 0.0
        %2567 = vmatpush1.xpose.msra.mxu0 0.0
        %2568 = vmatprep.subr.mxu0 0.0
        %2569 = vmatpush1.xpose.msra.mxu0 0.0
        %2570 = vmatprep.subr.mxu0 0.0
        %2571 = vmatpush1.xpose.msra.mxu0 0.0
        %2572 = vmatprep.mubr.f32.mxu0 0.0
        %2573 = vmatmul.mubr.f32.gmra.mrb[0].mxu0 %v2504
        %v2574 = vpop.f32.mrb[0].mxu0
        %v2575 = vadd.f32 %v895, %v2574
        %v2576 = vpop.f32.mrb[0].mxu0
        %2577 = vdwg.mxu0
        %v2578 = vsel %vm900, %v2575, -inf
        %2579 = vmax.xlane.f32.xlu0 %v2578
        %v2580 = vpop.xlane.xlu0 %2579
        %v2581 = vsub.f32 %v2575, %v2580
        %v2582 = vmul.f32 %v2581, 1.442695
        %v2583 = vpow.pop %v2582
        %v2584 = vsel %vm900, %v2583, 0.0
        %2585 = vadd.xlane.f32.xlu0 %v2584
        %v2586 = vpop.xlane.xlu0 %2585
        %v2587 = vrcp.pop %v2586
        %v2588 = vmul.f32 %v2583, %v2587
        %2589 = vrot.lane.b32.xlu0 %v1990, 40
        %v2590 = vpop.permute.xlu0 %2589
        %v2593 = vsel %vm900, %v2588, 0
        %2595 = vmatprep.subr.mxu0 0.0
        %2596 = vmatpush1.msra.mxu0 %v2590
        %2597 = vmatprep.subr.mxu0 0.0
        %2598 = vmatpush1.msra.mxu0 0.0
        %2599 = vmatprep.subr.mxu0 0.0
        %2600 = vmatpush1.msra.mxu0 0.0
        %2601 = vmatprep.subr.mxu0 0.0
        %2602 = vmatpush1.msra.mxu0 0.0
        %2603 = vmatprep.subr.mxu0 0.0
        %2604 = vmatpush1.msra.mxu0 0.0
        %2605 = vmatprep.subr.mxu0 0.0
        %2606 = vmatpush1.msra.mxu0 0.0
        %2607 = vmatprep.subr.mxu0 0.0
        %2608 = vmatpush1.msra.mxu0 0.0
        %2609 = vmatprep.subr.mxu0 0.0
        %2610 = vmatpush1.msra.mxu0 0.0
        %2611 = vmatprep.subr.mxu0 0.0
        %2612 = vmatpush1.msra.mxu0 0.0
        %2613 = vmatprep.subr.mxu0 0.0
        %2614 = vmatpush1.msra.mxu0 0.0
        %2615 = vmatprep.subr.mxu0 0.0
        %2616 = vmatpush1.msra.mxu0 0.0
        %2617 = vmatprep.subr.mxu0 0.0
        %2618 = vmatpush1.msra.mxu0 0.0
        %2619 = vmatprep.subr.mxu0 0.0
        %2620 = vmatpush1.msra.mxu0 0.0
        %2621 = vmatprep.subr.mxu0 0.0
        %2622 = vmatpush1.msra.mxu0 0.0
        %2623 = vmatprep.subr.mxu0 0.0
        %2624 = vmatpush1.msra.mxu0 0.0
        %2625 = vmatprep.subr.mxu0 0.0
        %2626 = vmatpush1.msra.mxu0 0.0
        %2627 = vmatprep.subr.mxu0 0.0
        %2628 = vmatpush1.msra.mxu0 0.0
        %2629 = vmatprep.subr.mxu0 0.0
        %2630 = vmatpush1.msra.mxu0 0.0
        %2631 = vmatprep.subr.mxu0 0.0
        %2632 = vmatpush1.msra.mxu0 0.0
        %2633 = vmatprep.subr.mxu0 0.0
        %2634 = vmatpush1.msra.mxu0 0.0
        %2635 = vmatprep.subr.mxu0 0.0
        %2636 = vmatpush1.msra.mxu0 0.0
        %2637 = vmatprep.subr.mxu0 0.0
        %2638 = vmatpush1.msra.mxu0 0.0
        %2639 = vmatprep.subr.mxu0 0.0
        %2640 = vmatpush1.msra.mxu0 0.0
        %2641 = vmatprep.subr.mxu0 0.0
        %2642 = vmatpush1.msra.mxu0 0.0
        %2643 = vmatprep.subr.mxu0 0.0
        %2644 = vmatpush1.msra.mxu0 0.0
        %2645 = vmatprep.subr.mxu0 0.0
        %2646 = vmatpush1.msra.mxu0 0.0
        %2647 = vmatprep.subr.mxu0 0.0
        %2648 = vmatpush1.msra.mxu0 0.0
        %2649 = vmatprep.subr.mxu0 0.0
        %2650 = vmatpush1.msra.mxu0 0.0
        %2651 = vmatprep.subr.mxu0 0.0
        %2652 = vmatpush1.msra.mxu0 0.0
        %2653 = vmatprep.subr.mxu0 0.0
        %2654 = vmatpush1.msra.mxu0 0.0
        %2655 = vmatprep.subr.mxu0 0.0
        %2656 = vmatpush1.msra.mxu0 0.0
        %2657 = vmatprep.subr.mxu0 0.0
        %2658 = vmatpush1.msra.mxu0 0.0
        %2659 = vmatprep.mubr.f32.mxu0 0.0
        %2660 = vmatmul.mubr.f32.gmra.mrb[0].mxu0 %v2593
        %v2661 = vpop.f32.mrb[0].mxu0
        %v2662 = vadd.f32 0.0, %v2661
        %v2663 = vpop.f32.mrb[0].mxu0
        %2664 = vdwg.mxu0
        %2666 = vrot.lane.b32.xlu0 %v2662, 24
        %v2667 = vpop.permute.xlu0 %2666
        %2669 = vst.msk [vmem:[#allocation2] sm:$0xff] %vm1575, %v2667
        %v2670 = vld [vmem:[#allocation2] sm:$0xff]
        %s2671 = scalar_lea.vmem %s8, 32
        %v2672 = vld [vmem:[%s2671] sm:$0xff]
        %v2673 = vld [vmem:[%s2671 + $0x8] sm:$0xff]
        %v2674 = vld [vmem:[%s2671 + $0x10] sm:$0xff]
        %v2675 = vld [vmem:[%s2671 + $0x18] sm:$0xff]
        %s2676 = scalar_lea.vmem %s9, 1
        %v2677 = vld [vmem:[%s2676] sm:$0x1]
        %v2679 = vlaneseq
        %v2680 = vshrl.u32 %v2679, 7
        %v2681 = vsub.s32 0, %v2680
        %v2682 = vrot.slane %v2677, %v2681
        %v2685 = vsel %vm773, %v2670, 0
        %2687 = vmatprep.subr.mxu0 0.0
        %2688 = vmatpush1.msra.mxu0 %v2672
        %2689 = vmatprep.subr.mxu0 0.0
        %2690 = vmatpush1.msra.mxu0 %v2673
        %2691 = vmatprep.subr.mxu0 0.0
        %2692 = vmatpush1.msra.mxu0 %v2674
        %2693 = vmatprep.subr.mxu0 0.0
        %2694 = vmatpush1.msra.mxu0 %v2675
        %2695 = vmatprep.subr.mxu0 0.0
        %2696 = vmatpush1.msra.mxu0 0.0
        %2697 = vmatprep.subr.mxu0 0.0
        %2698 = vmatpush1.msra.mxu0 0.0
        %2699 = vmatprep.subr.mxu0 0.0
        %2700 = vmatpush1.msra.mxu0 0.0
        %2701 = vmatprep.subr.mxu0 0.0
        %2702 = vmatpush1.msra.mxu0 0.0
        %2703 = vmatprep.subr.mxu0 0.0
        %2704 = vmatpush1.msra.mxu0 0.0
        %2705 = vmatprep.subr.mxu0 0.0
        %2706 = vmatpush1.msra.mxu0 0.0
        %2707 = vmatprep.subr.mxu0 0.0
        %2708 = vmatpush1.msra.mxu0 0.0
        %2709 = vmatprep.subr.mxu0 0.0
        %2710 = vmatpush1.msra.mxu0 0.0
        %2711 = vmatprep.subr.mxu0 0.0
        %2712 = vmatpush1.msra.mxu0 0.0
        %2713 = vmatprep.subr.mxu0 0.0
        %2714 = vmatpush1.msra.mxu0 0.0
        %2715 = vmatprep.subr.mxu0 0.0
        %2716 = vmatpush1.msra.mxu0 0.0
        %2717 = vmatprep.subr.mxu0 0.0
        %2718 = vmatpush1.msra.mxu0 0.0
        %2719 = vmatprep.subr.mxu0 0.0
        %2720 = vmatpush1.msra.mxu0 0.0
        %2721 = vmatprep.subr.mxu0 0.0
        %2722 = vmatpush1.msra.mxu0 0.0
        %2723 = vmatprep.subr.mxu0 0.0
        %2724 = vmatpush1.msra.mxu0 0.0
        %2725 = vmatprep.subr.mxu0 0.0
        %2726 = vmatpush1.msra.mxu0 0.0
        %2727 = vmatprep.subr.mxu0 0.0
        %2728 = vmatpush1.msra.mxu0 0.0
        %2729 = vmatprep.subr.mxu0 0.0
        %2730 = vmatpush1.msra.mxu0 0.0
        %2731 = vmatprep.subr.mxu0 0.0
        %2732 = vmatpush1.msra.mxu0 0.0
        %2733 = vmatprep.subr.mxu0 0.0
        %2734 = vmatpush1.msra.mxu0 0.0
        %2735 = vmatprep.subr.mxu0 0.0
        %2736 = vmatpush1.msra.mxu0 0.0
        %2737 = vmatprep.subr.mxu0 0.0
        %2738 = vmatpush1.msra.mxu0 0.0
        %2739 = vmatprep.subr.mxu0 0.0
        %2740 = vmatpush1.msra.mxu0 0.0
        %2741 = vmatprep.subr.mxu0 0.0
        %2742 = vmatpush1.msra.mxu0 0.0
        %2743 = vmatprep.subr.mxu0 0.0
        %2744 = vmatpush1.msra.mxu0 0.0
        %2745 = vmatprep.subr.mxu0 0.0
        %2746 = vmatpush1.msra.mxu0 0.0
        %2747 = vmatprep.subr.mxu0 0.0
        %2748 = vmatpush1.msra.mxu0 0.0
        %2749 = vmatprep.subr.mxu0 0.0
        %2750 = vmatpush1.msra.mxu0 0.0
        %2751 = vmatprep.mubr.f32.mxu0 0.0
        %2752 = vmatmul.mubr.f32.gmra.mrb[0].mxu0 %v2685
        %v2753 = vpop.f32.mrb[0].mxu0
        %v2754 = vadd.f32 %v2682, %v2753
        %v2755 = vpop.f32.mrb[0].mxu0
        %2756 = vdwg.mxu0
        %v2757 = vadd.f32 %v2754, %v1906
        %s2758 = scalar_lea.vmem %s10, 1
        %v2759 = vld [vmem:[%s2758] sm:$0x1]
        %s2760 = scalar_lea.vmem %s11, 1
        %v2761 = vld [vmem:[%s2760] sm:$0x1]
        %v2762 = vsel %vm773, %v2757, 0.0
        %2763 = vadd.xlane.f32.xlu0 %v2762
        %v2764 = vpop.xlane.xlu0 %2763
        %v2765 = vmul.f32 %v2757, %v2757
        %v2766 = vsel %vm773, %v2765, 0.0
        %2767 = vadd.xlane.f32.xlu0 %v2766
        %v2768 = vpop.xlane.xlu0 %2767
        %v2769 = vmul.f32 %v2764, 0.03125
        %v2770 = vmul.f32 %v2768, 0.03125
        %v2771 = vmul.f32 %v2769, %v2769
        %v2772 = vsub.f32 %v2770, %v2771
        %v2773 = vsub.f32 %v2757, %v2769
        %v2774 = vadd.f32 %v2772, 1e-12
        %v2775 = vrsqrt.pop %v2774
        %v2776 = vmul.f32 %v2773, %v2775
        %v2778 = vlaneseq
        %v2779 = vshrl.u32 %v2778, 7
        %v2780 = vsub.s32 0, %v2779
        %v2781 = vrot.slane %v2759, %v2780
        %v2783 = vmul.f32 %v2776, %v2781
        %v2785 = vlaneseq
        %v2786 = vshrl.u32 %v2785, 7
        %v2787 = vsub.s32 0, %v2786
        %v2788 = vrot.slane %v2761, %v2787
        %v2790 = vadd.f32 %v2783, %v2788
        %s2791 = scalar_lea.vmem %s12, 32
        %v2792 = vld [vmem:[%s2791] sm:$0xff]
        %v2793 = vld [vmem:[%s2791 + $0x8] sm:$0xff]
        %v2794 = vld [vmem:[%s2791 + $0x10] sm:$0xff]
        %v2795 = vld [vmem:[%s2791 + $0x18] sm:$0xff]
        %s2796 = scalar_lea.vmem %s13, 1
        %v2797 = vld [vmem:[%s2796] sm:$0x1]
        %v2799 = vlaneseq
        %v2800 = vshrl.u32 %v2799, 7
        %v2801 = vsub.s32 0, %v2800
        %v2802 = vrot.slane %v2797, %v2801
        %v2805 = vsel %vm773, %v2790, 0
        %2807 = vmatprep.subr.mxu0 0.0
        %2808 = vmatpush1.msra.mxu0 %v2792
        %2809 = vmatprep.subr.mxu0 0.0
        %2810 = vmatpush1.msra.mxu0 %v2793
        %2811 = vmatprep.subr.mxu0 0.0
        %2812 = vmatpush1.msra.mxu0 %v2794
        %2813 = vmatprep.subr.mxu0 0.0
        %2814 = vmatpush1.msra.mxu0 %v2795
        %2815 = vmatprep.subr.mxu0 0.0
        %2816 = vmatpush1.msra.mxu0 0.0
        %2817 = vmatprep.subr.mxu0 0.0
        %2818 = vmatpush1.msra.mxu0 0.0
        %2819 = vmatprep.subr.mxu0 0.0
        %2820 = vmatpush1.msra.mxu0 0.0
        %2821 = vmatprep.subr.mxu0 0.0
        %2822 = vmatpush1.msra.mxu0 0.0
        %2823 = vmatprep.subr.mxu0 0.0
        %2824 = vmatpush1.msra.mxu0 0.0
        %2825 = vmatprep.subr.mxu0 0.0
        %2826 = vmatpush1.msra.mxu0 0.0
        %2827 = vmatprep.subr.mxu0 0.0
        %2828 = vmatpush1.msra.mxu0 0.0
        %2829 = vmatprep.subr.mxu0 0.0
        %2830 = vmatpush1.msra.mxu0 0.0
        %2831 = vmatprep.subr.mxu0 0.0
        %2832 = vmatpush1.msra.mxu0 0.0
        %2833 = vmatprep.subr.mxu0 0.0
        %2834 = vmatpush1.msra.mxu0 0.0
        %2835 = vmatprep.subr.mxu0 0.0
        %2836 = vmatpush1.msra.mxu0 0.0
        %2837 = vmatprep.subr.mxu0 0.0
        %2838 = vmatpush1.msra.mxu0 0.0
        %2839 = vmatprep.subr.mxu0 0.0
        %2840 = vmatpush1.msra.mxu0 0.0
        %2841 = vmatprep.subr.mxu0 0.0
        %2842 = vmatpush1.msra.mxu0 0.0
        %2843 = vmatprep.subr.mxu0 0.0
        %2844 = vmatpush1.msra.mxu0 0.0
        %2845 = vmatprep.subr.mxu0 0.0
        %2846 = vmatpush1.msra.mxu0 0.0
        %2847 = vmatprep.subr.mxu0 0.0
        %2848 = vmatpush1.msra.mxu0 0.0
        %2849 = vmatprep.subr.mxu0 0.0
        %2850 = vmatpush1.msra.mxu0 0.0
        %2851 = vmatprep.subr.mxu0 0.0
        %2852 = vmatpush1.msra.mxu0 0.0
        %2853 = vmatprep.subr.mxu0 0.0
        %2854 = vmatpush1.msra.mxu0 0.0
        %2855 = vmatprep.subr.mxu0 0.0
        %2856 = vmatpush1.msra.mxu0 0.0
        %2857 = vmatprep.subr.mxu0 0.0
        %2858 = vmatpush1.msra.mxu0 0.0
        %2859 = vmatprep.subr.mxu0 0.0
        %2860 = vmatpush1.msra.mxu0 0.0
        %2861 = vmatprep.subr.mxu0 0.0
        %2862 = vmatpush1.msra.mxu0 0.0
        %2863 = vmatprep.subr.mxu0 0.0
        %2864 = vmatpush1.msra.mxu0 0.0
        %2865 = vmatprep.subr.mxu0 0.0
        %2866 = vmatpush1.msra.mxu0 0.0
        %2867 = vmatprep.subr.mxu0 0.0
        %2868 = vmatpush1.msra.mxu0 0.0
        %2869 = vmatprep.subr.mxu0 0.0
        %2870 = vmatpush1.msra.mxu0 0.0
        %2871 = vmatprep.mubr.f32.mxu0 0.0
        %2872 = vmatmul.mubr.f32.gmra.mrb[0].mxu0 %v2805
        %v2873 = vpop.f32.mrb[0].mxu0
        %v2874 = vadd.f32 %v2802, %v2873
        %v2875 = vpop.f32.mrb[0].mxu0
        %2876 = vdwg.mxu0
        %v2877 = vmul.f32 %v2874, 0.5
        %v2878 = vmul.f32 %v2874, 0.044715
        %v2879 = vmul.f32 %v2878, %v2874
        %v2880 = vmul.f32 %v2879, %v2874
        %v2881 = vadd.f32 %v2874, %v2880
        %v2882 = vmul.f32 %v2881, 0.7978846
        %v2883 = vtanh.pop %v2882
        %v2884 = vadd.f32 %v2883, 1.0
        %v2885 = vmul.f32 %v2877, %v2884
        %s2886 = scalar_lea.vmem %s14, 64
        %v2887 = vld [vmem:[%s2886] sm:$0xff]
        %v2888 = vld [vmem:[%s2886 + $0x8] sm:$0xff]
        %v2889 = vld [vmem:[%s2886 + $0x10] sm:$0xff]
        %v2890 = vld [vmem:[%s2886 + $0x18] sm:$0xff]
        %v2891 = vld [vmem:[%s2886 + $0x20] sm:$0xff]
        %v2892 = vld [vmem:[%s2886 + $0x28] sm:$0xff]
        %v2893 = vld [vmem:[%s2886 + $0x30] sm:$0xff]
        %v2894 = vld [vmem:[%s2886 + $0x38] sm:$0xff]
        %s2895 = scalar_lea.vmem %s15, 1
        %v2896 = vld [vmem:[%s2895] sm:$0x1]
        %v2898 = vlaneseq
        %v2899 = vshrl.u32 %v2898, 7
        %v2900 = vsub.s32 0, %v2899
        %v2901 = vrot.slane %v2896, %v2900
        %v2904 = vsel %vm697, %v2885, 0
        %2906 = vmatprep.subr.mxu0 0.0
        %2907 = vmatpush1.msra.mxu0 %v2887
        %2908 = vmatprep.subr.mxu0 0.0
        %2909 = vmatpush1.msra.mxu0 %v2888
        %2910 = vmatprep.subr.mxu0 0.0
        %2911 = vmatpush1.msra.mxu0 %v2889
        %2912 = vmatprep.subr.mxu0 0.0
        %2913 = vmatpush1.msra.mxu0 %v2890
        %2914 = vmatprep.subr.mxu0 0.0
        %2915 = vmatpush1.msra.mxu0 %v2891
        %2916 = vmatprep.subr.mxu0 0.0
        %2917 = vmatpush1.msra.mxu0 %v2892
        %2918 = vmatprep.subr.mxu0 0.0
        %2919 = vmatpush1.msra.mxu0 %v2893
        %2920 = vmatprep.subr.mxu0 0.0
        %2921 = vmatpush1.msra.mxu0 %v2894
        %2922 = vmatprep.subr.mxu0 0.0
        %2923 = vmatpush1.msra.mxu0 0.0
        %2924 = vmatprep.subr.mxu0 0.0
        %2925 = vmatpush1.msra.mxu0 0.0
        %2926 = vmatprep.subr.mxu0 0.0
        %2927 = vmatpush1.msra.mxu0 0.0
        %2928 = vmatprep.subr.mxu0 0.0
        %2929 = vmatpush1.msra.mxu0 0.0
        %2930 = vmatprep.subr.mxu0 0.0
        %2931 = vmatpush1.msra.mxu0 0.0
        %2932 = vmatprep.subr.mxu0 0.0
        %2933 = vmatpush1.msra.mxu0 0.0
        %2934 = vmatprep.subr.mxu0 0.0
        %2935 = vmatpush1.msra.mxu0 0.0
        %2936 = vmatprep.subr.mxu0 0.0
        %2937 = vmatpush1.msra.mxu0 0.0
        %2938 = vmatprep.subr.mxu0 0.0
        %2939 = vmatpush1.msra.mxu0 0.0
        %2940 = vmatprep.subr.mxu0 0.0
        %2941 = vmatpush1.msra.mxu0 0.0
        %2942 = vmatprep.subr.mxu0 0.0
        %2943 = vmatpush1.msra.mxu0 0.0
        %2944 = vmatprep.subr.mxu0 0.0
        %2945 = vmatpush1.msra.mxu0 0.0
        %2946 = vmatprep.subr.mxu0 0.0
        %2947 = vmatpush1.msra.mxu0 0.0
        %2948 = vmatprep.subr.mxu0 0.0
        %2949 = vmatpush1.msra.mxu0 0.0
        %2950 = vmatprep.subr.mxu0 0.0
        %2951 = vmatpush1.msra.mxu0 0.0
        %2952 = vmatprep.subr.mxu0 0.0
        %2953 = vmatpush1.msra.mxu0 0.0
        %2954 = vmatprep.subr.mxu0 0.0
        %2955 = vmatpush1.msra.mxu0 0.0
        %2956 = vmatprep.subr.mxu0 0.0
        %2957 = vmatpush1.msra.mxu0 0.0
        %2958 = vmatprep.subr.mxu0 0.0
        %2959 = vmatpush1.msra.mxu0 0.0
        %2960 = vmatprep.subr.mxu0 0.0
        %2961 = vmatpush1.msra.mxu0 0.0
        %2962 = vmatprep.subr.mxu0 0.0
        %2963 = vmatpush1.msra.mxu0 0.0
        %2964 = vmatprep.subr.mxu0 0.0
        %2965 = vmatpush1.msra.mxu0 0.0
        %2966 = vmatprep.subr.mxu0 0.0
        %2967 = vmatpush1.msra.mxu0 0.0
        %2968 = vmatprep.subr.mxu0 0.0
        %2969 = vmatpush1.msra.mxu0 0.0
        %2970 = vmatprep.mubr.f32.mxu0 0.0
        %2971 = vmatmul.mubr.f32.gmra.mrb[0].mxu0 %v2904
        %v2972 = vpop.f32.mrb[0].mxu0
        %v2973 = vadd.f32 %v2901, %v2972
        %v2974 = vpop.f32.mrb[0].mxu0
        %2975 = vdwg.mxu0
        %v2976 = vadd.f32 %v2973, %v2790
        %s2977 = scalar_lea.vmem %s16, 1
        %v2978 = vld [vmem:[%s2977] sm:$0x1]
        %s2979 = scalar_lea.vmem [#allocation5], 1
        %v2980 = vld [vmem:[%s2979] sm:$0x1]
        %v2981 = vsel %vm773, %v2976, 0.0
        %2982 = vadd.xlane.f32.xlu0 %v2981
        %v2983 = vpop.xlane.xlu0 %2982
        %v2984 = vmul.f32 %v2976, %v2976
        %v2985 = vsel %vm773, %v2984, 0.0
        %2986 = vadd.xlane.f32.xlu0 %v2985
        %v2987 = vpop.xlane.xlu0 %2986
        %v2988 = vmul.f32 %v2983, 0.03125
        %v2989 = vmul.f32 %v2987, 0.03125
        %v2990 = vmul.f32 %v2988, %v2988
        %v2991 = vsub.f32 %v2989, %v2990
        %v2992 = vsub.f32 %v2976, %v2988
        %v2993 = vadd.f32 %v2991, 1e-12
        %v2994 = vrsqrt.pop %v2993
        %v2995 = vmul.f32 %v2992, %v2994
        %v2997 = vlaneseq
        %v2998 = vshrl.u32 %v2997, 7
        %v2999 = vsub.s32 0, %v2998
        %v3000 = vrot.slane %v2978, %v2999
        %v3002 = vmul.f32 %v2995, %v3000
        %v3004 = vlaneseq
        %v3005 = vshrl.u32 %v3004, 7
        %v3006 = vsub.s32 0, %v3005
        %v3007 = vrot.slane %v2980, %v3006
        %v3009 = vadd.f32 %v3002, %v3007
        %v3010 = vld [vmem:[%s18] sm:$0xff]
        %v3011 = vld [vmem:[%s18 + $0x8] sm:$0xff]
        %v3012 = vld [vmem:[%s18 + $0x10] sm:$0xff]
        %v3013 = vld [vmem:[%s18 + $0x18] sm:$0xff]
        %v3014 = vld [vmem:[#allocation7] sm:$0x1]
        %v3016 = vlaneseq
        %v3017 = vshrl.u32 %v3016, 7
        %v3018 = vsub.s32 0, %v3017
        %v3019 = vrot.slane %v3014, %v3018
        %v3022 = vsel %vm773, %v3009, 0
        %3024 = vmatprep.subr.mxu0 0.0
        %3025 = vmatpush1.msra.mxu0 %v3010
        %3026 = vmatprep.subr.mxu0 0.0
        %3027 = vmatpush1.msra.mxu0 %v3011
        %3028 = vmatprep.subr.mxu0 0.0
        %3029 = vmatpush1.msra.mxu0 %v3012
        %3030 = vmatprep.subr.mxu0 0.0
        %3031 = vmatpush1.msra.mxu0 %v3013
        %3032 = vmatprep.subr.mxu0 0.0
        %3033 = vmatpush1.msra.mxu0 0.0
        %3034 = vmatprep.subr.mxu0 0.0
        %3035 = vmatpush1.msra.mxu0 0.0
        %3036 = vmatprep.subr.mxu0 0.0
        %3037 = vmatpush1.msra.mxu0 0.0
        %3038 = vmatprep.subr.mxu0 0.0
        %3039 = vmatpush1.msra.mxu0 0.0
        %3040 = vmatprep.subr.mxu0 0.0
        %3041 = vmatpush1.msra.mxu0 0.0
        %3042 = vmatprep.subr.mxu0 0.0
        %3043 = vmatpush1.msra.mxu0 0.0
        %3044 = vmatprep.subr.mxu0 0.0
        %3045 = vmatpush1.msra.mxu0 0.0
        %3046 = vmatprep.subr.mxu0 0.0
        %3047 = vmatpush1.msra.mxu0 0.0
        %3048 = vmatprep.subr.mxu0 0.0
        %3049 = vmatpush1.msra.mxu0 0.0
        %3050 = vmatprep.subr.mxu0 0.0
        %3051 = vmatpush1.msra.mxu0 0.0
        %3052 = vmatprep.subr.mxu0 0.0
        %3053 = vmatpush1.msra.mxu0 0.0
        %3054 = vmatprep.subr.mxu0 0.0
        %3055 = vmatpush1.msra.mxu0 0.0
        %3056 = vmatprep.subr.mxu0 0.0
        %3057 = vmatpush1.msra.mxu0 0.0
        %3058 = vmatprep.subr.mxu0 0.0
        %3059 = vmatpush1.msra.mxu0 0.0
        %3060 = vmatprep.subr.mxu0 0.0
        %3061 = vmatpush1.msra.mxu0 0.0
        %3062 = vmatprep.subr.mxu0 0.0
        %3063 = vmatpush1.msra.mxu0 0.0
        %3064 = vmatprep.subr.mxu0 0.0
        %3065 = vmatpush1.msra.mxu0 0.0
        %3066 = vmatprep.subr.mxu0 0.0
        %3067 = vmatpush1.msra.mxu0 0.0
        %3068 = vmatprep.subr.mxu0 0.0
        %3069 = vmatpush1.msra.mxu0 0.0
        %3070 = vmatprep.subr.mxu0 0.0
        %3071 = vmatpush1.msra.mxu0 0.0
        %3072 = vmatprep.subr.mxu0 0.0
        %3073 = vmatpush1.msra.mxu0 0.0
        %3074 = vmatprep.subr.mxu0 0.0
        %3075 = vmatpush1.msra.mxu0 0.0
        %3076 = vmatprep.subr.mxu0 0.0
        %3077 = vmatpush1.msra.mxu0 0.0
        %3078 = vmatprep.subr.mxu0 0.0
        %3079 = vmatpush1.msra.mxu0 0.0
        %3080 = vmatprep.subr.mxu0 0.0
        %3081 = vmatpush1.msra.mxu0 0.0
        %3082 = vmatprep.subr.mxu0 0.0
        %3083 = vmatpush1.msra.mxu0 0.0
        %3084 = vmatprep.subr.mxu0 0.0
        %3085 = vmatpush1.msra.mxu0 0.0
        %3086 = vmatprep.subr.mxu0 0.0
        %3087 = vmatpush1.msra.mxu0 0.0
        %3088 = vmatprep.mubr.f32.mxu0 0.0
        %3089 = vmatmul.mubr.f32.gmra.mrb[0].mxu0 %v3022
        %v3090 = vpop.f32.mrb[0].mxu0
        %v3091 = vadd.f32 %v3019, %v3090
        %v3092 = vpop.f32.mrb[0].mxu0
        %3093 = vdwg.mxu0
        %3094 = vst [vmem:[%s678] sm:$0xff] %v3091
        %p3095 = scmp.lt.s32.totalorder %s33, 1
        %s3096 = scalar_select %p3095, %s33, 1
        %s3097 = smul.addr %s3096, 8
        %s3098 = scalar_lea.vmem %s20, %s3097
        // Predicated region
        $region113: #{sentiment_classifier_forward.1} parent=99 // pred_check
          %p3099 = pneg %p481
        $region114: #{sentiment_classifier_forward.1} parent=99 // pred_check_branch
          %3101 = sbr.rel (%p3099) target = $region116
        $region115: #{sentiment_classifier_forward.1} parent=99 // pred_region
          _
        $region116: #{sentiment_classifier_forward.1} parent=99 // pred_fallthru
          _
      $region100: #{sentiment_classifier_forward.1} parent=5 // pred_fallthru
        _
      %p3102 = scmp.le.s32.totalorder 2, %s28
      // Predicated region
      $region117: #{sentiment_classifier_forward.1} parent=5 // pred_check
        %p3103 = pneg %p3102
      $region118: #{sentiment_classifier_forward.1} parent=5 // pred_check_branch
        %3105 = sbr.rel (%p3103) target = $region120
      $region119: #{sentiment_classifier_forward.1} parent=5 // pred_region
        %s3106 = ssub.s32 %s28, 2
        // Predicated region
        $region121: #{sentiment_classifier_forward.1} parent=119 // pred_check
          %p3107 = pneg %p487
        $region122: #{sentiment_classifier_forward.1} parent=119 // pred_check_branch
          %3109 = sbr.rel (%p3107) target = $region124
        $region123: #{sentiment_classifier_forward.1} parent=119 // pred_region
          %p3110 = scmp.lt.s32.totalorder %s34, 1
          %s3111 = scalar_select %p3110, %s34, 1
          %s3112 = smul.addr %s3111, 8
          %s3113 = scalar_lea.vmem %s20, %s3112
        $region124: #{sentiment_classifier_forward.1} parent=119 // pred_fallthru
          _
      $region120: #{sentiment_classifier_forward.1} parent=5 // pred_fallthru
        _
    $region6: #{sentiment_classifier_forward.1} parent=1 // loop_footer
      %s32 = sadd.s32 1, %s28
    $region7: #{sentiment_classifier_forward.1} parent=1 // loop_footer_branch
      %27 = sbr.rel target = $region3
    $region8: #{sentiment_classifier_forward.1} parent=1 // loop_exit
      _
    %3114 = vsyncpa [#allocation4], 1
    %s3115 = scalar_lea.sflag [#allocation4], 1
    %3116 = vsyncpa %s3115, 1
    %3117 = vsyncpa [#allocation6], 1

</llo_original>
